<compile_context>
chip_gen: v5e
topology: v5e:2x2
jax: 0.10.0
libtpu: 0.0.40
codegen_flags: <defaults>
</compile_context>

<pallas_src>
import jax
import jax.numpy as jnp
from jax import lax
from jax.experimental import pallas as pl
from jax.experimental.pallas import tpu as pltpu

INPUT_SIZE = 64
HIDDEN_SIZE = 128
NUM_LAYERS = 2        # hard-coded as layer1 + layer2 in the kernel
OUT_FEATURES = 2
TIME_CHUNK = 8        # max timesteps per grid step (per-chunk g1 scratch)


def _lstm_kernel(x_ref,                         # (Tc*Bp, I)  chunk, time-major
                 wih1_ref, whh1_ref, b1_ref,    # (I,4H) (H,4H) (1,4H)
                 wih2_ref, whh2_ref, b2_ref,    # (H,4H) (H,4H) (1,4H)
                 wfc_ref, bfc_ref,              # (H,2)  (1,2)
                 out_ref,                       # (Bp, 2)
                 g1_ref,                        # VMEM (Tc*Bp, 4H) f32 scratch
                 h1_ref, c1_ref, h2_ref, c2_ref):  # VMEM (Bp, H) f32 state
    H = whh1_ref.shape[0]
    Bp = out_ref.shape[0]
    Tc = x_ref.shape[0] // Bp
    chunk = pl.program_id(0)
    acc = jnp.float32
    cdt = whh1_ref.dtype            # MXU input dtype (f32 or bf16); acc stays f32

    @pl.when(chunk == 0)
    def _():                         # PyTorch default zero initial state
        z = jnp.zeros((Bp, H), jnp.float32)
        h1_ref[...] = z
        c1_ref[...] = z
        h2_ref[...] = z
        c2_ref[...] = z

    # Hoisted layer-1 input projection for the whole chunk: one parallel MXU
    # matmul (absorbs the layer-1 bias); only the recurrent dots remain on the
    # serial per-step path.
    g1_ref[...] = (
        jnp.dot(x_ref[...], wih1_ref[...], preferred_element_type=acc)
        + b1_ref[...])

    def gates_to_hc(gates, c_prev):
        # Kernel gate layout [i, f, o, g]: one fused sigmoid over 3H lanes and
        # one tanh over H lanes (slices are lane-aligned, H = 128).
        sig = jax.nn.sigmoid(gates[:, :3 * H])
        g = jnp.tanh(gates[:, 3 * H:])
        i = sig[:, :H]
        f = sig[:, H:2 * H]
        o = sig[:, 2 * H:]
        c_new = f * c_prev + i * g
        return o * jnp.tanh(c_new), c_new

    def step(t, carry):
        h1, c1, h2, c2 = carry
        # Layer-2 h2_prev contribution FIRST: it only depends on the previous
        # step's h2, so its MXU work hides under layer-1's dot + gate math.
        g2 = (jnp.dot(h2.astype(cdt), whh2_ref[...], preferred_element_type=acc)
              + b2_ref[...])
        # Layer 1: only the recurrent dot is on the serial path.
        row = pl.multiple_of(t * Bp, 8)           # sublane-aligned slice start
        g1 = (g1_ref[pl.ds(row, Bp), :]
              + jnp.dot(h1.astype(cdt), whh1_ref[...], preferred_element_type=acc))
        h1, c1 = gates_to_hc(g1, c1)
        # Layer 2: remaining dot on this step's h1 accumulates into g2.
        g2 = g2 + jnp.dot(h1.astype(cdt), wih2_ref[...],
                          preferred_element_type=acc)
        h2, c2 = gates_to_hc(g2, c2)
        return (h1, c1, h2, c2)

    carry0 = (h1_ref[...], c1_ref[...], h2_ref[...], c2_ref[...])
    # Full unroll only while the chunk is short (LLO scheduling win); partial
    # unroll otherwise to bound code size / vreg live ranges.
    h1, c1, h2, c2 = lax.fori_loop(0, Tc, step, carry0,
                                   unroll=(True if Tc <= 16 else 4))
    h1_ref[...] = h1
    c1_ref[...] = c1
    h2_ref[...] = h2
    c2_ref[...] = c2

    @pl.when(chunk == pl.num_programs(0) - 1)
    def _():
        # fc on the last timestep's top-layer hidden state.
        # (out last-dim = 2 -> masked store; negligible at this output volume.)
        out_ref[...] = (jnp.dot(h2.astype(cdt), wfc_ref[...],
                                preferred_element_type=acc)
                        + bfc_ref[...])


def lstm_model_forward(x, params, *, weight_dtype=jnp.float32,
                       time_chunk=TIME_CHUNK):
    """x: (B, T, INPUT_SIZE) float32 (batch_first, like the PyTorch module).

    params: kernel-layout params from prepare_params().
    weight_dtype=jnp.bfloat16 enables the bf16-weight fast path (v6e/v7x):
    halved weight DMA/VMEM, native bf16 MXU, f32 accumulation.
    """
    B, T, I = x.shape
    H = HIDDEN_SIZE
    wih1_t, whh1_t, b1, wih2_t, whh2_t, b2, wfc_t, bfc = params

    if weight_dtype != jnp.float32:
        cast = lambda w: w.astype(weight_dtype)
        wih1_t, whh1_t, wih2_t, whh2_t, wfc_t = map(
            cast, (wih1_t, whh1_t, wih2_t, whh2_t, wfc_t))
        x = x.astype(weight_dtype)   # biases / accumulators stay f32

    # Pad batch to a multiple of 8 (f32 sublane tile); padded rows discarded.
    Bp = ((B + 7) // 8) * 8
    if Bp != B:
        x = jnp.pad(x, ((0, Bp - B), (0, 0), (0, 0)))

    # Time chunking: largest divisor of T that is <= time_chunk, so the
    # per-chunk g1 scratch stays small and the x-chunk DMA pipelines against
    # the recurrence (on v7x's 64 MiB VMEM this is what keeps the kernel valid
    # as T/B scale).
    Tc = max(d for d in range(1, min(T, time_chunk) + 1) if T % d == 0)
    n_chunks = T // Tc

    # Time-major and flattened, so the hoisted input projection is a single
    # 2-D matmul per chunk and each per-step slice is a contiguous (Bp, 4H) tile.
    x2d = jnp.transpose(x, (1, 0, 2)).reshape(T * Bp, I)

    def resident(arr):
        # Weight/bias resident in VMEM across the whole grid (same block index
        # every iteration => DMA'd once).
        return pl.BlockSpec(arr.shape, lambda t: (0, 0))

    out = pl.pallas_call(
        _lstm_kernel,
        out_shape=jax.ShapeDtypeStruct((Bp, OUT_FEATURES), jnp.float32),
        grid=(n_chunks,),
        in_specs=[pl.BlockSpec((Tc * Bp, I), lambda t: (t, 0)),
                  resident(wih1_t), resident(whh1_t), resident(b1),
                  resident(wih2_t), resident(whh2_t), resident(b2),
                  resident(wfc_t), resident(bfc)],
        out_specs=pl.BlockSpec((Bp, OUT_FEATURES), lambda t: (0, 0)),
        scratch_shapes=[pltpu.VMEM((Tc * Bp, 4 * H), jnp.float32),
                        pltpu.VMEM((Bp, H), jnp.float32),
                        pltpu.VMEM((Bp, H), jnp.float32),
                        pltpu.VMEM((Bp, H), jnp.float32),
                        pltpu.VMEM((Bp, H), jnp.float32)],
        compiler_params=pltpu.CompilerParams(
            dimension_semantics=("arbitrary",)),   # serial recurrence axis
    )(x2d, wih1_t, whh1_t, b1, wih2_t, whh2_t, b2, wfc_t, bfc)
    return out[:B]


def init_params(key):
    """PyTorch-layout parameters (uniform(-k, k), k = 1/sqrt(H)):
    per layer (w_ih (4H,in), w_hh (4H,H), b_ih (4H,), b_hh (4H,)) with gate-row
    order [i, f, g, o], plus fc (2,H) / (2,)."""
    H, I = HIDDEN_SIZE, INPUT_SIZE
    k = 1.0 / jnp.sqrt(jnp.float32(H))
    keys = jax.random.split(key, 10)
    u = lambda kk, shape: jax.random.uniform(kk, shape, jnp.float32, -k, k)

    w_ih1 = u(keys[0], (4 * H, I))
    w_hh1 = u(keys[1], (4 * H, H))
    b_ih1 = u(keys[2], (4 * H,))
    b_hh1 = u(keys[3], (4 * H,))
    w_ih2 = u(keys[4], (4 * H, H))     # layer-2 input size == H
    w_hh2 = u(keys[5], (4 * H, H))
    b_ih2 = u(keys[6], (4 * H,))
    b_hh2 = u(keys[7], (4 * H,))
    w_fc = u(keys[8], (OUT_FEATURES, H))
    b_fc = u(keys[9], (OUT_FEATURES,))
    return (w_ih1, w_hh1, b_ih1, b_hh1,
            w_ih2, w_hh2, b_ih2, b_hh2, w_fc, b_fc)


def _reorder_gate_rows(a):
    """Reorder PyTorch gate blocks [i, f, g, o] -> kernel layout [i, f, o, g]
    along axis 0, so the kernel applies one fused sigmoid over 3H lanes."""
    H = HIDDEN_SIZE
    return jnp.concatenate([a[:2 * H], a[3 * H:], a[2 * H:3 * H]], axis=0)


def prepare_params(raw):
    """PyTorch-layout -> kernel layout: transpose to (in, 4H), fold b_ih+b_hh,
    reorder gate columns to [i, f, o, g]."""
    (w_ih1, w_hh1, b_ih1, b_hh1,
     w_ih2, w_hh2, b_ih2, b_hh2, w_fc, b_fc) = raw
    r = _reorder_gate_rows
    wih1_t = r(w_ih1).T
    whh1_t = r(w_hh1).T
    b1 = r(b_ih1 + b_hh1).reshape(1, -1)
    wih2_t = r(w_ih2).T
    whh2_t = r(w_hh2).T
    b2 = r(b_ih2 + b_hh2).reshape(1, -1)
    return (wih1_t, whh1_t, b1, wih2_t, whh2_t, b2,
            w_fc.T, b_fc.reshape(1, OUT_FEATURES))


def lstm_model_ref(x, raw_params):
    """Pure-JAX reference with PyTorch LSTM semantics (raw param layout)."""
    (w_ih1, w_hh1, b_ih1, b_hh1,
     w_ih2, w_hh2, b_ih2, b_hh2, w_fc, b_fc) = raw_params
    H = HIDDEN_SIZE
    B, T, I = x.shape
    hp = lax.Precision.HIGHEST

    def cell(x_t, h, c, w_ih, w_hh, b):
        g = (jnp.dot(x_t, w_ih.T, precision=hp)
             + jnp.dot(h, w_hh.T, precision=hp) + b)
        i = jax.nn.sigmoid(g[:, :H])
        f = jax.nn.sigmoid(g[:, H:2 * H])
        gg = jnp.tanh(g[:, 2 * H:3 * H])
        o = jax.nn.sigmoid(g[:, 3 * H:])
        c = f * c + i * gg
        return o * jnp.tanh(c), c

    h1 = jnp.zeros((B, H), jnp.float32)
    c1 = jnp.zeros((B, H), jnp.float32)
    h2 = jnp.zeros((B, H), jnp.float32)
    c2 = jnp.zeros((B, H), jnp.float32)
    b1 = b_ih1 + b_hh1
    b2 = b_ih2 + b_hh2
    for t in range(T):
        x_t = x[:, t, :]
        h1, c1 = cell(x_t, h1, c1, w_ih1, w_hh1, b1)
        h2, c2 = cell(h1, h2, c2, w_ih2, w_hh2, b2)
    return jnp.dot(h2, w_fc.T, precision=hp) + b_fc


if __name__ == "__main__":
    key = jax.random.PRNGKey(0)
    key_x, key_p = jax.random.split(key)

    B, T = 2, 8
    x = jax.random.normal(key_x, (B, T, INPUT_SIZE), jnp.float32)
    raw_params = init_params(key_p)
    params = prepare_params(raw_params)

    ref = lstm_model_ref(x, raw_params)

    # f32-weight path: bit-for-bit semantics of the PyTorch module.
    out = jax.block_until_ready(lstm_model_forward(x, params))
    assert out.shape == (B, OUT_FEATURES)
    assert jnp.allclose(out, ref, atol=2e-5, rtol=2e-5), (out, ref)

    # bf16-weight fast path (v6e/v7x): halved weight DMA, f32 accumulate.
    out_bf16 = jax.block_until_ready(
        lstm_model_forward(x, params, weight_dtype=jnp.bfloat16))
    assert out_bf16.shape == (B, OUT_FEATURES)
    assert jnp.allclose(out_bf16, ref, atol=5e-2, rtol=5e-2), (out_bf16, ref)

    print("KERNEL_OK")
</pallas_src>

<mosaic_0001>
module attributes {stable_mosaic.version = 11 : i64} {
  func.func @_lstm_kernel(%arg0: i32, %arg1: memref<64x64xf32, #tpu.memory_space<vmem>>, %arg2: memref<64x512xf32, #tpu.memory_space<vmem>>, %arg3: memref<128x512xf32, #tpu.memory_space<vmem>>, %arg4: memref<1x512xf32, #tpu.memory_space<vmem>>, %arg5: memref<128x512xf32, #tpu.memory_space<vmem>>, %arg6: memref<128x512xf32, #tpu.memory_space<vmem>>, %arg7: memref<1x512xf32, #tpu.memory_space<vmem>>, %arg8: memref<128x2xf32, #tpu.memory_space<vmem>>, %arg9: memref<1x2xf32, #tpu.memory_space<vmem>>, %arg10: memref<8x2xf32, #tpu.memory_space<vmem>>, %arg11: memref<64x512xf32, #tpu.memory_space<vmem>>, %arg12: memref<8x128xf32, #tpu.memory_space<vmem>>, %arg13: memref<8x128xf32, #tpu.memory_space<vmem>>, %arg14: memref<8x128xf32, #tpu.memory_space<vmem>>, %arg15: memref<8x128xf32, #tpu.memory_space<vmem>>) attributes {dimension_semantics = [#tpu.dimension_semantics<arbitrary>], iteration_bounds = array<i64: 1>, scalar_prefetch = 0 : i64, scratch_operands = 5 : i64, tpu.core_type = #tpu.core_type<tc>, window_params = [{transform_indices = @transform_0, window_bounds = array<i64: 64, 64>}, {pipeline_mode = #tpu.pipeline_mode<synchronous>, transform_indices = @transform_1, window_bounds = array<i64: 64, 512>}, {pipeline_mode = #tpu.pipeline_mode<synchronous>, transform_indices = @transform_2, window_bounds = array<i64: 128, 512>}, {pipeline_mode = #tpu.pipeline_mode<synchronous>, transform_indices = @transform_3, window_bounds = array<i64: 1, 512>}, {pipeline_mode = #tpu.pipeline_mode<synchronous>, transform_indices = @transform_4, window_bounds = array<i64: 128, 512>}, {pipeline_mode = #tpu.pipeline_mode<synchronous>, transform_indices = @transform_5, window_bounds = array<i64: 128, 512>}, {pipeline_mode = #tpu.pipeline_mode<synchronous>, transform_indices = @transform_6, window_bounds = array<i64: 1, 512>}, {pipeline_mode = #tpu.pipeline_mode<synchronous>, transform_indices = @transform_7, window_bounds = array<i64: 128, 2>}, {pipeline_mode = #tpu.pipeline_mode<synchronous>, transform_indices = @transform_8, window_bounds = array<i64: 1, 2>}, {pipeline_mode = #tpu.pipeline_mode<synchronous>, transform_indices = @transform_9, window_bounds = array<i64: 8, 2>}]} {
    %c0_i32 = arith.constant 0 : i32
    %0 = arith.cmpi eq, %arg0, %c0_i32 : i32
    %1 = arith.extui %0 : i1 to i32
    %c0_i32_0 = arith.constant 0 : i32
    %2 = arith.cmpi ne, %1, %c0_i32_0 : i32
    scf.if %2 {
      %cst_147 = arith.constant 0.000000e+00 : f32
      %397 = vector.broadcast %cst_147 : f32 to vector<8x128xf32>
      %c0_148 = arith.constant 0 : index
      %c0_149 = arith.constant 0 : index
      %398 = vector.load %arg12[%c0_148, %c0_149] : memref<8x128xf32, #tpu.memory_space<vmem>>, vector<8x128xf32>
      tpu.vector_store %arg12[%c0_148, %c0_149], %397 {strides = array<i32>} : memref<8x128xf32, #tpu.memory_space<vmem>>, vector<8x128xf32>,
      %c0_150 = arith.constant 0 : index
      %c0_151 = arith.constant 0 : index
      %399 = vector.load %arg13[%c0_150, %c0_151] : memref<8x128xf32, #tpu.memory_space<vmem>>, vector<8x128xf32>
      tpu.vector_store %arg13[%c0_150, %c0_151], %397 {strides = array<i32>} : memref<8x128xf32, #tpu.memory_space<vmem>>, vector<8x128xf32>,
      %c0_152 = arith.constant 0 : index
      %c0_153 = arith.constant 0 : index
      %400 = vector.load %arg14[%c0_152, %c0_153] : memref<8x128xf32, #tpu.memory_space<vmem>>, vector<8x128xf32>
      tpu.vector_store %arg14[%c0_152, %c0_153], %397 {strides = array<i32>} : memref<8x128xf32, #tpu.memory_space<vmem>>, vector<8x128xf32>,
      %c0_154 = arith.constant 0 : index
      %c0_155 = arith.constant 0 : index
      %401 = vector.load %arg15[%c0_154, %c0_155] : memref<8x128xf32, #tpu.memory_space<vmem>>, vector<8x128xf32>
      tpu.vector_store %arg15[%c0_154, %c0_155], %397 {strides = array<i32>} : memref<8x128xf32, #tpu.memory_space<vmem>>, vector<8x128xf32>,
    } else {
    }
    %c0 = arith.constant 0 : index
    %c0_1 = arith.constant 0 : index
    %3 = vector.load %arg1[%c0, %c0_1] : memref<64x64xf32, #tpu.memory_space<vmem>>, vector<64x64xf32>
    %c0_2 = arith.constant 0 : index
    %c0_3 = arith.constant 0 : index
    %4 = vector.load %arg2[%c0_2, %c0_3] : memref<64x512xf32, #tpu.memory_space<vmem>>, vector<64x512xf32>
    %cst = arith.constant dense<0.000000e+00> : vector<64x512xf32>
    %5 = tpu.matmul %3, %4, %cst {dimension_numbers = #tpu.dot_dimension_numbers<[1], [0], [0], [1], [0, 0, 1, 1], [], []>} : vector<64x64xf32>, vector<64x512xf32>, vector<64x512xf32> -> vector<64x512xf32>
    %c0_4 = arith.constant 0 : index
    %c0_5 = arith.constant 0 : index
    %6 = vector.load %arg4[%c0_4, %c0_5] : memref<1x512xf32, #tpu.memory_space<vmem>>, vector<1x512xf32>
    %7 = vector.broadcast %6 : vector<1x512xf32> to vector<64x512xf32>
    %8 = arith.addf %5, %7 : vector<64x512xf32>
    %c0_6 = arith.constant 0 : index
    %c0_7 = arith.constant 0 : index
    %9 = vector.load %arg11[%c0_6, %c0_7] : memref<64x512xf32, #tpu.memory_space<vmem>>, vector<64x512xf32>
    tpu.vector_store %arg11[%c0_6, %c0_7], %8 {strides = array<i32>} : memref<64x512xf32, #tpu.memory_space<vmem>>, vector<64x512xf32>,
    %c0_8 = arith.constant 0 : index
    %c0_9 = arith.constant 0 : index
    %10 = vector.load %arg12[%c0_8, %c0_9] : memref<8x128xf32, #tpu.memory_space<vmem>>, vector<8x128xf32>
    %c0_10 = arith.constant 0 : index
    %c0_11 = arith.constant 0 : index
    %11 = vector.load %arg13[%c0_10, %c0_11] : memref<8x128xf32, #tpu.memory_space<vmem>>, vector<8x128xf32>
    %c0_12 = arith.constant 0 : index
    %c0_13 = arith.constant 0 : index
    %12 = vector.load %arg14[%c0_12, %c0_13] : memref<8x128xf32, #tpu.memory_space<vmem>>, vector<8x128xf32>
    %c0_14 = arith.constant 0 : index
    %c0_15 = arith.constant 0 : index
    %13 = vector.load %arg15[%c0_14, %c0_15] : memref<8x128xf32, #tpu.memory_space<vmem>>, vector<8x128xf32>
    %c0_i32_16 = arith.constant 0 : i32
    %c0_17 = arith.constant 0 : index
    %c0_18 = arith.constant 0 : index
    %14 = vector.load %arg6[%c0_17, %c0_18] : memref<128x512xf32, #tpu.memory_space<vmem>>, vector<128x512xf32>
    %cst_19 = arith.constant dense<0.000000e+00> : vector<8x512xf32>
    %15 = tpu.matmul %12, %14, %cst_19 {dimension_numbers = #tpu.dot_dimension_numbers<[1], [0], [0], [1], [0, 0, 1, 1], [], []>} : vector<8x128xf32>, vector<128x512xf32>, vector<8x512xf32> -> vector<8x512xf32>
    %c0_20 = arith.constant 0 : index
    %c0_21 = arith.constant 0 : index
    %16 = vector.load %arg7[%c0_20, %c0_21] : memref<1x512xf32, #tpu.memory_space<vmem>>, vector<1x512xf32>
    %17 = vector.broadcast %16 : vector<1x512xf32> to vector<8x512xf32>
    %18 = arith.addf %15, %17 : vector<8x512xf32>
    %c8_i32 = arith.constant 8 : i32
    %19 = arith.muli %c0_i32_16, %c8_i32 : i32
    %20 = tpu.assume_multiple %19, 8 : i32
    %21 = arith.index_cast %20 : i32 to index
    %c0_22 = arith.constant 0 : index
    %22 = vector.load %arg11[%21, %c0_22] : memref<64x512xf32, #tpu.memory_space<vmem>>, vector<8x512xf32>
    %c0_23 = arith.constant 0 : index
    %c0_24 = arith.constant 0 : index
    %23 = vector.load %arg3[%c0_23, %c0_24] : memref<128x512xf32, #tpu.memory_space<vmem>>, vector<128x512xf32>
    %cst_25 = arith.constant dense<0.000000e+00> : vector<8x512xf32>
    %24 = tpu.matmul %10, %23, %cst_25 {dimension_numbers = #tpu.dot_dimension_numbers<[1], [0], [0], [1], [0, 0, 1, 1], [], []>} : vector<8x128xf32>, vector<128x512xf32>, vector<8x512xf32> -> vector<8x512xf32>
    %25 = arith.addf %22, %24 : vector<8x512xf32>
    %26 = vector.extract_strided_slice %25 {offsets = [0, 0], sizes = [8, 384], strides = [1, 1]} : vector<8x512xf32> to vector<8x384xf32>
    %27 = arith.negf %26 : vector<8x384xf32>
    %28 = math.exp %27 : vector<8x384xf32>
    %cst_26 = arith.constant 1.000000e+00 : f32
    %29 = vector.broadcast %cst_26 : f32 to vector<8x384xf32>
    %30 = arith.addf %29, %28 : vector<8x384xf32>
    %31 = arith.divf %29, %30 : vector<8x384xf32>
    %32 = vector.extract_strided_slice %25 {offsets = [0, 384], sizes = [8, 128], strides = [1, 1]} : vector<8x512xf32> to vector<8x128xf32>
    %33 = math.tanh %32 : vector<8x128xf32>
    %34 = vector.extract_strided_slice %31 {offsets = [0, 0], sizes = [8, 128], strides = [1, 1]} : vector<8x384xf32> to vector<8x128xf32>
    %35 = vector.extract_strided_slice %31 {offsets = [0, 128], sizes = [8, 128], strides = [1, 1]} : vector<8x384xf32> to vector<8x128xf32>
    %36 = vector.extract_strided_slice %31 {offsets = [0, 256], sizes = [8, 128], strides = [1, 1]} : vector<8x384xf32> to vector<8x128xf32>
    %37 = arith.mulf %35, %11 : vector<8x128xf32>
    %38 = arith.mulf %34, %33 : vector<8x128xf32>
    %39 = arith.addf %37, %38 : vector<8x128xf32>
    %40 = math.tanh %39 : vector<8x128xf32>
    %41 = arith.mulf %36, %40 : vector<8x128xf32>
    %c0_27 = arith.constant 0 : index
    %c0_28 = arith.constant 0 : index
    %42 = vector.load %arg5[%c0_27, %c0_28] : memref<128x512xf32, #tpu.memory_space<vmem>>, vector<128x512xf32>
    %cst_29 = arith.constant dense<0.000000e+00> : vector<8x512xf32>
    %43 = tpu.matmul %41, %42, %cst_29 {dimension_numbers = #tpu.dot_dimension_numbers<[1], [0], [0], [1], [0, 0, 1, 1], [], []>} : vector<8x128xf32>, vector<128x512xf32>, vector<8x512xf32> -> vector<8x512xf32>
    %44 = arith.addf %18, %43 : vector<8x512xf32>
    %45 = vector.extract_strided_slice %44 {offsets = [0, 0], sizes = [8, 384], strides = [1, 1]} : vector<8x512xf32> to vector<8x384xf32>
    %46 = arith.negf %45 : vector<8x384xf32>
    %47 = math.exp %46 : vector<8x384xf32>
    %cst_30 = arith.constant 1.000000e+00 : f32
    %48 = vector.broadcast %cst_30 : f32 to vector<8x384xf32>
    %49 = arith.addf %48, %47 : vector<8x384xf32>
    %50 = arith.divf %48, %49 : vector<8x384xf32>
    %51 = vector.extract_strided_slice %44 {offsets = [0, 384], sizes = [8, 128], strides = [1, 1]} : vector<8x512xf32> to vector<8x128xf32>
    %52 = math.tanh %51 : vector<8x128xf32>
    %53 = vector.extract_strided_slice %50 {offsets = [0, 0], sizes = [8, 128], strides = [1, 1]} : vector<8x384xf32> to vector<8x128xf32>
    %54 = vector.extract_strided_slice %50 {offsets = [0, 128], sizes = [8, 128], strides = [1, 1]} : vector<8x384xf32> to vector<8x128xf32>
    %55 = vector.extract_strided_slice %50 {offsets = [0, 256], sizes = [8, 128], strides = [1, 1]} : vector<8x384xf32> to vector<8x128xf32>
    %56 = arith.mulf %54, %13 : vector<8x128xf32>
    %57 = arith.mulf %53, %52 : vector<8x128xf32>
    %58 = arith.addf %56, %57 : vector<8x128xf32>
    %59 = math.tanh %58 : vector<8x128xf32>
    %60 = arith.mulf %55, %59 : vector<8x128xf32>
    %c1_i32 = arith.constant 1 : i32
    %c0_31 = arith.constant 0 : index
    %c0_32 = arith.constant 0 : index
    %61 = vector.load %arg6[%c0_31, %c0_32] : memref<128x512xf32, #tpu.memory_space<vmem>>, vector<128x512xf32>
    %cst_33 = arith.constant dense<0.000000e+00> : vector<8x512xf32>
    %62 = tpu.matmul %60, %61, %cst_33 {dimension_numbers = #tpu.dot_dimension_numbers<[1], [0], [0], [1], [0, 0, 1, 1], [], []>} : vector<8x128xf32>, vector<128x512xf32>, vector<8x512xf32> -> vector<8x512xf32>
    %c0_34 = arith.constant 0 : index
    %c0_35 = arith.constant 0 : index
    %63 = vector.load %arg7[%c0_34, %c0_35] : memref<1x512xf32, #tpu.memory_space<vmem>>, vector<1x512xf32>
    %64 = vector.broadcast %63 : vector<1x512xf32> to vector<8x512xf32>
    %65 = arith.addf %62, %64 : vector<8x512xf32>
    %c8_i32_36 = arith.constant 8 : i32
    %66 = arith.muli %c1_i32, %c8_i32_36 : i32
    %67 = tpu.assume_multiple %66, 8 : i32
    %68 = arith.index_cast %67 : i32 to index
    %c0_37 = arith.constant 0 : index
    %69 = vector.load %arg11[%68, %c0_37] : memref<64x512xf32, #tpu.memory_space<vmem>>, vector<8x512xf32>
    %c0_38 = arith.constant 0 : index
    %c0_39 = arith.constant 0 : index
    %70 = vector.load %arg3[%c0_38, %c0_39] : memref<128x512xf32, #tpu.memory_space<vmem>>, vector<128x512xf32>
    %cst_40 = arith.constant dense<0.000000e+00> : vector<8x512xf32>
    %71 = tpu.matmul %41, %70, %cst_40 {dimension_numbers = #tpu.dot_dimension_numbers<[1], [0], [0], [1], [0, 0, 1, 1], [], []>} : vector<8x128xf32>, vector<128x512xf32>, vector<8x512xf32> -> vector<8x512xf32>
    %72 = arith.addf %69, %71 : vector<8x512xf32>
    %73 = vector.extract_strided_slice %72 {offsets = [0, 0], sizes = [8, 384], strides = [1, 1]} : vector<8x512xf32> to vector<8x384xf32>
    %74 = arith.negf %73 : vector<8x384xf32>
    %75 = math.exp %74 : vector<8x384xf32>
    %cst_41 = arith.constant 1.000000e+00 : f32
    %76 = vector.broadcast %cst_41 : f32 to vector<8x384xf32>
    %77 = arith.addf %76, %75 : vector<8x384xf32>
    %78 = arith.divf %76, %77 : vector<8x384xf32>
    %79 = vector.extract_strided_slice %72 {offsets = [0, 384], sizes = [8, 128], strides = [1, 1]} : vector<8x512xf32> to vector<8x128xf32>
    %80 = math.tanh %79 : vector<8x128xf32>
    %81 = vector.extract_strided_slice %78 {offsets = [0, 0], sizes = [8, 128], strides = [1, 1]} : vector<8x384xf32> to vector<8x128xf32>
    %82 = vector.extract_strided_slice %78 {offsets = [0, 128], sizes = [8, 128], strides = [1, 1]} : vector<8x384xf32> to vector<8x128xf32>
    %83 = vector.extract_strided_slice %78 {offsets = [0, 256], sizes = [8, 128], strides = [1, 1]} : vector<8x384xf32> to vector<8x128xf32>
    %84 = arith.mulf %82, %39 : vector<8x128xf32>
    %85 = arith.mulf %81, %80 : vector<8x128xf32>
    %86 = arith.addf %84, %85 : vector<8x128xf32>
    %87 = math.tanh %86 : vector<8x128xf32>
    %88 = arith.mulf %83, %87 : vector<8x128xf32>
    %c0_42 = arith.constant 0 : index
    %c0_43 = arith.constant 0 : index
    %89 = vector.load %arg5[%c0_42, %c0_43] : memref<128x512xf32, #tpu.memory_space<vmem>>, vector<128x512xf32>
    %cst_44 = arith.constant dense<0.000000e+00> : vector<8x512xf32>
    %90 = tpu.matmul %88, %89, %cst_44 {dimension_numbers = #tpu.dot_dimension_numbers<[1], [0], [0], [1], [0, 0, 1, 1], [], []>} : vector<8x128xf32>, vector<128x512xf32>, vector<8x512xf32> -> vector<8x512xf32>
    %91 = arith.addf %65, %90 : vector<8x512xf32>
    %92 = vector.extract_strided_slice %91 {offsets = [0, 0], sizes = [8, 384], strides = [1, 1]} : vector<8x512xf32> to vector<8x384xf32>
    %93 = arith.negf %92 : vector<8x384xf32>
    %94 = math.exp %93 : vector<8x384xf32>
    %cst_45 = arith.constant 1.000000e+00 : f32
    %95 = vector.broadcast %cst_45 : f32 to vector<8x384xf32>
    %96 = arith.addf %95, %94 : vector<8x384xf32>
    %97 = arith.divf %95, %96 : vector<8x384xf32>
    %98 = vector.extract_strided_slice %91 {offsets = [0, 384], sizes = [8, 128], strides = [1, 1]} : vector<8x512xf32> to vector<8x128xf32>
    %99 = math.tanh %98 : vector<8x128xf32>
    %100 = vector.extract_strided_slice %97 {offsets = [0, 0], sizes = [8, 128], strides = [1, 1]} : vector<8x384xf32> to vector<8x128xf32>
    %101 = vector.extract_strided_slice %97 {offsets = [0, 128], sizes = [8, 128], strides = [1, 1]} : vector<8x384xf32> to vector<8x128xf32>
    %102 = vector.extract_strided_slice %97 {offsets = [0, 256], sizes = [8, 128], strides = [1, 1]} : vector<8x384xf32> to vector<8x128xf32>
    %103 = arith.mulf %101, %58 : vector<8x128xf32>
    %104 = arith.mulf %100, %99 : vector<8x128xf32>
    %105 = arith.addf %103, %104 : vector<8x128xf32>
    %106 = math.tanh %105 : vector<8x128xf32>
    %107 = arith.mulf %102, %106 : vector<8x128xf32>
    %c2_i32 = arith.constant 2 : i32
    %c0_46 = arith.constant 0 : index
    %c0_47 = arith.constant 0 : index
    %108 = vector.load %arg6[%c0_46, %c0_47] : memref<128x512xf32, #tpu.memory_space<vmem>>, vector<128x512xf32>
    %cst_48 = arith.constant dense<0.000000e+00> : vector<8x512xf32>
    %109 = tpu.matmul %107, %108, %cst_48 {dimension_numbers = #tpu.dot_dimension_numbers<[1], [0], [0], [1], [0, 0, 1, 1], [], []>} : vector<8x128xf32>, vector<128x512xf32>, vector<8x512xf32> -> vector<8x512xf32>
    %c0_49 = arith.constant 0 : index
    %c0_50 = arith.constant 0 : index
    %110 = vector.load %arg7[%c0_49, %c0_50] : memref<1x512xf32, #tpu.memory_space<vmem>>, vector<1x512xf32>
    %111 = vector.broadcast %110 : vector<1x512xf32> to vector<8x512xf32>
    %112 = arith.addf %109, %111 : vector<8x512xf32>
    %c8_i32_51 = arith.constant 8 : i32
    %113 = arith.muli %c2_i32, %c8_i32_51 : i32
    %114 = tpu.assume_multiple %113, 8 : i32
    %115 = arith.index_cast %114 : i32 to index
    %c0_52 = arith.constant 0 : index
    %116 = vector.load %arg11[%115, %c0_52] : memref<64x512xf32, #tpu.memory_space<vmem>>, vector<8x512xf32>
    %c0_53 = arith.constant 0 : index
    %c0_54 = arith.constant 0 : index
    %117 = vector.load %arg3[%c0_53, %c0_54] : memref<128x512xf32, #tpu.memory_space<vmem>>, vector<128x512xf32>
    %cst_55 = arith.constant dense<0.000000e+00> : vector<8x512xf32>
    %118 = tpu.matmul %88, %117, %cst_55 {dimension_numbers = #tpu.dot_dimension_numbers<[1], [0], [0], [1], [0, 0, 1, 1], [], []>} : vector<8x128xf32>, vector<128x512xf32>, vector<8x512xf32> -> vector<8x512xf32>
    %119 = arith.addf %116, %118 : vector<8x512xf32>
    %120 = vector.extract_strided_slice %119 {offsets = [0, 0], sizes = [8, 384], strides = [1, 1]} : vector<8x512xf32> to vector<8x384xf32>
    %121 = arith.negf %120 : vector<8x384xf32>
    %122 = math.exp %121 : vector<8x384xf32>
    %cst_56 = arith.constant 1.000000e+00 : f32
    %123 = vector.broadcast %cst_56 : f32 to vector<8x384xf32>
    %124 = arith.addf %123, %122 : vector<8x384xf32>
    %125 = arith.divf %123, %124 : vector<8x384xf32>
    %126 = vector.extract_strided_slice %119 {offsets = [0, 384], sizes = [8, 128], strides = [1, 1]} : vector<8x512xf32> to vector<8x128xf32>
    %127 = math.tanh %126 : vector<8x128xf32>
    %128 = vector.extract_strided_slice %125 {offsets = [0, 0], sizes = [8, 128], strides = [1, 1]} : vector<8x384xf32> to vector<8x128xf32>
    %129 = vector.extract_strided_slice %125 {offsets = [0, 128], sizes = [8, 128], strides = [1, 1]} : vector<8x384xf32> to vector<8x128xf32>
    %130 = vector.extract_strided_slice %125 {offsets = [0, 256], sizes = [8, 128], strides = [1, 1]} : vector<8x384xf32> to vector<8x128xf32>
    %131 = arith.mulf %129, %86 : vector<8x128xf32>
    %132 = arith.mulf %128, %127 : vector<8x128xf32>
    %133 = arith.addf %131, %132 : vector<8x128xf32>
    %134 = math.tanh %133 : vector<8x128xf32>
    %135 = arith.mulf %130, %134 : vector<8x128xf32>
    %c0_57 = arith.constant 0 : index
    %c0_58 = arith.constant 0 : index
    %136 = vector.load %arg5[%c0_57, %c0_58] : memref<128x512xf32, #tpu.memory_space<vmem>>, vector<128x512xf32>
    %cst_59 = arith.constant dense<0.000000e+00> : vector<8x512xf32>
    %137 = tpu.matmul %135, %136, %cst_59 {dimension_numbers = #tpu.dot_dimension_numbers<[1], [0], [0], [1], [0, 0, 1, 1], [], []>} : vector<8x128xf32>, vector<128x512xf32>, vector<8x512xf32> -> vector<8x512xf32>
    %138 = arith.addf %112, %137 : vector<8x512xf32>
    %139 = vector.extract_strided_slice %138 {offsets = [0, 0], sizes = [8, 384], strides = [1, 1]} : vector<8x512xf32> to vector<8x384xf32>
    %140 = arith.negf %139 : vector<8x384xf32>
    %141 = math.exp %140 : vector<8x384xf32>
    %cst_60 = arith.constant 1.000000e+00 : f32
    %142 = vector.broadcast %cst_60 : f32 to vector<8x384xf32>
    %143 = arith.addf %142, %141 : vector<8x384xf32>
    %144 = arith.divf %142, %143 : vector<8x384xf32>
    %145 = vector.extract_strided_slice %138 {offsets = [0, 384], sizes = [8, 128], strides = [1, 1]} : vector<8x512xf32> to vector<8x128xf32>
    %146 = math.tanh %145 : vector<8x128xf32>
    %147 = vector.extract_strided_slice %144 {offsets = [0, 0], sizes = [8, 128], strides = [1, 1]} : vector<8x384xf32> to vector<8x128xf32>
    %148 = vector.extract_strided_slice %144 {offsets = [0, 128], sizes = [8, 128], strides = [1, 1]} : vector<8x384xf32> to vector<8x128xf32>
    %149 = vector.extract_strided_slice %144 {offsets = [0, 256], sizes = [8, 128], strides = [1, 1]} : vector<8x384xf32> to vector<8x128xf32>
    %150 = arith.mulf %148, %105 : vector<8x128xf32>
    %151 = arith.mulf %147, %146 : vector<8x128xf32>
    %152 = arith.addf %150, %151 : vector<8x128xf32>
    %153 = math.tanh %152 : vector<8x128xf32>
    %154 = arith.mulf %149, %153 : vector<8x128xf32>
    %c3_i32 = arith.constant 3 : i32
    %c0_61 = arith.constant 0 : index
    %c0_62 = arith.constant 0 : index
    %155 = vector.load %arg6[%c0_61, %c0_62] : memref<128x512xf32, #tpu.memory_space<vmem>>, vector<128x512xf32>
    %cst_63 = arith.constant dense<0.000000e+00> : vector<8x512xf32>
    %156 = tpu.matmul %154, %155, %cst_63 {dimension_numbers = #tpu.dot_dimension_numbers<[1], [0], [0], [1], [0, 0, 1, 1], [], []>} : vector<8x128xf32>, vector<128x512xf32>, vector<8x512xf32> -> vector<8x512xf32>
    %c0_64 = arith.constant 0 : index
    %c0_65 = arith.constant 0 : index
    %157 = vector.load %arg7[%c0_64, %c0_65] : memref<1x512xf32, #tpu.memory_space<vmem>>, vector<1x512xf32>
    %158 = vector.broadcast %157 : vector<1x512xf32> to vector<8x512xf32>
    %159 = arith.addf %156, %158 : vector<8x512xf32>
    %c8_i32_66 = arith.constant 8 : i32
    %160 = arith.muli %c3_i32, %c8_i32_66 : i32
    %161 = tpu.assume_multiple %160, 8 : i32
    %162 = arith.index_cast %161 : i32 to index
    %c0_67 = arith.constant 0 : index
    %163 = vector.load %arg11[%162, %c0_67] : memref<64x512xf32, #tpu.memory_space<vmem>>, vector<8x512xf32>
    %c0_68 = arith.constant 0 : index
    %c0_69 = arith.constant 0 : index
    %164 = vector.load %arg3[%c0_68, %c0_69] : memref<128x512xf32, #tpu.memory_space<vmem>>, vector<128x512xf32>
    %cst_70 = arith.constant dense<0.000000e+00> : vector<8x512xf32>
    %165 = tpu.matmul %135, %164, %cst_70 {dimension_numbers = #tpu.dot_dimension_numbers<[1], [0], [0], [1], [0, 0, 1, 1], [], []>} : vector<8x128xf32>, vector<128x512xf32>, vector<8x512xf32> -> vector<8x512xf32>
    %166 = arith.addf %163, %165 : vector<8x512xf32>
    %167 = vector.extract_strided_slice %166 {offsets = [0, 0], sizes = [8, 384], strides = [1, 1]} : vector<8x512xf32> to vector<8x384xf32>
    %168 = arith.negf %167 : vector<8x384xf32>
    %169 = math.exp %168 : vector<8x384xf32>
    %cst_71 = arith.constant 1.000000e+00 : f32
    %170 = vector.broadcast %cst_71 : f32 to vector<8x384xf32>
    %171 = arith.addf %170, %169 : vector<8x384xf32>
    %172 = arith.divf %170, %171 : vector<8x384xf32>
    %173 = vector.extract_strided_slice %166 {offsets = [0, 384], sizes = [8, 128], strides = [1, 1]} : vector<8x512xf32> to vector<8x128xf32>
    %174 = math.tanh %173 : vector<8x128xf32>
    %175 = vector.extract_strided_slice %172 {offsets = [0, 0], sizes = [8, 128], strides = [1, 1]} : vector<8x384xf32> to vector<8x128xf32>
    %176 = vector.extract_strided_slice %172 {offsets = [0, 128], sizes = [8, 128], strides = [1, 1]} : vector<8x384xf32> to vector<8x128xf32>
    %177 = vector.extract_strided_slice %172 {offsets = [0, 256], sizes = [8, 128], strides = [1, 1]} : vector<8x384xf32> to vector<8x128xf32>
    %178 = arith.mulf %176, %133 : vector<8x128xf32>
    %179 = arith.mulf %175, %174 : vector<8x128xf32>
    %180 = arith.addf %178, %179 : vector<8x128xf32>
    %181 = math.tanh %180 : vector<8x128xf32>
    %182 = arith.mulf %177, %181 : vector<8x128xf32>
    %c0_72 = arith.constant 0 : index
    %c0_73 = arith.constant 0 : index
    %183 = vector.load %arg5[%c0_72, %c0_73] : memref<128x512xf32, #tpu.memory_space<vmem>>, vector<128x512xf32>
    %cst_74 = arith.constant dense<0.000000e+00> : vector<8x512xf32>
    %184 = tpu.matmul %182, %183, %cst_74 {dimension_numbers = #tpu.dot_dimension_numbers<[1], [0], [0], [1], [0, 0, 1, 1], [], []>} : vector<8x128xf32>, vector<128x512xf32>, vector<8x512xf32> -> vector<8x512xf32>
    %185 = arith.addf %159, %184 : vector<8x512xf32>
    %186 = vector.extract_strided_slice %185 {offsets = [0, 0], sizes = [8, 384], strides = [1, 1]} : vector<8x512xf32> to vector<8x384xf32>
    %187 = arith.negf %186 : vector<8x384xf32>
    %188 = math.exp %187 : vector<8x384xf32>
    %cst_75 = arith.constant 1.000000e+00 : f32
    %189 = vector.broadcast %cst_75 : f32 to vector<8x384xf32>
    %190 = arith.addf %189, %188 : vector<8x384xf32>
    %191 = arith.divf %189, %190 : vector<8x384xf32>
    %192 = vector.extract_strided_slice %185 {offsets = [0, 384], sizes = [8, 128], strides = [1, 1]} : vector<8x512xf32> to vector<8x128xf32>
    %193 = math.tanh %192 : vector<8x128xf32>
    %194 = vector.extract_strided_slice %191 {offsets = [0, 0], sizes = [8, 128], strides = [1, 1]} : vector<8x384xf32> to vector<8x128xf32>
    %195 = vector.extract_strided_slice %191 {offsets = [0, 128], sizes = [8, 128], strides = [1, 1]} : vector<8x384xf32> to vector<8x128xf32>
    %196 = vector.extract_strided_slice %191 {offsets = [0, 256], sizes = [8, 128], strides = [1, 1]} : vector<8x384xf32> to vector<8x128xf32>
    %197 = arith.mulf %195, %152 : vector<8x128xf32>
    %198 = arith.mulf %194, %193 : vector<8x128xf32>
    %199 = arith.addf %197, %198 : vector<8x128xf32>
    %200 = math.tanh %199 : vector<8x128xf32>
    %201 = arith.mulf %196, %200 : vector<8x128xf32>
    %c4_i32 = arith.constant 4 : i32
    %c0_76 = arith.constant 0 : index
    %c0_77 = arith.constant 0 : index
    %202 = vector.load %arg6[%c0_76, %c0_77] : memref<128x512xf32, #tpu.memory_space<vmem>>, vector<128x512xf32>
    %cst_78 = arith.constant dense<0.000000e+00> : vector<8x512xf32>
    %203 = tpu.matmul %201, %202, %cst_78 {dimension_numbers = #tpu.dot_dimension_numbers<[1], [0], [0], [1], [0, 0, 1, 1], [], []>} : vector<8x128xf32>, vector<128x512xf32>, vector<8x512xf32> -> vector<8x512xf32>
    %c0_79 = arith.constant 0 : index
    %c0_80 = arith.constant 0 : index
    %204 = vector.load %arg7[%c0_79, %c0_80] : memref<1x512xf32, #tpu.memory_space<vmem>>, vector<1x512xf32>
    %205 = vector.broadcast %204 : vector<1x512xf32> to vector<8x512xf32>
    %206 = arith.addf %203, %205 : vector<8x512xf32>
    %c8_i32_81 = arith.constant 8 : i32
    %207 = arith.muli %c4_i32, %c8_i32_81 : i32
    %208 = tpu.assume_multiple %207, 8 : i32
    %209 = arith.index_cast %208 : i32 to index
    %c0_82 = arith.constant 0 : index
    %210 = vector.load %arg11[%209, %c0_82] : memref<64x512xf32, #tpu.memory_space<vmem>>, vector<8x512xf32>
    %c0_83 = arith.constant 0 : index
    %c0_84 = arith.constant 0 : index
    %211 = vector.load %arg3[%c0_83, %c0_84] : memref<128x512xf32, #tpu.memory_space<vmem>>, vector<128x512xf32>
    %cst_85 = arith.constant dense<0.000000e+00> : vector<8x512xf32>
    %212 = tpu.matmul %182, %211, %cst_85 {dimension_numbers = #tpu.dot_dimension_numbers<[1], [0], [0], [1], [0, 0, 1, 1], [], []>} : vector<8x128xf32>, vector<128x512xf32>, vector<8x512xf32> -> vector<8x512xf32>
    %213 = arith.addf %210, %212 : vector<8x512xf32>
    %214 = vector.extract_strided_slice %213 {offsets = [0, 0], sizes = [8, 384], strides = [1, 1]} : vector<8x512xf32> to vector<8x384xf32>
    %215 = arith.negf %214 : vector<8x384xf32>
    %216 = math.exp %215 : vector<8x384xf32>
    %cst_86 = arith.constant 1.000000e+00 : f32
    %217 = vector.broadcast %cst_86 : f32 to vector<8x384xf32>
    %218 = arith.addf %217, %216 : vector<8x384xf32>
    %219 = arith.divf %217, %218 : vector<8x384xf32>
    %220 = vector.extract_strided_slice %213 {offsets = [0, 384], sizes = [8, 128], strides = [1, 1]} : vector<8x512xf32> to vector<8x128xf32>
    %221 = math.tanh %220 : vector<8x128xf32>
    %222 = vector.extract_strided_slice %219 {offsets = [0, 0], sizes = [8, 128], strides = [1, 1]} : vector<8x384xf32> to vector<8x128xf32>
    %223 = vector.extract_strided_slice %219 {offsets = [0, 128], sizes = [8, 128], strides = [1, 1]} : vector<8x384xf32> to vector<8x128xf32>
    %224 = vector.extract_strided_slice %219 {offsets = [0, 256], sizes = [8, 128], strides = [1, 1]} : vector<8x384xf32> to vector<8x128xf32>
    %225 = arith.mulf %223, %180 : vector<8x128xf32>
    %226 = arith.mulf %222, %221 : vector<8x128xf32>
    %227 = arith.addf %225, %226 : vector<8x128xf32>
    %228 = math.tanh %227 : vector<8x128xf32>
    %229 = arith.mulf %224, %228 : vector<8x128xf32>
    %c0_87 = arith.constant 0 : index
    %c0_88 = arith.constant 0 : index
    %230 = vector.load %arg5[%c0_87, %c0_88] : memref<128x512xf32, #tpu.memory_space<vmem>>, vector<128x512xf32>
    %cst_89 = arith.constant dense<0.000000e+00> : vector<8x512xf32>
    %231 = tpu.matmul %229, %230, %cst_89 {dimension_numbers = #tpu.dot_dimension_numbers<[1], [0], [0], [1], [0, 0, 1, 1], [], []>} : vector<8x128xf32>, vector<128x512xf32>, vector<8x512xf32> -> vector<8x512xf32>
    %232 = arith.addf %206, %231 : vector<8x512xf32>
    %233 = vector.extract_strided_slice %232 {offsets = [0, 0], sizes = [8, 384], strides = [1, 1]} : vector<8x512xf32> to vector<8x384xf32>
    %234 = arith.negf %233 : vector<8x384xf32>
    %235 = math.exp %234 : vector<8x384xf32>
    %cst_90 = arith.constant 1.000000e+00 : f32
    %236 = vector.broadcast %cst_90 : f32 to vector<8x384xf32>
    %237 = arith.addf %236, %235 : vector<8x384xf32>
    %238 = arith.divf %236, %237 : vector<8x384xf32>
    %239 = vector.extract_strided_slice %232 {offsets = [0, 384], sizes = [8, 128], strides = [1, 1]} : vector<8x512xf32> to vector<8x128xf32>
    %240 = math.tanh %239 : vector<8x128xf32>
    %241 = vector.extract_strided_slice %238 {offsets = [0, 0], sizes = [8, 128], strides = [1, 1]} : vector<8x384xf32> to vector<8x128xf32>
    %242 = vector.extract_strided_slice %238 {offsets = [0, 128], sizes = [8, 128], strides = [1, 1]} : vector<8x384xf32> to vector<8x128xf32>
    %243 = vector.extract_strided_slice %238 {offsets = [0, 256], sizes = [8, 128], strides = [1, 1]} : vector<8x384xf32> to vector<8x128xf32>
    %244 = arith.mulf %242, %199 : vector<8x128xf32>
    %245 = arith.mulf %241, %240 : vector<8x128xf32>
    %246 = arith.addf %244, %245 : vector<8x128xf32>
    %247 = math.tanh %246 : vector<8x128xf32>
    %248 = arith.mulf %243, %247 : vector<8x128xf32>
    %c5_i32 = arith.constant 5 : i32
    %c0_91 = arith.constant 0 : index
    %c0_92 = arith.constant 0 : index
    %249 = vector.load %arg6[%c0_91, %c0_92] : memref<128x512xf32, #tpu.memory_space<vmem>>, vector<128x512xf32>
    %cst_93 = arith.constant dense<0.000000e+00> : vector<8x512xf32>
    %250 = tpu.matmul %248, %249, %cst_93 {dimension_numbers = #tpu.dot_dimension_numbers<[1], [0], [0], [1], [0, 0, 1, 1], [], []>} : vector<8x128xf32>, vector<128x512xf32>, vector<8x512xf32> -> vector<8x512xf32>
    %c0_94 = arith.constant 0 : index
    %c0_95 = arith.constant 0 : index
    %251 = vector.load %arg7[%c0_94, %c0_95] : memref<1x512xf32, #tpu.memory_space<vmem>>, vector<1x512xf32>
    %252 = vector.broadcast %251 : vector<1x512xf32> to vector<8x512xf32>
    %253 = arith.addf %250, %252 : vector<8x512xf32>
    %c8_i32_96 = arith.constant 8 : i32
    %254 = arith.muli %c5_i32, %c8_i32_96 : i32
    %255 = tpu.assume_multiple %254, 8 : i32
    %256 = arith.index_cast %255 : i32 to index
    %c0_97 = arith.constant 0 : index
    %257 = vector.load %arg11[%256, %c0_97] : memref<64x512xf32, #tpu.memory_space<vmem>>, vector<8x512xf32>
    %c0_98 = arith.constant 0 : index
    %c0_99 = arith.constant 0 : index
    %258 = vector.load %arg3[%c0_98, %c0_99] : memref<128x512xf32, #tpu.memory_space<vmem>>, vector<128x512xf32>
    %cst_100 = arith.constant dense<0.000000e+00> : vector<8x512xf32>
    %259 = tpu.matmul %229, %258, %cst_100 {dimension_numbers = #tpu.dot_dimension_numbers<[1], [0], [0], [1], [0, 0, 1, 1], [], []>} : vector<8x128xf32>, vector<128x512xf32>, vector<8x512xf32> -> vector<8x512xf32>
    %260 = arith.addf %257, %259 : vector<8x512xf32>
    %261 = vector.extract_strided_slice %260 {offsets = [0, 0], sizes = [8, 384], strides = [1, 1]} : vector<8x512xf32> to vector<8x384xf32>
    %262 = arith.negf %261 : vector<8x384xf32>
    %263 = math.exp %262 : vector<8x384xf32>
    %cst_101 = arith.constant 1.000000e+00 : f32
    %264 = vector.broadcast %cst_101 : f32 to vector<8x384xf32>
    %265 = arith.addf %264, %263 : vector<8x384xf32>
    %266 = arith.divf %264, %265 : vector<8x384xf32>
    %267 = vector.extract_strided_slice %260 {offsets = [0, 384], sizes = [8, 128], strides = [1, 1]} : vector<8x512xf32> to vector<8x128xf32>
    %268 = math.tanh %267 : vector<8x128xf32>
    %269 = vector.extract_strided_slice %266 {offsets = [0, 0], sizes = [8, 128], strides = [1, 1]} : vector<8x384xf32> to vector<8x128xf32>
    %270 = vector.extract_strided_slice %266 {offsets = [0, 128], sizes = [8, 128], strides = [1, 1]} : vector<8x384xf32> to vector<8x128xf32>
    %271 = vector.extract_strided_slice %266 {offsets = [0, 256], sizes = [8, 128], strides = [1, 1]} : vector<8x384xf32> to vector<8x128xf32>
    %272 = arith.mulf %270, %227 : vector<8x128xf32>
    %273 = arith.mulf %269, %268 : vector<8x128xf32>
    %274 = arith.addf %272, %273 : vector<8x128xf32>
    %275 = math.tanh %274 : vector<8x128xf32>
    %276 = arith.mulf %271, %275 : vector<8x128xf32>
    %c0_102 = arith.constant 0 : index
    %c0_103 = arith.constant 0 : index
    %277 = vector.load %arg5[%c0_102, %c0_103] : memref<128x512xf32, #tpu.memory_space<vmem>>, vector<128x512xf32>
    %cst_104 = arith.constant dense<0.000000e+00> : vector<8x512xf32>
    %278 = tpu.matmul %276, %277, %cst_104 {dimension_numbers = #tpu.dot_dimension_numbers<[1], [0], [0], [1], [0, 0, 1, 1], [], []>} : vector<8x128xf32>, vector<128x512xf32>, vector<8x512xf32> -> vector<8x512xf32>
    %279 = arith.addf %253, %278 : vector<8x512xf32>
    %280 = vector.extract_strided_slice %279 {offsets = [0, 0], sizes = [8, 384], strides = [1, 1]} : vector<8x512xf32> to vector<8x384xf32>
    %281 = arith.negf %280 : vector<8x384xf32>
    %282 = math.exp %281 : vector<8x384xf32>
    %cst_105 = arith.constant 1.000000e+00 : f32
    %283 = vector.broadcast %cst_105 : f32 to vector<8x384xf32>
    %284 = arith.addf %283, %282 : vector<8x384xf32>
    %285 = arith.divf %283, %284 : vector<8x384xf32>
    %286 = vector.extract_strided_slice %279 {offsets = [0, 384], sizes = [8, 128], strides = [1, 1]} : vector<8x512xf32> to vector<8x128xf32>
    %287 = math.tanh %286 : vector<8x128xf32>
    %288 = vector.extract_strided_slice %285 {offsets = [0, 0], sizes = [8, 128], strides = [1, 1]} : vector<8x384xf32> to vector<8x128xf32>
    %289 = vector.extract_strided_slice %285 {offsets = [0, 128], sizes = [8, 128], strides = [1, 1]} : vector<8x384xf32> to vector<8x128xf32>
    %290 = vector.extract_strided_slice %285 {offsets = [0, 256], sizes = [8, 128], strides = [1, 1]} : vector<8x384xf32> to vector<8x128xf32>
    %291 = arith.mulf %289, %246 : vector<8x128xf32>
    %292 = arith.mulf %288, %287 : vector<8x128xf32>
    %293 = arith.addf %291, %292 : vector<8x128xf32>
    %294 = math.tanh %293 : vector<8x128xf32>
    %295 = arith.mulf %290, %294 : vector<8x128xf32>
    %c6_i32 = arith.constant 6 : i32
    %c0_106 = arith.constant 0 : index
    %c0_107 = arith.constant 0 : index
    %296 = vector.load %arg6[%c0_106, %c0_107] : memref<128x512xf32, #tpu.memory_space<vmem>>, vector<128x512xf32>
    %cst_108 = arith.constant dense<0.000000e+00> : vector<8x512xf32>
    %297 = tpu.matmul %295, %296, %cst_108 {dimension_numbers = #tpu.dot_dimension_numbers<[1], [0], [0], [1], [0, 0, 1, 1], [], []>} : vector<8x128xf32>, vector<128x512xf32>, vector<8x512xf32> -> vector<8x512xf32>
    %c0_109 = arith.constant 0 : index
    %c0_110 = arith.constant 0 : index
    %298 = vector.load %arg7[%c0_109, %c0_110] : memref<1x512xf32, #tpu.memory_space<vmem>>, vector<1x512xf32>
    %299 = vector.broadcast %298 : vector<1x512xf32> to vector<8x512xf32>
    %300 = arith.addf %297, %299 : vector<8x512xf32>
    %c8_i32_111 = arith.constant 8 : i32
    %301 = arith.muli %c6_i32, %c8_i32_111 : i32
    %302 = tpu.assume_multiple %301, 8 : i32
    %303 = arith.index_cast %302 : i32 to index
    %c0_112 = arith.constant 0 : index
    %304 = vector.load %arg11[%303, %c0_112] : memref<64x512xf32, #tpu.memory_space<vmem>>, vector<8x512xf32>
    %c0_113 = arith.constant 0 : index
    %c0_114 = arith.constant 0 : index
    %305 = vector.load %arg3[%c0_113, %c0_114] : memref<128x512xf32, #tpu.memory_space<vmem>>, vector<128x512xf32>
    %cst_115 = arith.constant dense<0.000000e+00> : vector<8x512xf32>
    %306 = tpu.matmul %276, %305, %cst_115 {dimension_numbers = #tpu.dot_dimension_numbers<[1], [0], [0], [1], [0, 0, 1, 1], [], []>} : vector<8x128xf32>, vector<128x512xf32>, vector<8x512xf32> -> vector<8x512xf32>
    %307 = arith.addf %304, %306 : vector<8x512xf32>
    %308 = vector.extract_strided_slice %307 {offsets = [0, 0], sizes = [8, 384], strides = [1, 1]} : vector<8x512xf32> to vector<8x384xf32>
    %309 = arith.negf %308 : vector<8x384xf32>
    %310 = math.exp %309 : vector<8x384xf32>
    %cst_116 = arith.constant 1.000000e+00 : f32
    %311 = vector.broadcast %cst_116 : f32 to vector<8x384xf32>
    %312 = arith.addf %311, %310 : vector<8x384xf32>
    %313 = arith.divf %311, %312 : vector<8x384xf32>
    %314 = vector.extract_strided_slice %307 {offsets = [0, 384], sizes = [8, 128], strides = [1, 1]} : vector<8x512xf32> to vector<8x128xf32>
    %315 = math.tanh %314 : vector<8x128xf32>
    %316 = vector.extract_strided_slice %313 {offsets = [0, 0], sizes = [8, 128], strides = [1, 1]} : vector<8x384xf32> to vector<8x128xf32>
    %317 = vector.extract_strided_slice %313 {offsets = [0, 128], sizes = [8, 128], strides = [1, 1]} : vector<8x384xf32> to vector<8x128xf32>
    %318 = vector.extract_strided_slice %313 {offsets = [0, 256], sizes = [8, 128], strides = [1, 1]} : vector<8x384xf32> to vector<8x128xf32>
    %319 = arith.mulf %317, %274 : vector<8x128xf32>
    %320 = arith.mulf %316, %315 : vector<8x128xf32>
    %321 = arith.addf %319, %320 : vector<8x128xf32>
    %322 = math.tanh %321 : vector<8x128xf32>
    %323 = arith.mulf %318, %322 : vector<8x128xf32>
    %c0_117 = arith.constant 0 : index
    %c0_118 = arith.constant 0 : index
    %324 = vector.load %arg5[%c0_117, %c0_118] : memref<128x512xf32, #tpu.memory_space<vmem>>, vector<128x512xf32>
    %cst_119 = arith.constant dense<0.000000e+00> : vector<8x512xf32>
    %325 = tpu.matmul %323, %324, %cst_119 {dimension_numbers = #tpu.dot_dimension_numbers<[1], [0], [0], [1], [0, 0, 1, 1], [], []>} : vector<8x128xf32>, vector<128x512xf32>, vector<8x512xf32> -> vector<8x512xf32>
    %326 = arith.addf %300, %325 : vector<8x512xf32>
    %327 = vector.extract_strided_slice %326 {offsets = [0, 0], sizes = [8, 384], strides = [1, 1]} : vector<8x512xf32> to vector<8x384xf32>
    %328 = arith.negf %327 : vector<8x384xf32>
    %329 = math.exp %328 : vector<8x384xf32>
    %cst_120 = arith.constant 1.000000e+00 : f32
    %330 = vector.broadcast %cst_120 : f32 to vector<8x384xf32>
    %331 = arith.addf %330, %329 : vector<8x384xf32>
    %332 = arith.divf %330, %331 : vector<8x384xf32>
    %333 = vector.extract_strided_slice %326 {offsets = [0, 384], sizes = [8, 128], strides = [1, 1]} : vector<8x512xf32> to vector<8x128xf32>
    %334 = math.tanh %333 : vector<8x128xf32>
    %335 = vector.extract_strided_slice %332 {offsets = [0, 0], sizes = [8, 128], strides = [1, 1]} : vector<8x384xf32> to vector<8x128xf32>
    %336 = vector.extract_strided_slice %332 {offsets = [0, 128], sizes = [8, 128], strides = [1, 1]} : vector<8x384xf32> to vector<8x128xf32>
    %337 = vector.extract_strided_slice %332 {offsets = [0, 256], sizes = [8, 128], strides = [1, 1]} : vector<8x384xf32> to vector<8x128xf32>
    %338 = arith.mulf %336, %293 : vector<8x128xf32>
    %339 = arith.mulf %335, %334 : vector<8x128xf32>
    %340 = arith.addf %338, %339 : vector<8x128xf32>
    %341 = math.tanh %340 : vector<8x128xf32>
    %342 = arith.mulf %337, %341 : vector<8x128xf32>
    %c7_i32 = arith.constant 7 : i32
    %c0_121 = arith.constant 0 : index
    %c0_122 = arith.constant 0 : index
    %343 = vector.load %arg6[%c0_121, %c0_122] : memref<128x512xf32, #tpu.memory_space<vmem>>, vector<128x512xf32>
    %cst_123 = arith.constant dense<0.000000e+00> : vector<8x512xf32>
    %344 = tpu.matmul %342, %343, %cst_123 {dimension_numbers = #tpu.dot_dimension_numbers<[1], [0], [0], [1], [0, 0, 1, 1], [], []>} : vector<8x128xf32>, vector<128x512xf32>, vector<8x512xf32> -> vector<8x512xf32>
    %c0_124 = arith.constant 0 : index
    %c0_125 = arith.constant 0 : index
    %345 = vector.load %arg7[%c0_124, %c0_125] : memref<1x512xf32, #tpu.memory_space<vmem>>, vector<1x512xf32>
    %346 = vector.broadcast %345 : vector<1x512xf32> to vector<8x512xf32>
    %347 = arith.addf %344, %346 : vector<8x512xf32>
    %c8_i32_126 = arith.constant 8 : i32
    %348 = arith.muli %c7_i32, %c8_i32_126 : i32
    %349 = tpu.assume_multiple %348, 8 : i32
    %350 = arith.index_cast %349 : i32 to index
    %c0_127 = arith.constant 0 : index
    %351 = vector.load %arg11[%350, %c0_127] : memref<64x512xf32, #tpu.memory_space<vmem>>, vector<8x512xf32>
    %c0_128 = arith.constant 0 : index
    %c0_129 = arith.constant 0 : index
    %352 = vector.load %arg3[%c0_128, %c0_129] : memref<128x512xf32, #tpu.memory_space<vmem>>, vector<128x512xf32>
    %cst_130 = arith.constant dense<0.000000e+00> : vector<8x512xf32>
    %353 = tpu.matmul %323, %352, %cst_130 {dimension_numbers = #tpu.dot_dimension_numbers<[1], [0], [0], [1], [0, 0, 1, 1], [], []>} : vector<8x128xf32>, vector<128x512xf32>, vector<8x512xf32> -> vector<8x512xf32>
    %354 = arith.addf %351, %353 : vector<8x512xf32>
    %355 = vector.extract_strided_slice %354 {offsets = [0, 0], sizes = [8, 384], strides = [1, 1]} : vector<8x512xf32> to vector<8x384xf32>
    %356 = arith.negf %355 : vector<8x384xf32>
    %357 = math.exp %356 : vector<8x384xf32>
    %cst_131 = arith.constant 1.000000e+00 : f32
    %358 = vector.broadcast %cst_131 : f32 to vector<8x384xf32>
    %359 = arith.addf %358, %357 : vector<8x384xf32>
    %360 = arith.divf %358, %359 : vector<8x384xf32>
    %361 = vector.extract_strided_slice %354 {offsets = [0, 384], sizes = [8, 128], strides = [1, 1]} : vector<8x512xf32> to vector<8x128xf32>
    %362 = math.tanh %361 : vector<8x128xf32>
    %363 = vector.extract_strided_slice %360 {offsets = [0, 0], sizes = [8, 128], strides = [1, 1]} : vector<8x384xf32> to vector<8x128xf32>
    %364 = vector.extract_strided_slice %360 {offsets = [0, 128], sizes = [8, 128], strides = [1, 1]} : vector<8x384xf32> to vector<8x128xf32>
    %365 = vector.extract_strided_slice %360 {offsets = [0, 256], sizes = [8, 128], strides = [1, 1]} : vector<8x384xf32> to vector<8x128xf32>
    %366 = arith.mulf %364, %321 : vector<8x128xf32>
    %367 = arith.mulf %363, %362 : vector<8x128xf32>
    %368 = arith.addf %366, %367 : vector<8x128xf32>
    %369 = math.tanh %368 : vector<8x128xf32>
    %370 = arith.mulf %365, %369 : vector<8x128xf32>
    %c0_132 = arith.constant 0 : index
    %c0_133 = arith.constant 0 : index
    %371 = vector.load %arg5[%c0_132, %c0_133] : memref<128x512xf32, #tpu.memory_space<vmem>>, vector<128x512xf32>
    %cst_134 = arith.constant dense<0.000000e+00> : vector<8x512xf32>
    %372 = tpu.matmul %370, %371, %cst_134 {dimension_numbers = #tpu.dot_dimension_numbers<[1], [0], [0], [1], [0, 0, 1, 1], [], []>} : vector<8x128xf32>, vector<128x512xf32>, vector<8x512xf32> -> vector<8x512xf32>
    %373 = arith.addf %347, %372 : vector<8x512xf32>
    %374 = vector.extract_strided_slice %373 {offsets = [0, 0], sizes = [8, 384], strides = [1, 1]} : vector<8x512xf32> to vector<8x384xf32>
    %375 = arith.negf %374 : vector<8x384xf32>
    %376 = math.exp %375 : vector<8x384xf32>
    %cst_135 = arith.constant 1.000000e+00 : f32
    %377 = vector.broadcast %cst_135 : f32 to vector<8x384xf32>
    %378 = arith.addf %377, %376 : vector<8x384xf32>
    %379 = arith.divf %377, %378 : vector<8x384xf32>
    %380 = vector.extract_strided_slice %373 {offsets = [0, 384], sizes = [8, 128], strides = [1, 1]} : vector<8x512xf32> to vector<8x128xf32>
    %381 = math.tanh %380 : vector<8x128xf32>
    %382 = vector.extract_strided_slice %379 {offsets = [0, 0], sizes = [8, 128], strides = [1, 1]} : vector<8x384xf32> to vector<8x128xf32>
    %383 = vector.extract_strided_slice %379 {offsets = [0, 128], sizes = [8, 128], strides = [1, 1]} : vector<8x384xf32> to vector<8x128xf32>
    %384 = vector.extract_strided_slice %379 {offsets = [0, 256], sizes = [8, 128], strides = [1, 1]} : vector<8x384xf32> to vector<8x128xf32>
    %385 = arith.mulf %383, %340 : vector<8x128xf32>
    %386 = arith.mulf %382, %381 : vector<8x128xf32>
    %387 = arith.addf %385, %386 : vector<8x128xf32>
    %388 = math.tanh %387 : vector<8x128xf32>
    %389 = arith.mulf %384, %388 : vector<8x128xf32>
    %c8_i32_136 = arith.constant 8 : i32
    %c0_137 = arith.constant 0 : index
    %c0_138 = arith.constant 0 : index
    %390 = vector.load %arg12[%c0_137, %c0_138] : memref<8x128xf32, #tpu.memory_space<vmem>>, vector<8x128xf32>
    tpu.vector_store %arg12[%c0_137, %c0_138], %370 {strides = array<i32>} : memref<8x128xf32, #tpu.memory_space<vmem>>, vector<8x128xf32>,
    %c0_139 = arith.constant 0 : index
    %c0_140 = arith.constant 0 : index
    %391 = vector.load %arg13[%c0_139, %c0_140] : memref<8x128xf32, #tpu.memory_space<vmem>>, vector<8x128xf32>
    tpu.vector_store %arg13[%c0_139, %c0_140], %368 {strides = array<i32>} : memref<8x128xf32, #tpu.memory_space<vmem>>, vector<8x128xf32>,
    %c0_141 = arith.constant 0 : index
    %c0_142 = arith.constant 0 : index
    %392 = vector.load %arg14[%c0_141, %c0_142] : memref<8x128xf32, #tpu.memory_space<vmem>>, vector<8x128xf32>
    tpu.vector_store %arg14[%c0_141, %c0_142], %389 {strides = array<i32>} : memref<8x128xf32, #tpu.memory_space<vmem>>, vector<8x128xf32>,
    %c0_143 = arith.constant 0 : index
    %c0_144 = arith.constant 0 : index
    %393 = vector.load %arg15[%c0_143, %c0_144] : memref<8x128xf32, #tpu.memory_space<vmem>>, vector<8x128xf32>
    tpu.vector_store %arg15[%c0_143, %c0_144], %387 {strides = array<i32>} : memref<8x128xf32, #tpu.memory_space<vmem>>, vector<8x128xf32>,
    %c0_i32_145 = arith.constant 0 : i32
    %394 = arith.cmpi eq, %arg0, %c0_i32_145 : i32
    %395 = arith.extui %394 : i1 to i32
    %c0_i32_146 = arith.constant 0 : i32
    %396 = arith.cmpi ne, %395, %c0_i32_146 : i32
    scf.if %396 {
      %c0_147 = arith.constant 0 : index
      %c0_148 = arith.constant 0 : index
      %397 = vector.load %arg8[%c0_147, %c0_148] : memref<128x2xf32, #tpu.memory_space<vmem>>, vector<128x2xf32>
      %cst_149 = arith.constant dense<0.000000e+00> : vector<8x2xf32>
      %398 = tpu.matmul %389, %397, %cst_149 {dimension_numbers = #tpu.dot_dimension_numbers<[1], [0], [0], [1], [0, 0, 1, 1], [], []>} : vector<8x128xf32>, vector<128x2xf32>, vector<8x2xf32> -> vector<8x2xf32>
      %c0_150 = arith.constant 0 : index
      %c0_151 = arith.constant 0 : index
      %399 = vector.load %arg9[%c0_150, %c0_151] : memref<1x2xf32, #tpu.memory_space<vmem>>, vector<1x2xf32>
      %400 = vector.broadcast %399 : vector<1x2xf32> to vector<8x2xf32>
      %401 = arith.addf %398, %400 : vector<8x2xf32>
      %c0_152 = arith.constant 0 : index
      %c0_153 = arith.constant 0 : index
      %402 = vector.load %arg10[%c0_152, %c0_153] : memref<8x2xf32, #tpu.memory_space<vmem>>, vector<8x2xf32>
      tpu.vector_store %arg10[%c0_152, %c0_153], %401 {strides = array<i32>} : memref<8x2xf32, #tpu.memory_space<vmem>>, vector<8x2xf32>,
    } else {
    }
    return
  }
  func.func @transform_0(%arg0: i32) -> (i32, i32) {
    %c0_i32 = arith.constant 0 : i32
    %c0_i32_0 = arith.constant 0 : i32
    return %arg0, %c0_i32 : i32, i32
  }
  func.func @transform_1(%arg0: i32) -> (i32, i32) {
    %c0_i32 = arith.constant 0 : i32
    %c0_i32_0 = arith.constant 0 : i32
    %c0_i32_1 = arith.constant 0 : i32
    return %c0_i32, %c0_i32_0 : i32, i32
  }
  func.func @transform_2(%arg0: i32) -> (i32, i32) {
    %c0_i32 = arith.constant 0 : i32
    %c0_i32_0 = arith.constant 0 : i32
    %c0_i32_1 = arith.constant 0 : i32
    return %c0_i32, %c0_i32_0 : i32, i32
  }
  func.func @transform_3(%arg0: i32) -> (i32, i32) {
    %c0_i32 = arith.constant 0 : i32
    %c0_i32_0 = arith.constant 0 : i32
    %c0_i32_1 = arith.constant 0 : i32
    return %c0_i32, %c0_i32_0 : i32, i32
  }
  func.func @transform_4(%arg0: i32) -> (i32, i32) {
    %c0_i32 = arith.constant 0 : i32
    %c0_i32_0 = arith.constant 0 : i32
    %c0_i32_1 = arith.constant 0 : i32
    return %c0_i32, %c0_i32_0 : i32, i32
  }
  func.func @transform_5(%arg0: i32) -> (i32, i32) {
    %c0_i32 = arith.constant 0 : i32
    %c0_i32_0 = arith.constant 0 : i32
    %c0_i32_1 = arith.constant 0 : i32
    return %c0_i32, %c0_i32_0 : i32, i32
  }
  func.func @transform_6(%arg0: i32) -> (i32, i32) {
    %c0_i32 = arith.constant 0 : i32
    %c0_i32_0 = arith.constant 0 : i32
    %c0_i32_1 = arith.constant 0 : i32
    return %c0_i32, %c0_i32_0 : i32, i32
  }
  func.func @transform_7(%arg0: i32) -> (i32, i32) {
    %c0_i32 = arith.constant 0 : i32
    %c0_i32_0 = arith.constant 0 : i32
    %c0_i32_1 = arith.constant 0 : i32
    return %c0_i32, %c0_i32_0 : i32, i32
  }
  func.func @transform_8(%arg0: i32) -> (i32, i32) {
    %c0_i32 = arith.constant 0 : i32
    %c0_i32_0 = arith.constant 0 : i32
    %c0_i32_1 = arith.constant 0 : i32
    return %c0_i32, %c0_i32_0 : i32, i32
  }
  func.func @transform_9(%arg0: i32) -> (i32, i32) {
    %c0_i32 = arith.constant 0 : i32
    %c0_i32_0 = arith.constant 0 : i32
    %c0_i32_1 = arith.constant 0 : i32
    return %c0_i32, %c0_i32_0 : i32, i32
  }
}

</mosaic_0001>

<llo_original>
// kernel: tpu_custom_call.1
$region0: #{tpu_custom_call.1}
  #allocation0 [shape = 'u32[]', space=smem, size = 0x4, offset = 0x4, fixed_abs, tag = 'smem constant byte address 0x4 - core index']
  #allocation1 [shape = 'u32[72,128]{1,0:T(1,128)}', space=vmem, size = 0x9000, scoped, tag = 'internal scratch']
  #allocation2 [shape = 'f32[64,512]{1,0:T(8,128)}', space=vmem, size = 0x20000, scoped, tag = 'scratch operand']
  #allocation3 [shape = 'f32[8,128]{1,0:T(8,128)}', space=vmem, size = 0x1000, scoped, tag = 'scratch operand']
  #allocation4 [shape = 'f32[8,128]{1,0:T(8,128)}', space=vmem, size = 0x1000, scoped, tag = 'scratch operand']
  #allocation5 [shape = 'f32[8,128]{1,0:T(8,128)}', space=vmem, size = 0x1000, scoped, tag = 'scratch operand']
  #allocation6 [shape = 'f32[8,128]{1,0:T(8,128)}', space=vmem, size = 0x1000, scoped, tag = 'scratch operand']
  %s0 = inlined_call_operand.vmem [shape: f32[64,64], index: 0, kind: input, shape index: {}]
  %s1 = inlined_call_operand.hbm [shape: f32[64,512], index: 1, kind: input, shape index: {}]
  %s2 = inlined_call_operand.hbm [shape: f32[128,512], index: 2, kind: input, shape index: {}]
  %s3 = inlined_call_operand.vmem [shape: f32[1,512], index: 3, kind: input, shape index: {}]
  %s4 = inlined_call_operand.hbm [shape: f32[128,512], index: 4, kind: input, shape index: {}]
  %s5 = inlined_call_operand.hbm [shape: f32[128,512], index: 5, kind: input, shape index: {}]
  %s6 = inlined_call_operand.vmem [shape: f32[1,512], index: 6, kind: input, shape index: {}]
  %s7 = inlined_call_operand.vmem [shape: f32[128,2], index: 7, kind: input, shape index: {}]
  %s8 = inlined_call_operand.vmem [shape: f32[1,2], index: 8, kind: input, shape index: {}]
  %s9 = inlined_call_operand.vmem [shape: f32[8,2], index: 9, kind: output, shape index: {}]
  %s10 = sld [smem:[#allocation0]]
  $region70: #{tpu_custom_call.1} parent=0
    _
  %s12 = ssub.s32 1, %s10
  %s13 = scalar_select 0, %s12, %s10
  $region1: #{tpu_custom_call.1} parent=0
    #allocation7 [shape = 'u8[131072]{0}', space=vmem, size = 0x20000, scoped, tag = 'input window, operand 1, single buffered']
    #allocation8 [shape = 's32[1]{0}', space=sflag, size = 0x4, scoped, tag = 'scoped memory for tpu_custom_call.1']
    #allocation9 [shape = 'u8[262144]{0}', space=vmem, size = 0x40000, scoped, tag = 'input window, operand 2, single buffered']
    #allocation10 [shape = 's32[1]{0}', space=sflag, size = 0x4, scoped, tag = 'scoped memory for tpu_custom_call.1']
    #allocation11 [shape = 'u8[262144]{0}', space=vmem, size = 0x40000, scoped, tag = 'input window, operand 4, single buffered']
    #allocation12 [shape = 'u8[262144]{0}', space=vmem, size = 0x40000, scoped, tag = 'input window, operand 5, single buffered']
    #allocation13 [shape = 's32[1]{0}', space=sflag, size = 0x4, scoped, tag = 'scoped memory for tpu_custom_call.1']
    %14 = vsyncpa [#allocation8], 0
    %15 = vsyncpa [#allocation10], 0
    %16 = vsyncpa [#allocation13], 0
    // Predicated region
    $region2: #{tpu_custom_call.1} parent=1 // pred_check
      _
    $region3: #{tpu_custom_call.1} parent=1 // pred_check_branch
      %18 = sbr.rel (0) target = $region5
    $region4: #{tpu_custom_call.1} parent=1 // pred_region
      _
    $region5: #{tpu_custom_call.1} parent=1 // pred_fallthru
      _
    // Predicated region
    $region6: #{tpu_custom_call.1} parent=1 // pred_check
      _
    $region7: #{tpu_custom_call.1} parent=1 // pred_check_branch
      %20 = sbr.rel (0) target = $region9
    $region8: #{tpu_custom_call.1} parent=1 // pred_region
      %22 = vsyncadd [#allocation8], 0
      %s23 = sshll.u32 %s1, 4
      %s24 = int_to_ptr.hbm [resolvable:$true] %s23
      %s25 = sshll.u32 [#allocation7], 4
      %s26 = int_to_ptr.vmem [resolvable:$true] %s25
      %31 = dma.hbm_to_vmem [thread:$0]  %s24, 4096, %s26, [#allocation8], 512, 512, 32
    $region9: #{tpu_custom_call.1} parent=1 // pred_fallthru
      _
    // Predicated region
    $region10: #{tpu_custom_call.1} parent=1 // pred_check
      _
    $region11: #{tpu_custom_call.1} parent=1 // pred_check_branch
      %33 = sbr.rel (0) target = $region13
    $region12: #{tpu_custom_call.1} parent=1 // pred_region
      %35 = vsyncadd [#allocation10], 0
      %s36 = sshll.u32 %s2, 4
      %s37 = int_to_ptr.hbm [resolvable:$true] %s36
      %s38 = sshll.u32 [#allocation9], 4
      %s39 = int_to_ptr.vmem [resolvable:$true] %s38
      %44 = dma.hbm_to_vmem [thread:$0]  %s37, 8192, %s39, [#allocation10], 512, 512, 32
    $region13: #{tpu_custom_call.1} parent=1 // pred_fallthru
      _
    // Predicated region
    $region14: #{tpu_custom_call.1} parent=1 // pred_check
      _
    $region15: #{tpu_custom_call.1} parent=1 // pred_check_branch
      %46 = sbr.rel (0) target = $region17
    $region16: #{tpu_custom_call.1} parent=1 // pred_region
      _
    $region17: #{tpu_custom_call.1} parent=1 // pred_fallthru
      _
    // Predicated region
    $region18: #{tpu_custom_call.1} parent=1 // pred_check
      _
    $region19: #{tpu_custom_call.1} parent=1 // pred_check_branch
      %48 = sbr.rel (0) target = $region21
    $region20: #{tpu_custom_call.1} parent=1 // pred_region
      %50 = vsyncadd [#allocation10], 0
      %s51 = sshll.u32 %s4, 4
      %s52 = int_to_ptr.hbm [resolvable:$true] %s51
      %s53 = sshll.u32 [#allocation11], 4
      %s54 = int_to_ptr.vmem [resolvable:$true] %s53
      %59 = dma.hbm_to_vmem [thread:$0]  %s52, 8192, %s54, [#allocation10], 512, 512, 32
    $region21: #{tpu_custom_call.1} parent=1 // pred_fallthru
      _
    // Predicated region
    $region22: #{tpu_custom_call.1} parent=1 // pred_check
      _
    $region23: #{tpu_custom_call.1} parent=1 // pred_check_branch
      %61 = sbr.rel (0) target = $region25
    $region24: #{tpu_custom_call.1} parent=1 // pred_region
      %63 = vsyncadd [#allocation13], 0
      %s64 = sshll.u32 %s5, 4
      %s65 = int_to_ptr.hbm [resolvable:$true] %s64
      %s66 = sshll.u32 [#allocation12], 4
      %s67 = int_to_ptr.vmem [resolvable:$true] %s66
      %72 = dma.hbm_to_vmem [thread:$0]  %s65, 8192, %s67, [#allocation13], 512, 512, 32
    $region25: #{tpu_custom_call.1} parent=1 // pred_fallthru
      _
    // Predicated region
    $region26: #{tpu_custom_call.1} parent=1 // pred_check
      _
    $region27: #{tpu_custom_call.1} parent=1 // pred_check_branch
      %74 = sbr.rel (0) target = $region29
    $region28: #{tpu_custom_call.1} parent=1 // pred_region
      _
    $region29: #{tpu_custom_call.1} parent=1 // pred_fallthru
      _
    // Predicated region
    $region30: #{tpu_custom_call.1} parent=1 // pred_check
      _
    $region31: #{tpu_custom_call.1} parent=1 // pred_check_branch
      %76 = sbr.rel (0) target = $region33
    $region32: #{tpu_custom_call.1} parent=1 // pred_region
      _
    $region33: #{tpu_custom_call.1} parent=1 // pred_fallthru
      _
    // Predicated region
    $region34: #{tpu_custom_call.1} parent=1 // pred_check
      _
    $region35: #{tpu_custom_call.1} parent=1 // pred_check_branch
      %78 = sbr.rel (0) target = $region37
    $region36: #{tpu_custom_call.1} parent=1 // pred_region
      _
    $region37: #{tpu_custom_call.1} parent=1 // pred_fallthru
      _
    // Predicated region
    $region38: #{tpu_custom_call.1} parent=1 // pred_check
      _
    $region39: #{tpu_custom_call.1} parent=1 // pred_check_branch
      %80 = sbr.rel (0) target = $region41
    $region40: #{tpu_custom_call.1} parent=1 // pred_region
      %82 = dma.done [#allocation8], 4096
    $region41: #{tpu_custom_call.1} parent=1 // pred_fallthru
      _
    // Predicated region
    $region42: #{tpu_custom_call.1} parent=1 // pred_check
      _
    $region43: #{tpu_custom_call.1} parent=1 // pred_check_branch
      %84 = sbr.rel (0) target = $region45
    $region44: #{tpu_custom_call.1} parent=1 // pred_region
      %86 = dma.done [#allocation10], 8192
    $region45: #{tpu_custom_call.1} parent=1 // pred_fallthru
      _
    // Predicated region
    $region46: #{tpu_custom_call.1} parent=1 // pred_check
      _
    $region47: #{tpu_custom_call.1} parent=1 // pred_check_branch
      %88 = sbr.rel (0) target = $region49
    $region48: #{tpu_custom_call.1} parent=1 // pred_region
      %90 = dma.done [#allocation10], 8192
    $region49: #{tpu_custom_call.1} parent=1 // pred_fallthru
      _
    // Predicated region
    $region50: #{tpu_custom_call.1} parent=1 // pred_check
      _
    $region51: #{tpu_custom_call.1} parent=1 // pred_check_branch
      %92 = sbr.rel (0) target = $region53
    $region52: #{tpu_custom_call.1} parent=1 // pred_region
      %94 = dma.done [#allocation13], 8192
    $region53: #{tpu_custom_call.1} parent=1 // pred_fallthru
      _
    %p95 = scmp.eq.s32.totalorder 0, 0
    // Predicated region
    $region54: #{tpu_custom_call.1} parent=1 // pred_check
      %p96 = pneg %p95
    $region55: #{tpu_custom_call.1} parent=1 // pred_check_branch
      %98 = sbr.rel (%p96) target = $region57
    $region56: #{tpu_custom_call.1} parent=1 // pred_region
      %99 = vst [vmem:[#allocation3] sm:$0xff] 0.0
      %100 = vst [vmem:[#allocation4] sm:$0xff] 0.0
      %101 = vst [vmem:[#allocation5] sm:$0xff] 0.0
      %102 = vst [vmem:[#allocation6] sm:$0xff] 0.0
    $region57: #{tpu_custom_call.1} parent=1 // pred_fallthru
      _
    %v103 = vld [vmem:[%s0] sm:$0xff]
    %v104 = vld [vmem:[%s0 + $0x8] sm:$0xff]
    %v105 = vld [vmem:[%s0 + $0x10] sm:$0xff]
    %v106 = vld [vmem:[%s0 + $0x18] sm:$0xff]
    %v107 = vld [vmem:[%s0 + $0x20] sm:$0xff]
    %v108 = vld [vmem:[%s0 + $0x28] sm:$0xff]
    %v109 = vld [vmem:[%s0 + $0x30] sm:$0xff]
    %v110 = vld [vmem:[%s0 + $0x38] sm:$0xff]
    %v111 = vld [vmem:[#allocation7] sm:$0xff]
    %v112 = vld [vmem:[#allocation7 + $0x8] sm:$0xff]
    %v113 = vld [vmem:[#allocation7 + $0x10] sm:$0xff]
    %v114 = vld [vmem:[#allocation7 + $0x18] sm:$0xff]
    %v115 = vld [vmem:[#allocation7 + $0x20] sm:$0xff]
    %v116 = vld [vmem:[#allocation7 + $0x28] sm:$0xff]
    %v117 = vld [vmem:[#allocation7 + $0x30] sm:$0xff]
    %v118 = vld [vmem:[#allocation7 + $0x38] sm:$0xff]
    %v119 = vld [vmem:[#allocation7 + $0x40] sm:$0xff]
    %v120 = vld [vmem:[#allocation7 + $0x48] sm:$0xff]
    %v121 = vld [vmem:[#allocation7 + $0x50] sm:$0xff]
    %v122 = vld [vmem:[#allocation7 + $0x58] sm:$0xff]
    %v123 = vld [vmem:[#allocation7 + $0x60] sm:$0xff]
    %v124 = vld [vmem:[#allocation7 + $0x68] sm:$0xff]
    %v125 = vld [vmem:[#allocation7 + $0x70] sm:$0xff]
    %v126 = vld [vmem:[#allocation7 + $0x78] sm:$0xff]
    %v127 = vld [vmem:[#allocation7 + $0x80] sm:$0xff]
    %v128 = vld [vmem:[#allocation7 + $0x88] sm:$0xff]
    %v129 = vld [vmem:[#allocation7 + $0x90] sm:$0xff]
    %v130 = vld [vmem:[#allocation7 + $0x98] sm:$0xff]
    %v131 = vld [vmem:[#allocation7 + $0xa0] sm:$0xff]
    %v132 = vld [vmem:[#allocation7 + $0xa8] sm:$0xff]
    %v133 = vld [vmem:[#allocation7 + $0xb0] sm:$0xff]
    %v134 = vld [vmem:[#allocation7 + $0xb8] sm:$0xff]
    %v135 = vld [vmem:[#allocation7 + $0xc0] sm:$0xff]
    %v136 = vld [vmem:[#allocation7 + $0xc8] sm:$0xff]
    %v137 = vld [vmem:[#allocation7 + $0xd0] sm:$0xff]
    %v138 = vld [vmem:[#allocation7 + $0xd8] sm:$0xff]
    %v139 = vld [vmem:[#allocation7 + $0xe0] sm:$0xff]
    %v140 = vld [vmem:[#allocation7 + $0xe8] sm:$0xff]
    %v141 = vld [vmem:[#allocation7 + $0xf0] sm:$0xff]
    %v142 = vld [vmem:[#allocation7 + $0xf8] sm:$0xff]
    %v143 = vld [vmem:[%s3] sm:$0xf]
    %v145 = vperm.slane %v143, 0
    %v146 = vperm.slane %v143, 1
    %v147 = vperm.slane %v143, 2
    %v148 = vperm.slane %v143, 3
    %vm153 = vcmask 523264
    %v155 = vsel %vm153, %v103, 0
    %v158 = vsel %vm153, %v104, 0
    %v161 = vsel %vm153, %v105, 0
    %v164 = vsel %vm153, %v106, 0
    %v167 = vsel %vm153, %v107, 0
    %v170 = vsel %vm153, %v108, 0
    %v173 = vsel %vm153, %v109, 0
    %v176 = vsel %vm153, %v110, 0
    %178 = vmatpush.msra.mxu0 0.0
    %179 = vmatpush.msra.mxu0 0.0
    %180 = vmatpush.msra.mxu0 0.0
    %181 = vmatpush.msra.mxu0 0.0
    %182 = vmatpush.msra.mxu0 0.0
    %183 = vmatpush.msra.mxu0 0.0
    %184 = vmatpush.msra.mxu0 0.0
    %185 = vmatpush.msra.mxu0 0.0
    %186 = vmatpush.msra.mxu0 %v139
    %187 = vmatpush.msra.mxu0 %v135
    %188 = vmatpush.msra.mxu0 %v131
    %189 = vmatpush.msra.mxu0 %v127
    %190 = vmatpush.msra.mxu0 %v123
    %191 = vmatpush.msra.mxu0 %v119
    %192 = vmatpush.msra.mxu0 %v115
    %193 = vmatpush.msra.mxu0 %v111
    %194 = vmatmul.f32.gmra.mxu0 %v155
    %v195 = vpop.f32.mrf.mxu0
    %v196 = vadd.f32 %v145, %v195
    %197 = vmatmul.f32.gmra.mxu0 %v158
    %v198 = vpop.f32.mrf.mxu0
    %v199 = vadd.f32 %v145, %v198
    %200 = vmatmul.f32.gmra.mxu0 %v161
    %v201 = vpop.f32.mrf.mxu0
    %v202 = vadd.f32 %v145, %v201
    %203 = vmatmul.f32.gmra.mxu0 %v164
    %v204 = vpop.f32.mrf.mxu0
    %v205 = vadd.f32 %v145, %v204
    %206 = vmatmul.f32.gmra.mxu0 %v167
    %v207 = vpop.f32.mrf.mxu0
    %v208 = vadd.f32 %v145, %v207
    %209 = vmatmul.f32.gmra.mxu0 %v170
    %v210 = vpop.f32.mrf.mxu0
    %v211 = vadd.f32 %v145, %v210
    %212 = vmatmul.f32.gmra.mxu0 %v173
    %v213 = vpop.f32.mrf.mxu0
    %v214 = vadd.f32 %v145, %v213
    %215 = vmatmul.f32.gmra.mxu0 %v176
    %v216 = vpop.f32.mrf.mxu0
    %v217 = vadd.f32 %v145, %v216
    %218 = vdwg.mxu0
    %219 = vmatpush.msra.mxu0 0.0
    %220 = vmatpush.msra.mxu0 0.0
    %221 = vmatpush.msra.mxu0 0.0
    %222 = vmatpush.msra.mxu0 0.0
    %223 = vmatpush.msra.mxu0 0.0
    %224 = vmatpush.msra.mxu0 0.0
    %225 = vmatpush.msra.mxu0 0.0
    %226 = vmatpush.msra.mxu0 0.0
    %227 = vmatpush.msra.mxu0 %v140
    %228 = vmatpush.msra.mxu0 %v136
    %229 = vmatpush.msra.mxu0 %v132
    %230 = vmatpush.msra.mxu0 %v128
    %231 = vmatpush.msra.mxu0 %v124
    %232 = vmatpush.msra.mxu0 %v120
    %233 = vmatpush.msra.mxu0 %v116
    %234 = vmatpush.msra.mxu0 %v112
    %235 = vmatmul.f32.gmra.mxu0 %v155
    %v236 = vpop.f32.mrf.mxu0
    %v237 = vadd.f32 %v146, %v236
    %238 = vmatmul.f32.gmra.mxu0 %v158
    %v239 = vpop.f32.mrf.mxu0
    %v240 = vadd.f32 %v146, %v239
    %241 = vmatmul.f32.gmra.mxu0 %v161
    %v242 = vpop.f32.mrf.mxu0
    %v243 = vadd.f32 %v146, %v242
    %244 = vmatmul.f32.gmra.mxu0 %v164
    %v245 = vpop.f32.mrf.mxu0
    %v246 = vadd.f32 %v146, %v245
    %247 = vmatmul.f32.gmra.mxu0 %v167
    %v248 = vpop.f32.mrf.mxu0
    %v249 = vadd.f32 %v146, %v248
    %250 = vmatmul.f32.gmra.mxu0 %v170
    %v251 = vpop.f32.mrf.mxu0
    %v252 = vadd.f32 %v146, %v251
    %253 = vmatmul.f32.gmra.mxu0 %v173
    %v254 = vpop.f32.mrf.mxu0
    %v255 = vadd.f32 %v146, %v254
    %256 = vmatmul.f32.gmra.mxu0 %v176
    %v257 = vpop.f32.mrf.mxu0
    %v258 = vadd.f32 %v146, %v257
    %259 = vdwg.mxu0
    %260 = vmatpush.msra.mxu0 0.0
    %261 = vmatpush.msra.mxu0 0.0
    %262 = vmatpush.msra.mxu0 0.0
    %263 = vmatpush.msra.mxu0 0.0
    %264 = vmatpush.msra.mxu0 0.0
    %265 = vmatpush.msra.mxu0 0.0
    %266 = vmatpush.msra.mxu0 0.0
    %267 = vmatpush.msra.mxu0 0.0
    %268 = vmatpush.msra.mxu0 %v141
    %269 = vmatpush.msra.mxu0 %v137
    %270 = vmatpush.msra.mxu0 %v133
    %271 = vmatpush.msra.mxu0 %v129
    %272 = vmatpush.msra.mxu0 %v125
    %273 = vmatpush.msra.mxu0 %v121
    %274 = vmatpush.msra.mxu0 %v117
    %275 = vmatpush.msra.mxu0 %v113
    %276 = vmatmul.f32.gmra.mxu0 %v155
    %v277 = vpop.f32.mrf.mxu0
    %v278 = vadd.f32 %v147, %v277
    %279 = vmatmul.f32.gmra.mxu0 %v158
    %v280 = vpop.f32.mrf.mxu0
    %v281 = vadd.f32 %v147, %v280
    %282 = vmatmul.f32.gmra.mxu0 %v161
    %v283 = vpop.f32.mrf.mxu0
    %v284 = vadd.f32 %v147, %v283
    %285 = vmatmul.f32.gmra.mxu0 %v164
    %v286 = vpop.f32.mrf.mxu0
    %v287 = vadd.f32 %v147, %v286
    %288 = vmatmul.f32.gmra.mxu0 %v167
    %v289 = vpop.f32.mrf.mxu0
    %v290 = vadd.f32 %v147, %v289
    %291 = vmatmul.f32.gmra.mxu0 %v170
    %v292 = vpop.f32.mrf.mxu0
    %v293 = vadd.f32 %v147, %v292
    %294 = vmatmul.f32.gmra.mxu0 %v173
    %v295 = vpop.f32.mrf.mxu0
    %v296 = vadd.f32 %v147, %v295
    %297 = vmatmul.f32.gmra.mxu0 %v176
    %v298 = vpop.f32.mrf.mxu0
    %v299 = vadd.f32 %v147, %v298
    %300 = vdwg.mxu0
    %301 = vmatpush.msra.mxu0 0.0
    %302 = vmatpush.msra.mxu0 0.0
    %303 = vmatpush.msra.mxu0 0.0
    %304 = vmatpush.msra.mxu0 0.0
    %305 = vmatpush.msra.mxu0 0.0
    %306 = vmatpush.msra.mxu0 0.0
    %307 = vmatpush.msra.mxu0 0.0
    %308 = vmatpush.msra.mxu0 0.0
    %309 = vmatpush.msra.mxu0 %v142
    %310 = vmatpush.msra.mxu0 %v138
    %311 = vmatpush.msra.mxu0 %v134
    %312 = vmatpush.msra.mxu0 %v130
    %313 = vmatpush.msra.mxu0 %v126
    %314 = vmatpush.msra.mxu0 %v122
    %315 = vmatpush.msra.mxu0 %v118
    %316 = vmatpush.msra.mxu0 %v114
    %317 = vmatmul.f32.gmra.mxu0 %v155
    %v318 = vpop.f32.mrf.mxu0
    %v319 = vadd.f32 %v148, %v318
    %320 = vmatmul.f32.gmra.mxu0 %v158
    %v321 = vpop.f32.mrf.mxu0
    %v322 = vadd.f32 %v148, %v321
    %323 = vmatmul.f32.gmra.mxu0 %v161
    %v324 = vpop.f32.mrf.mxu0
    %v325 = vadd.f32 %v148, %v324
    %326 = vmatmul.f32.gmra.mxu0 %v164
    %v327 = vpop.f32.mrf.mxu0
    %v328 = vadd.f32 %v148, %v327
    %329 = vmatmul.f32.gmra.mxu0 %v167
    %v330 = vpop.f32.mrf.mxu0
    %v331 = vadd.f32 %v148, %v330
    %332 = vmatmul.f32.gmra.mxu0 %v170
    %v333 = vpop.f32.mrf.mxu0
    %v334 = vadd.f32 %v148, %v333
    %335 = vmatmul.f32.gmra.mxu0 %v173
    %v336 = vpop.f32.mrf.mxu0
    %v337 = vadd.f32 %v148, %v336
    %338 = vmatmul.f32.gmra.mxu0 %v176
    %v339 = vpop.f32.mrf.mxu0
    %v340 = vadd.f32 %v148, %v339
    %341 = vdwg.mxu0
    %342 = vst [vmem:[#allocation2] sm:$0xff] %v196
    %343 = vst [vmem:[#allocation2 + $0x8] sm:$0xff] %v237
    %344 = vst [vmem:[#allocation2 + $0x10] sm:$0xff] %v278
    %345 = vst [vmem:[#allocation2 + $0x18] sm:$0xff] %v319
    %346 = vst [vmem:[#allocation2 + $0x20] sm:$0xff] %v199
    %347 = vst [vmem:[#allocation2 + $0x28] sm:$0xff] %v240
    %348 = vst [vmem:[#allocation2 + $0x30] sm:$0xff] %v281
    %349 = vst [vmem:[#allocation2 + $0x38] sm:$0xff] %v322
    %350 = vst [vmem:[#allocation2 + $0x40] sm:$0xff] %v202
    %351 = vst [vmem:[#allocation2 + $0x48] sm:$0xff] %v243
    %352 = vst [vmem:[#allocation2 + $0x50] sm:$0xff] %v284
    %353 = vst [vmem:[#allocation2 + $0x58] sm:$0xff] %v325
    %354 = vst [vmem:[#allocation2 + $0x60] sm:$0xff] %v205
    %355 = vst [vmem:[#allocation2 + $0x68] sm:$0xff] %v246
    %356 = vst [vmem:[#allocation2 + $0x70] sm:$0xff] %v287
    %357 = vst [vmem:[#allocation2 + $0x78] sm:$0xff] %v328
    %358 = vst [vmem:[#allocation2 + $0x80] sm:$0xff] %v208
    %359 = vst [vmem:[#allocation2 + $0x88] sm:$0xff] %v249
    %360 = vst [vmem:[#allocation2 + $0x90] sm:$0xff] %v290
    %361 = vst [vmem:[#allocation2 + $0x98] sm:$0xff] %v331
    %362 = vst [vmem:[#allocation2 + $0xa0] sm:$0xff] %v211
    %363 = vst [vmem:[#allocation2 + $0xa8] sm:$0xff] %v252
    %364 = vst [vmem:[#allocation2 + $0xb0] sm:$0xff] %v293
    %365 = vst [vmem:[#allocation2 + $0xb8] sm:$0xff] %v334
    %366 = vst [vmem:[#allocation2 + $0xc0] sm:$0xff] %v214
    %367 = vst [vmem:[#allocation2 + $0xc8] sm:$0xff] %v255
    %368 = vst [vmem:[#allocation2 + $0xd0] sm:$0xff] %v296
    %369 = vst [vmem:[#allocation2 + $0xd8] sm:$0xff] %v337
    %370 = vst [vmem:[#allocation2 + $0xe0] sm:$0xff] %v217
    %371 = vst [vmem:[#allocation2 + $0xe8] sm:$0xff] %v258
    %372 = vst [vmem:[#allocation2 + $0xf0] sm:$0xff] %v299
    %373 = vst [vmem:[#allocation2 + $0xf8] sm:$0xff] %v340
    %v374 = vld [vmem:[#allocation3] sm:$0xff]
    %v375 = vld [vmem:[#allocation4] sm:$0xff]
    %v376 = vld [vmem:[#allocation5] sm:$0xff]
    %v377 = vld [vmem:[#allocation6] sm:$0xff]
    %v378 = vld [vmem:[#allocation12] sm:$0xff]
    %v379 = vld [vmem:[#allocation12 + $0x8] sm:$0xff]
    %v380 = vld [vmem:[#allocation12 + $0x10] sm:$0xff]
    %v381 = vld [vmem:[#allocation12 + $0x18] sm:$0xff]
    %v382 = vld [vmem:[#allocation12 + $0x20] sm:$0xff]
    %v383 = vld [vmem:[#allocation12 + $0x28] sm:$0xff]
    %v384 = vld [vmem:[#allocation12 + $0x30] sm:$0xff]
    %v385 = vld [vmem:[#allocation12 + $0x38] sm:$0xff]
    %v386 = vld [vmem:[#allocation12 + $0x40] sm:$0xff]
    %v387 = vld [vmem:[#allocation12 + $0x48] sm:$0xff]
    %v388 = vld [vmem:[#allocation12 + $0x50] sm:$0xff]
    %v389 = vld [vmem:[#allocation12 + $0x58] sm:$0xff]
    %v390 = vld [vmem:[#allocation12 + $0x60] sm:$0xff]
    %v391 = vld [vmem:[#allocation12 + $0x68] sm:$0xff]
    %v392 = vld [vmem:[#allocation12 + $0x70] sm:$0xff]
    %v393 = vld [vmem:[#allocation12 + $0x78] sm:$0xff]
    %v394 = vld [vmem:[#allocation12 + $0x80] sm:$0xff]
    %v395 = vld [vmem:[#allocation12 + $0x88] sm:$0xff]
    %v396 = vld [vmem:[#allocation12 + $0x90] sm:$0xff]
    %v397 = vld [vmem:[#allocation12 + $0x98] sm:$0xff]
    %v398 = vld [vmem:[#allocation12 + $0xa0] sm:$0xff]
    %v399 = vld [vmem:[#allocation12 + $0xa8] sm:$0xff]
    %v400 = vld [vmem:[#allocation12 + $0xb0] sm:$0xff]
    %v401 = vld [vmem:[#allocation12 + $0xb8] sm:$0xff]
    %v402 = vld [vmem:[#allocation12 + $0xc0] sm:$0xff]
    %v403 = vld [vmem:[#allocation12 + $0xc8] sm:$0xff]
    %v404 = vld [vmem:[#allocation12 + $0xd0] sm:$0xff]
    %v405 = vld [vmem:[#allocation12 + $0xd8] sm:$0xff]
    %v406 = vld [vmem:[#allocation12 + $0xe0] sm:$0xff]
    %v407 = vld [vmem:[#allocation12 + $0xe8] sm:$0xff]
    %v408 = vld [vmem:[#allocation12 + $0xf0] sm:$0xff]
    %v409 = vld [vmem:[#allocation12 + $0xf8] sm:$0xff]
    %v410 = vld [vmem:[#allocation12 + $0x100] sm:$0xff]
    %v411 = vld [vmem:[#allocation12 + $0x108] sm:$0xff]
    %v412 = vld [vmem:[#allocation12 + $0x110] sm:$0xff]
    %v413 = vld [vmem:[#allocation12 + $0x118] sm:$0xff]
    %v414 = vld [vmem:[#allocation12 + $0x120] sm:$0xff]
    %v415 = vld [vmem:[#allocation12 + $0x128] sm:$0xff]
    %v416 = vld [vmem:[#allocation12 + $0x130] sm:$0xff]
    %v417 = vld [vmem:[#allocation12 + $0x138] sm:$0xff]
    %v418 = vld [vmem:[#allocation12 + $0x140] sm:$0xff]
    %v419 = vld [vmem:[#allocation12 + $0x148] sm:$0xff]
    %v420 = vld [vmem:[#allocation12 + $0x150] sm:$0xff]
    %v421 = vld [vmem:[#allocation12 + $0x158] sm:$0xff]
    %v422 = vld [vmem:[#allocation12 + $0x160] sm:$0xff]
    %v423 = vld [vmem:[#allocation12 + $0x168] sm:$0xff]
    %v424 = vld [vmem:[#allocation12 + $0x170] sm:$0xff]
    %v425 = vld [vmem:[#allocation12 + $0x178] sm:$0xff]
    %v426 = vld [vmem:[#allocation12 + $0x180] sm:$0xff]
    %v427 = vld [vmem:[#allocation12 + $0x188] sm:$0xff]
    %v428 = vld [vmem:[#allocation12 + $0x190] sm:$0xff]
    %v429 = vld [vmem:[#allocation12 + $0x198] sm:$0xff]
    %v430 = vld [vmem:[#allocation12 + $0x1a0] sm:$0xff]
    %v431 = vld [vmem:[#allocation12 + $0x1a8] sm:$0xff]
    %v432 = vld [vmem:[#allocation12 + $0x1b0] sm:$0xff]
    %v433 = vld [vmem:[#allocation12 + $0x1b8] sm:$0xff]
    %v434 = vld [vmem:[#allocation12 + $0x1c0] sm:$0xff]
    %v435 = vld [vmem:[#allocation12 + $0x1c8] sm:$0xff]
    %v436 = vld [vmem:[#allocation12 + $0x1d0] sm:$0xff]
    %v437 = vld [vmem:[#allocation12 + $0x1d8] sm:$0xff]
    %v438 = vld [vmem:[#allocation12 + $0x1e0] sm:$0xff]
    %v439 = vld [vmem:[#allocation12 + $0x1e8] sm:$0xff]
    %v440 = vld [vmem:[#allocation12 + $0x1f0] sm:$0xff]
    %v441 = vld [vmem:[#allocation12 + $0x1f8] sm:$0xff]
    %v442 = vld [vmem:[%s6] sm:$0xf]
    %v444 = vperm.slane %v442, 0
    %v445 = vperm.slane %v442, 1
    %v446 = vperm.slane %v442, 2
    %v447 = vperm.slane %v442, 3
    %452 = vmatpush.msra.mxu0 %v438
    %453 = vmatpush.msra.mxu0 %v434
    %454 = vmatpush.msra.mxu0 %v430
    %455 = vmatpush.msra.mxu0 %v426
    %456 = vmatpush.msra.mxu0 %v422
    %457 = vmatpush.msra.mxu0 %v418
    %458 = vmatpush.msra.mxu0 %v414
    %459 = vmatpush.msra.mxu0 %v410
    %460 = vmatpush.msra.mxu0 %v406
    %461 = vmatpush.msra.mxu0 %v402
    %462 = vmatpush.msra.mxu0 %v398
    %463 = vmatpush.msra.mxu0 %v394
    %464 = vmatpush.msra.mxu0 %v390
    %465 = vmatpush.msra.mxu0 %v386
    %466 = vmatpush.msra.mxu0 %v382
    %467 = vmatpush.msra.mxu0 %v378
    %468 = vmatmul.f32.gmra.mxu0 %v376
    %v469 = vpop.f32.mrf.mxu0
    %v470 = vadd.f32 %v444, %v469
    %471 = vdwg.mxu0
    %472 = vmatpush.msra.mxu0 %v439
    %473 = vmatpush.msra.mxu0 %v435
    %474 = vmatpush.msra.mxu0 %v431
    %475 = vmatpush.msra.mxu0 %v427
    %476 = vmatpush.msra.mxu0 %v423
    %477 = vmatpush.msra.mxu0 %v419
    %478 = vmatpush.msra.mxu0 %v415
    %479 = vmatpush.msra.mxu0 %v411
    %480 = vmatpush.msra.mxu0 %v407
    %481 = vmatpush.msra.mxu0 %v403
    %482 = vmatpush.msra.mxu0 %v399
    %483 = vmatpush.msra.mxu0 %v395
    %484 = vmatpush.msra.mxu0 %v391
    %485 = vmatpush.msra.mxu0 %v387
    %486 = vmatpush.msra.mxu0 %v383
    %487 = vmatpush.msra.mxu0 %v379
    %488 = vmatmul.f32.gmra.mxu0 %v376
    %v489 = vpop.f32.mrf.mxu0
    %v490 = vadd.f32 %v445, %v489
    %491 = vdwg.mxu0
    %492 = vmatpush.msra.mxu0 %v440
    %493 = vmatpush.msra.mxu0 %v436
    %494 = vmatpush.msra.mxu0 %v432
    %495 = vmatpush.msra.mxu0 %v428
    %496 = vmatpush.msra.mxu0 %v424
    %497 = vmatpush.msra.mxu0 %v420
    %498 = vmatpush.msra.mxu0 %v416
    %499 = vmatpush.msra.mxu0 %v412
    %500 = vmatpush.msra.mxu0 %v408
    %501 = vmatpush.msra.mxu0 %v404
    %502 = vmatpush.msra.mxu0 %v400
    %503 = vmatpush.msra.mxu0 %v396
    %504 = vmatpush.msra.mxu0 %v392
    %505 = vmatpush.msra.mxu0 %v388
    %506 = vmatpush.msra.mxu0 %v384
    %507 = vmatpush.msra.mxu0 %v380
    %508 = vmatmul.f32.gmra.mxu0 %v376
    %v509 = vpop.f32.mrf.mxu0
    %v510 = vadd.f32 %v446, %v509
    %511 = vdwg.mxu0
    %512 = vmatpush.msra.mxu0 %v441
    %513 = vmatpush.msra.mxu0 %v437
    %514 = vmatpush.msra.mxu0 %v433
    %515 = vmatpush.msra.mxu0 %v429
    %516 = vmatpush.msra.mxu0 %v425
    %517 = vmatpush.msra.mxu0 %v421
    %518 = vmatpush.msra.mxu0 %v417
    %519 = vmatpush.msra.mxu0 %v413
    %520 = vmatpush.msra.mxu0 %v409
    %521 = vmatpush.msra.mxu0 %v405
    %522 = vmatpush.msra.mxu0 %v401
    %523 = vmatpush.msra.mxu0 %v397
    %524 = vmatpush.msra.mxu0 %v393
    %525 = vmatpush.msra.mxu0 %v389
    %526 = vmatpush.msra.mxu0 %v385
    %527 = vmatpush.msra.mxu0 %v381
    %528 = vmatmul.f32.gmra.mxu0 %v376
    %v529 = vpop.f32.mrf.mxu0
    %v530 = vadd.f32 %v447, %v529
    %531 = vdwg.mxu0
    %s532 = smul.u32 0, 4
    %s533 = smul.addr %s532, 8
    %s534 = scalar_lea.vmem [#allocation2], %s533
    %v535 = vld [vmem:[%s534] sm:$0xff]
    %v536 = vld [vmem:[%s534 + $0x8] sm:$0xff]
    %v537 = vld [vmem:[%s534 + $0x10] sm:$0xff]
    %v538 = vld [vmem:[%s534 + $0x18] sm:$0xff]
    %v539 = vld [vmem:[#allocation9] sm:$0xff]
    %v540 = vld [vmem:[#allocation9 + $0x8] sm:$0xff]
    %v541 = vld [vmem:[#allocation9 + $0x10] sm:$0xff]
    %v542 = vld [vmem:[#allocation9 + $0x18] sm:$0xff]
    %v543 = vld [vmem:[#allocation9 + $0x20] sm:$0xff]
    %v544 = vld [vmem:[#allocation9 + $0x28] sm:$0xff]
    %v545 = vld [vmem:[#allocation9 + $0x30] sm:$0xff]
    %v546 = vld [vmem:[#allocation9 + $0x38] sm:$0xff]
    %v547 = vld [vmem:[#allocation9 + $0x40] sm:$0xff]
    %v548 = vld [vmem:[#allocation9 + $0x48] sm:$0xff]
    %v549 = vld [vmem:[#allocation9 + $0x50] sm:$0xff]
    %v550 = vld [vmem:[#allocation9 + $0x58] sm:$0xff]
    %v551 = vld [vmem:[#allocation9 + $0x60] sm:$0xff]
    %v552 = vld [vmem:[#allocation9 + $0x68] sm:$0xff]
    %v553 = vld [vmem:[#allocation9 + $0x70] sm:$0xff]
    %v554 = vld [vmem:[#allocation9 + $0x78] sm:$0xff]
    %v555 = vld [vmem:[#allocation9 + $0x80] sm:$0xff]
    %v556 = vld [vmem:[#allocation9 + $0x88] sm:$0xff]
    %v557 = vld [vmem:[#allocation9 + $0x90] sm:$0xff]
    %v558 = vld [vmem:[#allocation9 + $0x98] sm:$0xff]
    %v559 = vld [vmem:[#allocation9 + $0xa0] sm:$0xff]
    %v560 = vld [vmem:[#allocation9 + $0xa8] sm:$0xff]
    %v561 = vld [vmem:[#allocation9 + $0xb0] sm:$0xff]
    %v562 = vld [vmem:[#allocation9 + $0xb8] sm:$0xff]
    %v563 = vld [vmem:[#allocation9 + $0xc0] sm:$0xff]
    %v564 = vld [vmem:[#allocation9 + $0xc8] sm:$0xff]
    %v565 = vld [vmem:[#allocation9 + $0xd0] sm:$0xff]
    %v566 = vld [vmem:[#allocation9 + $0xd8] sm:$0xff]
    %v567 = vld [vmem:[#allocation9 + $0xe0] sm:$0xff]
    %v568 = vld [vmem:[#allocation9 + $0xe8] sm:$0xff]
    %v569 = vld [vmem:[#allocation9 + $0xf0] sm:$0xff]
    %v570 = vld [vmem:[#allocation9 + $0xf8] sm:$0xff]
    %v571 = vld [vmem:[#allocation9 + $0x100] sm:$0xff]
    %v572 = vld [vmem:[#allocation9 + $0x108] sm:$0xff]
    %v573 = vld [vmem:[#allocation9 + $0x110] sm:$0xff]
    %v574 = vld [vmem:[#allocation9 + $0x118] sm:$0xff]
    %v575 = vld [vmem:[#allocation9 + $0x120] sm:$0xff]
    %v576 = vld [vmem:[#allocation9 + $0x128] sm:$0xff]
    %v577 = vld [vmem:[#allocation9 + $0x130] sm:$0xff]
    %v578 = vld [vmem:[#allocation9 + $0x138] sm:$0xff]
    %v579 = vld [vmem:[#allocation9 + $0x140] sm:$0xff]
    %v580 = vld [vmem:[#allocation9 + $0x148] sm:$0xff]
    %v581 = vld [vmem:[#allocation9 + $0x150] sm:$0xff]
    %v582 = vld [vmem:[#allocation9 + $0x158] sm:$0xff]
    %v583 = vld [vmem:[#allocation9 + $0x160] sm:$0xff]
    %v584 = vld [vmem:[#allocation9 + $0x168] sm:$0xff]
    %v585 = vld [vmem:[#allocation9 + $0x170] sm:$0xff]
    %v586 = vld [vmem:[#allocation9 + $0x178] sm:$0xff]
    %v587 = vld [vmem:[#allocation9 + $0x180] sm:$0xff]
    %v588 = vld [vmem:[#allocation9 + $0x188] sm:$0xff]
    %v589 = vld [vmem:[#allocation9 + $0x190] sm:$0xff]
    %v590 = vld [vmem:[#allocation9 + $0x198] sm:$0xff]
    %v591 = vld [vmem:[#allocation9 + $0x1a0] sm:$0xff]
    %v592 = vld [vmem:[#allocation9 + $0x1a8] sm:$0xff]
    %v593 = vld [vmem:[#allocation9 + $0x1b0] sm:$0xff]
    %v594 = vld [vmem:[#allocation9 + $0x1b8] sm:$0xff]
    %v595 = vld [vmem:[#allocation9 + $0x1c0] sm:$0xff]
    %v596 = vld [vmem:[#allocation9 + $0x1c8] sm:$0xff]
    %v597 = vld [vmem:[#allocation9 + $0x1d0] sm:$0xff]
    %v598 = vld [vmem:[#allocation9 + $0x1d8] sm:$0xff]
    %v599 = vld [vmem:[#allocation9 + $0x1e0] sm:$0xff]
    %v600 = vld [vmem:[#allocation9 + $0x1e8] sm:$0xff]
    %v601 = vld [vmem:[#allocation9 + $0x1f0] sm:$0xff]
    %v602 = vld [vmem:[#allocation9 + $0x1f8] sm:$0xff]
    %603 = vmatpush.msra.mxu0 %v599
    %604 = vmatpush.msra.mxu0 %v595
    %605 = vmatpush.msra.mxu0 %v591
    %606 = vmatpush.msra.mxu0 %v587
    %607 = vmatpush.msra.mxu0 %v583
    %608 = vmatpush.msra.mxu0 %v579
    %609 = vmatpush.msra.mxu0 %v575
    %610 = vmatpush.msra.mxu0 %v571
    %611 = vmatpush.msra.mxu0 %v567
    %612 = vmatpush.msra.mxu0 %v563
    %613 = vmatpush.msra.mxu0 %v559
    %614 = vmatpush.msra.mxu0 %v555
    %615 = vmatpush.msra.mxu0 %v551
    %616 = vmatpush.msra.mxu0 %v547
    %617 = vmatpush.msra.mxu0 %v543
    %618 = vmatpush.msra.mxu0 %v539
    %619 = vmatmul.f32.gmra.mxu0 %v374
    %v620 = vpop.f32.mrf.mxu0
    %v621 = vadd.f32 0.0, %v620
    %622 = vdwg.mxu0
    %623 = vmatpush.msra.mxu0 %v600
    %624 = vmatpush.msra.mxu0 %v596
    %625 = vmatpush.msra.mxu0 %v592
    %626 = vmatpush.msra.mxu0 %v588
    %627 = vmatpush.msra.mxu0 %v584
    %628 = vmatpush.msra.mxu0 %v580
    %629 = vmatpush.msra.mxu0 %v576
    %630 = vmatpush.msra.mxu0 %v572
    %631 = vmatpush.msra.mxu0 %v568
    %632 = vmatpush.msra.mxu0 %v564
    %633 = vmatpush.msra.mxu0 %v560
    %634 = vmatpush.msra.mxu0 %v556
    %635 = vmatpush.msra.mxu0 %v552
    %636 = vmatpush.msra.mxu0 %v548
    %637 = vmatpush.msra.mxu0 %v544
    %638 = vmatpush.msra.mxu0 %v540
    %639 = vmatmul.f32.gmra.mxu0 %v374
    %v640 = vpop.f32.mrf.mxu0
    %v641 = vadd.f32 0.0, %v640
    %642 = vdwg.mxu0
    %643 = vmatpush.msra.mxu0 %v601
    %644 = vmatpush.msra.mxu0 %v597
    %645 = vmatpush.msra.mxu0 %v593
    %646 = vmatpush.msra.mxu0 %v589
    %647 = vmatpush.msra.mxu0 %v585
    %648 = vmatpush.msra.mxu0 %v581
    %649 = vmatpush.msra.mxu0 %v577
    %650 = vmatpush.msra.mxu0 %v573
    %651 = vmatpush.msra.mxu0 %v569
    %652 = vmatpush.msra.mxu0 %v565
    %653 = vmatpush.msra.mxu0 %v561
    %654 = vmatpush.msra.mxu0 %v557
    %655 = vmatpush.msra.mxu0 %v553
    %656 = vmatpush.msra.mxu0 %v549
    %657 = vmatpush.msra.mxu0 %v545
    %658 = vmatpush.msra.mxu0 %v541
    %659 = vmatmul.f32.gmra.mxu0 %v374
    %v660 = vpop.f32.mrf.mxu0
    %v661 = vadd.f32 0.0, %v660
    %662 = vdwg.mxu0
    %663 = vmatpush.msra.mxu0 %v602
    %664 = vmatpush.msra.mxu0 %v598
    %665 = vmatpush.msra.mxu0 %v594
    %666 = vmatpush.msra.mxu0 %v590
    %667 = vmatpush.msra.mxu0 %v586
    %668 = vmatpush.msra.mxu0 %v582
    %669 = vmatpush.msra.mxu0 %v578
    %670 = vmatpush.msra.mxu0 %v574
    %671 = vmatpush.msra.mxu0 %v570
    %672 = vmatpush.msra.mxu0 %v566
    %673 = vmatpush.msra.mxu0 %v562
    %674 = vmatpush.msra.mxu0 %v558
    %675 = vmatpush.msra.mxu0 %v554
    %676 = vmatpush.msra.mxu0 %v550
    %677 = vmatpush.msra.mxu0 %v546
    %678 = vmatpush.msra.mxu0 %v542
    %679 = vmatmul.f32.gmra.mxu0 %v374
    %v680 = vpop.f32.mrf.mxu0
    %v681 = vadd.f32 0.0, %v680
    %682 = vdwg.mxu0
    %v683 = vadd.f32 %v535, %v621
    %v684 = vadd.f32 %v536, %v641
    %v685 = vadd.f32 %v537, %v661
    %v686 = vadd.f32 %v538, %v681
    %v687 = vxor.u32 %v683, 2147483648
    %v688 = vxor.u32 %v684, 2147483648
    %v689 = vxor.u32 %v685, 2147483648
    %v690 = vmul.f32 %v687, 1.442695
    %v691 = vpow.pop %v690
    %v692 = vmul.f32 %v688, 1.442695
    %v693 = vpow.pop %v692
    %v694 = vmul.f32 %v689, 1.442695
    %v695 = vpow.pop %v694
    %v696 = vadd.f32 %v691, 1.0
    %v697 = vadd.f32 %v693, 1.0
    %v698 = vadd.f32 %v695, 1.0
    %v699 = vrcp.pop %v696
    %v700 = vmul.f32 %v696, %v699
    %v701 = vsub.f32 1.0, %v700
    %v702 = vmul.f32 %v699, %v701
    %v703 = vadd.f32 %v699, %v702
    %vm704 = vweird.f32 %v696
    %vm705 = vweird.f32 %v699
    %vm706 = vmor %vm704, %vm705
    %v707 = vsel %vm706, %v699, %v703
    %v708 = vand.u32 2147483647, %v696
    %vm709 = vcmp.eq.f32.partialorder %v708, 8.507059e+37
    %v710 = vand.u32 %v696, 2147483648
    %v711 = vor.u32 1.1754944e-38, %v710
    %v712 = vsel %vm709, %v711, %v707
    %v713 = vmul.f32 1.0, %v712
    %v714 = vrcp.pop %v697
    %v715 = vmul.f32 %v697, %v714
    %v716 = vsub.f32 1.0, %v715
    %v717 = vmul.f32 %v714, %v716
    %v718 = vadd.f32 %v714, %v717
    %vm719 = vweird.f32 %v697
    %vm720 = vweird.f32 %v714
    %vm721 = vmor %vm719, %vm720
    %v722 = vsel %vm721, %v714, %v718
    %v723 = vand.u32 2147483647, %v697
    %vm724 = vcmp.eq.f32.partialorder %v723, 8.507059e+37
    %v725 = vand.u32 %v697, 2147483648
    %v726 = vor.u32 1.1754944e-38, %v725
    %v727 = vsel %vm724, %v726, %v722
    %v728 = vmul.f32 1.0, %v727
    %v729 = vrcp.pop %v698
    %v730 = vmul.f32 %v698, %v729
    %v731 = vsub.f32 1.0, %v730
    %v732 = vmul.f32 %v729, %v731
    %v733 = vadd.f32 %v729, %v732
    %vm734 = vweird.f32 %v698
    %vm735 = vweird.f32 %v729
    %vm736 = vmor %vm734, %vm735
    %v737 = vsel %vm736, %v729, %v733
    %v738 = vand.u32 2147483647, %v698
    %vm739 = vcmp.eq.f32.partialorder %v738, 8.507059e+37
    %v740 = vand.u32 %v698, 2147483648
    %v741 = vor.u32 1.1754944e-38, %v740
    %v742 = vsel %vm739, %v741, %v737
    %v743 = vmul.f32 1.0, %v742
    %v744 = vtanh.pop %v686
    %v745 = vmul.f32 %v728, %v375
    %v746 = vmul.f32 %v713, %v744
    %v747 = vadd.f32 %v745, %v746
    %v748 = vtanh.pop %v747
    %v749 = vmul.f32 %v743, %v748
    %v750 = vld [vmem:[#allocation11] sm:$0xff]
    %v751 = vld [vmem:[#allocation11 + $0x8] sm:$0xff]
    %v752 = vld [vmem:[#allocation11 + $0x10] sm:$0xff]
    %v753 = vld [vmem:[#allocation11 + $0x18] sm:$0xff]
    %v754 = vld [vmem:[#allocation11 + $0x20] sm:$0xff]
    %v755 = vld [vmem:[#allocation11 + $0x28] sm:$0xff]
    %v756 = vld [vmem:[#allocation11 + $0x30] sm:$0xff]
    %v757 = vld [vmem:[#allocation11 + $0x38] sm:$0xff]
    %v758 = vld [vmem:[#allocation11 + $0x40] sm:$0xff]
    %v759 = vld [vmem:[#allocation11 + $0x48] sm:$0xff]
    %v760 = vld [vmem:[#allocation11 + $0x50] sm:$0xff]
    %v761 = vld [vmem:[#allocation11 + $0x58] sm:$0xff]
    %v762 = vld [vmem:[#allocation11 + $0x60] sm:$0xff]
    %v763 = vld [vmem:[#allocation11 + $0x68] sm:$0xff]
    %v764 = vld [vmem:[#allocation11 + $0x70] sm:$0xff]
    %v765 = vld [vmem:[#allocation11 + $0x78] sm:$0xff]
    %v766 = vld [vmem:[#allocation11 + $0x80] sm:$0xff]
    %v767 = vld [vmem:[#allocation11 + $0x88] sm:$0xff]
    %v768 = vld [vmem:[#allocation11 + $0x90] sm:$0xff]
    %v769 = vld [vmem:[#allocation11 + $0x98] sm:$0xff]
    %v770 = vld [vmem:[#allocation11 + $0xa0] sm:$0xff]
    %v771 = vld [vmem:[#allocation11 + $0xa8] sm:$0xff]
    %v772 = vld [vmem:[#allocation11 + $0xb0] sm:$0xff]
    %v773 = vld [vmem:[#allocation11 + $0xb8] sm:$0xff]
    %v774 = vld [vmem:[#allocation11 + $0xc0] sm:$0xff]
    %v775 = vld [vmem:[#allocation11 + $0xc8] sm:$0xff]
    %v776 = vld [vmem:[#allocation11 + $0xd0] sm:$0xff]
    %v777 = vld [vmem:[#allocation11 + $0xd8] sm:$0xff]
    %v778 = vld [vmem:[#allocation11 + $0xe0] sm:$0xff]
    %v779 = vld [vmem:[#allocation11 + $0xe8] sm:$0xff]
    %v780 = vld [vmem:[#allocation11 + $0xf0] sm:$0xff]
    %v781 = vld [vmem:[#allocation11 + $0xf8] sm:$0xff]
    %v782 = vld [vmem:[#allocation11 + $0x100] sm:$0xff]
    %v783 = vld [vmem:[#allocation11 + $0x108] sm:$0xff]
    %v784 = vld [vmem:[#allocation11 + $0x110] sm:$0xff]
    %v785 = vld [vmem:[#allocation11 + $0x118] sm:$0xff]
    %v786 = vld [vmem:[#allocation11 + $0x120] sm:$0xff]
    %v787 = vld [vmem:[#allocation11 + $0x128] sm:$0xff]
    %v788 = vld [vmem:[#allocation11 + $0x130] sm:$0xff]
    %v789 = vld [vmem:[#allocation11 + $0x138] sm:$0xff]
    %v790 = vld [vmem:[#allocation11 + $0x140] sm:$0xff]
    %v791 = vld [vmem:[#allocation11 + $0x148] sm:$0xff]
    %v792 = vld [vmem:[#allocation11 + $0x150] sm:$0xff]
    %v793 = vld [vmem:[#allocation11 + $0x158] sm:$0xff]
    %v794 = vld [vmem:[#allocation11 + $0x160] sm:$0xff]
    %v795 = vld [vmem:[#allocation11 + $0x168] sm:$0xff]
    %v796 = vld [vmem:[#allocation11 + $0x170] sm:$0xff]
    %v797 = vld [vmem:[#allocation11 + $0x178] sm:$0xff]
    %v798 = vld [vmem:[#allocation11 + $0x180] sm:$0xff]
    %v799 = vld [vmem:[#allocation11 + $0x188] sm:$0xff]
    %v800 = vld [vmem:[#allocation11 + $0x190] sm:$0xff]
    %v801 = vld [vmem:[#allocation11 + $0x198] sm:$0xff]
    %v802 = vld [vmem:[#allocation11 + $0x1a0] sm:$0xff]
    %v803 = vld [vmem:[#allocation11 + $0x1a8] sm:$0xff]
    %v804 = vld [vmem:[#allocation11 + $0x1b0] sm:$0xff]
    %v805 = vld [vmem:[#allocation11 + $0x1b8] sm:$0xff]
    %v806 = vld [vmem:[#allocation11 + $0x1c0] sm:$0xff]
    %v807 = vld [vmem:[#allocation11 + $0x1c8] sm:$0xff]
    %v808 = vld [vmem:[#allocation11 + $0x1d0] sm:$0xff]
    %v809 = vld [vmem:[#allocation11 + $0x1d8] sm:$0xff]
    %v810 = vld [vmem:[#allocation11 + $0x1e0] sm:$0xff]
    %v811 = vld [vmem:[#allocation11 + $0x1e8] sm:$0xff]
    %v812 = vld [vmem:[#allocation11 + $0x1f0] sm:$0xff]
    %v813 = vld [vmem:[#allocation11 + $0x1f8] sm:$0xff]
    %814 = vmatpush.msra.mxu0 %v810
    %815 = vmatpush.msra.mxu0 %v806
    %816 = vmatpush.msra.mxu0 %v802
    %817 = vmatpush.msra.mxu0 %v798
    %818 = vmatpush.msra.mxu0 %v794
    %819 = vmatpush.msra.mxu0 %v790
    %820 = vmatpush.msra.mxu0 %v786
    %821 = vmatpush.msra.mxu0 %v782
    %822 = vmatpush.msra.mxu0 %v778
    %823 = vmatpush.msra.mxu0 %v774
    %824 = vmatpush.msra.mxu0 %v770
    %825 = vmatpush.msra.mxu0 %v766
    %826 = vmatpush.msra.mxu0 %v762
    %827 = vmatpush.msra.mxu0 %v758
    %828 = vmatpush.msra.mxu0 %v754
    %829 = vmatpush.msra.mxu0 %v750
    %830 = vmatmul.f32.gmra.mxu0 %v749
    %v831 = vpop.f32.mrf.mxu0
    %v832 = vadd.f32 0.0, %v831
    %833 = vdwg.mxu0
    %834 = vmatpush.msra.mxu0 %v811
    %835 = vmatpush.msra.mxu0 %v807
    %836 = vmatpush.msra.mxu0 %v803
    %837 = vmatpush.msra.mxu0 %v799
    %838 = vmatpush.msra.mxu0 %v795
    %839 = vmatpush.msra.mxu0 %v791
    %840 = vmatpush.msra.mxu0 %v787
    %841 = vmatpush.msra.mxu0 %v783
    %842 = vmatpush.msra.mxu0 %v779
    %843 = vmatpush.msra.mxu0 %v775
    %844 = vmatpush.msra.mxu0 %v771
    %845 = vmatpush.msra.mxu0 %v767
    %846 = vmatpush.msra.mxu0 %v763
    %847 = vmatpush.msra.mxu0 %v759
    %848 = vmatpush.msra.mxu0 %v755
    %849 = vmatpush.msra.mxu0 %v751
    %850 = vmatmul.f32.gmra.mxu0 %v749
    %v851 = vpop.f32.mrf.mxu0
    %v852 = vadd.f32 0.0, %v851
    %853 = vdwg.mxu0
    %854 = vmatpush.msra.mxu0 %v812
    %855 = vmatpush.msra.mxu0 %v808
    %856 = vmatpush.msra.mxu0 %v804
    %857 = vmatpush.msra.mxu0 %v800
    %858 = vmatpush.msra.mxu0 %v796
    %859 = vmatpush.msra.mxu0 %v792
    %860 = vmatpush.msra.mxu0 %v788
    %861 = vmatpush.msra.mxu0 %v784
    %862 = vmatpush.msra.mxu0 %v780
    %863 = vmatpush.msra.mxu0 %v776
    %864 = vmatpush.msra.mxu0 %v772
    %865 = vmatpush.msra.mxu0 %v768
    %866 = vmatpush.msra.mxu0 %v764
    %867 = vmatpush.msra.mxu0 %v760
    %868 = vmatpush.msra.mxu0 %v756
    %869 = vmatpush.msra.mxu0 %v752
    %870 = vmatmul.f32.gmra.mxu0 %v749
    %v871 = vpop.f32.mrf.mxu0
    %v872 = vadd.f32 0.0, %v871
    %873 = vdwg.mxu0
    %874 = vmatpush.msra.mxu0 %v813
    %875 = vmatpush.msra.mxu0 %v809
    %876 = vmatpush.msra.mxu0 %v805
    %877 = vmatpush.msra.mxu0 %v801
    %878 = vmatpush.msra.mxu0 %v797
    %879 = vmatpush.msra.mxu0 %v793
    %880 = vmatpush.msra.mxu0 %v789
    %881 = vmatpush.msra.mxu0 %v785
    %882 = vmatpush.msra.mxu0 %v781
    %883 = vmatpush.msra.mxu0 %v777
    %884 = vmatpush.msra.mxu0 %v773
    %885 = vmatpush.msra.mxu0 %v769
    %886 = vmatpush.msra.mxu0 %v765
    %887 = vmatpush.msra.mxu0 %v761
    %888 = vmatpush.msra.mxu0 %v757
    %889 = vmatpush.msra.mxu0 %v753
    %890 = vmatmul.f32.gmra.mxu0 %v749
    %v891 = vpop.f32.mrf.mxu0
    %v892 = vadd.f32 0.0, %v891
    %893 = vdwg.mxu0
    %v894 = vadd.f32 %v470, %v832
    %v895 = vadd.f32 %v490, %v852
    %v896 = vadd.f32 %v510, %v872
    %v897 = vadd.f32 %v530, %v892
    %v898 = vxor.u32 %v894, 2147483648
    %v899 = vxor.u32 %v895, 2147483648
    %v900 = vxor.u32 %v896, 2147483648
    %v901 = vmul.f32 %v898, 1.442695
    %v902 = vpow.pop %v901
    %v903 = vmul.f32 %v899, 1.442695
    %v904 = vpow.pop %v903
    %v905 = vmul.f32 %v900, 1.442695
    %v906 = vpow.pop %v905
    %v907 = vadd.f32 %v902, 1.0
    %v908 = vadd.f32 %v904, 1.0
    %v909 = vadd.f32 %v906, 1.0
    %v910 = vrcp.pop %v907
    %v911 = vmul.f32 %v907, %v910
    %v912 = vsub.f32 1.0, %v911
    %v913 = vmul.f32 %v910, %v912
    %v914 = vadd.f32 %v910, %v913
    %vm915 = vweird.f32 %v907
    %vm916 = vweird.f32 %v910
    %vm917 = vmor %vm915, %vm916
    %v918 = vsel %vm917, %v910, %v914
    %v919 = vand.u32 2147483647, %v907
    %vm920 = vcmp.eq.f32.partialorder %v919, 8.507059e+37
    %v921 = vand.u32 %v907, 2147483648
    %v922 = vor.u32 1.1754944e-38, %v921
    %v923 = vsel %vm920, %v922, %v918
    %v924 = vmul.f32 1.0, %v923
    %v925 = vrcp.pop %v908
    %v926 = vmul.f32 %v908, %v925
    %v927 = vsub.f32 1.0, %v926
    %v928 = vmul.f32 %v925, %v927
    %v929 = vadd.f32 %v925, %v928
    %vm930 = vweird.f32 %v908
    %vm931 = vweird.f32 %v925
    %vm932 = vmor %vm930, %vm931
    %v933 = vsel %vm932, %v925, %v929
    %v934 = vand.u32 2147483647, %v908
    %vm935 = vcmp.eq.f32.partialorder %v934, 8.507059e+37
    %v936 = vand.u32 %v908, 2147483648
    %v937 = vor.u32 1.1754944e-38, %v936
    %v938 = vsel %vm935, %v937, %v933
    %v939 = vmul.f32 1.0, %v938
    %v940 = vrcp.pop %v909
    %v941 = vmul.f32 %v909, %v940
    %v942 = vsub.f32 1.0, %v941
    %v943 = vmul.f32 %v940, %v942
    %v944 = vadd.f32 %v940, %v943
    %vm945 = vweird.f32 %v909
    %vm946 = vweird.f32 %v940
    %vm947 = vmor %vm945, %vm946
    %v948 = vsel %vm947, %v940, %v944
    %v949 = vand.u32 2147483647, %v909
    %vm950 = vcmp.eq.f32.partialorder %v949, 8.507059e+37
    %v951 = vand.u32 %v909, 2147483648
    %v952 = vor.u32 1.1754944e-38, %v951
    %v953 = vsel %vm950, %v952, %v948
    %v954 = vmul.f32 1.0, %v953
    %v955 = vtanh.pop %v897
    %v956 = vmul.f32 %v939, %v377
    %v957 = vmul.f32 %v924, %v955
    %v958 = vadd.f32 %v956, %v957
    %v959 = vtanh.pop %v958
    %v960 = vmul.f32 %v954, %v959
    %961 = vmatpush.msra.mxu0 %v438
    %962 = vmatpush.msra.mxu0 %v434
    %963 = vmatpush.msra.mxu0 %v430
    %964 = vmatpush.msra.mxu0 %v426
    %965 = vmatpush.msra.mxu0 %v422
    %966 = vmatpush.msra.mxu0 %v418
    %967 = vmatpush.msra.mxu0 %v414
    %968 = vmatpush.msra.mxu0 %v410
    %969 = vmatpush.msra.mxu0 %v406
    %970 = vmatpush.msra.mxu0 %v402
    %971 = vmatpush.msra.mxu0 %v398
    %972 = vmatpush.msra.mxu0 %v394
    %973 = vmatpush.msra.mxu0 %v390
    %974 = vmatpush.msra.mxu0 %v386
    %975 = vmatpush.msra.mxu0 %v382
    %976 = vmatpush.msra.mxu0 %v378
    %977 = vmatmul.f32.gmra.mxu0 %v960
    %v978 = vpop.f32.mrf.mxu0
    %v979 = vadd.f32 %v444, %v978
    %980 = vdwg.mxu0
    %981 = vmatpush.msra.mxu0 %v439
    %982 = vmatpush.msra.mxu0 %v435
    %983 = vmatpush.msra.mxu0 %v431
    %984 = vmatpush.msra.mxu0 %v427
    %985 = vmatpush.msra.mxu0 %v423
    %986 = vmatpush.msra.mxu0 %v419
    %987 = vmatpush.msra.mxu0 %v415
    %988 = vmatpush.msra.mxu0 %v411
    %989 = vmatpush.msra.mxu0 %v407
    %990 = vmatpush.msra.mxu0 %v403
    %991 = vmatpush.msra.mxu0 %v399
    %992 = vmatpush.msra.mxu0 %v395
    %993 = vmatpush.msra.mxu0 %v391
    %994 = vmatpush.msra.mxu0 %v387
    %995 = vmatpush.msra.mxu0 %v383
    %996 = vmatpush.msra.mxu0 %v379
    %997 = vmatmul.f32.gmra.mxu0 %v960
    %v998 = vpop.f32.mrf.mxu0
    %v999 = vadd.f32 %v445, %v998
    %1000 = vdwg.mxu0
    %1001 = vmatpush.msra.mxu0 %v440
    %1002 = vmatpush.msra.mxu0 %v436
    %1003 = vmatpush.msra.mxu0 %v432
    %1004 = vmatpush.msra.mxu0 %v428
    %1005 = vmatpush.msra.mxu0 %v424
    %1006 = vmatpush.msra.mxu0 %v420
    %1007 = vmatpush.msra.mxu0 %v416
    %1008 = vmatpush.msra.mxu0 %v412
    %1009 = vmatpush.msra.mxu0 %v408
    %1010 = vmatpush.msra.mxu0 %v404
    %1011 = vmatpush.msra.mxu0 %v400
    %1012 = vmatpush.msra.mxu0 %v396
    %1013 = vmatpush.msra.mxu0 %v392
    %1014 = vmatpush.msra.mxu0 %v388
    %1015 = vmatpush.msra.mxu0 %v384
    %1016 = vmatpush.msra.mxu0 %v380
    %1017 = vmatmul.f32.gmra.mxu0 %v960
    %v1018 = vpop.f32.mrf.mxu0
    %v1019 = vadd.f32 %v446, %v1018
    %1020 = vdwg.mxu0
    %1021 = vmatpush.msra.mxu0 %v441
    %1022 = vmatpush.msra.mxu0 %v437
    %1023 = vmatpush.msra.mxu0 %v433
    %1024 = vmatpush.msra.mxu0 %v429
    %1025 = vmatpush.msra.mxu0 %v425
    %1026 = vmatpush.msra.mxu0 %v421
    %1027 = vmatpush.msra.mxu0 %v417
    %1028 = vmatpush.msra.mxu0 %v413
    %1029 = vmatpush.msra.mxu0 %v409
    %1030 = vmatpush.msra.mxu0 %v405
    %1031 = vmatpush.msra.mxu0 %v401
    %1032 = vmatpush.msra.mxu0 %v397
    %1033 = vmatpush.msra.mxu0 %v393
    %1034 = vmatpush.msra.mxu0 %v389
    %1035 = vmatpush.msra.mxu0 %v385
    %1036 = vmatpush.msra.mxu0 %v381
    %1037 = vmatmul.f32.gmra.mxu0 %v960
    %v1038 = vpop.f32.mrf.mxu0
    %v1039 = vadd.f32 %v447, %v1038
    %1040 = vdwg.mxu0
    %s1041 = smul.u32 1, 4
    %s1042 = smul.addr %s1041, 8
    %s1043 = scalar_lea.vmem [#allocation2], %s1042
    %v1044 = vld [vmem:[%s1043] sm:$0xff]
    %v1045 = vld [vmem:[%s1043 + $0x8] sm:$0xff]
    %v1046 = vld [vmem:[%s1043 + $0x10] sm:$0xff]
    %v1047 = vld [vmem:[%s1043 + $0x18] sm:$0xff]
    %1048 = vmatpush.msra.mxu0 %v599
    %1049 = vmatpush.msra.mxu0 %v595
    %1050 = vmatpush.msra.mxu0 %v591
    %1051 = vmatpush.msra.mxu0 %v587
    %1052 = vmatpush.msra.mxu0 %v583
    %1053 = vmatpush.msra.mxu0 %v579
    %1054 = vmatpush.msra.mxu0 %v575
    %1055 = vmatpush.msra.mxu0 %v571
    %1056 = vmatpush.msra.mxu0 %v567
    %1057 = vmatpush.msra.mxu0 %v563
    %1058 = vmatpush.msra.mxu0 %v559
    %1059 = vmatpush.msra.mxu0 %v555
    %1060 = vmatpush.msra.mxu0 %v551
    %1061 = vmatpush.msra.mxu0 %v547
    %1062 = vmatpush.msra.mxu0 %v543
    %1063 = vmatpush.msra.mxu0 %v539
    %1064 = vmatmul.f32.gmra.mxu0 %v749
    %v1065 = vpop.f32.mrf.mxu0
    %v1066 = vadd.f32 0.0, %v1065
    %1067 = vdwg.mxu0
    %1068 = vmatpush.msra.mxu0 %v600
    %1069 = vmatpush.msra.mxu0 %v596
    %1070 = vmatpush.msra.mxu0 %v592
    %1071 = vmatpush.msra.mxu0 %v588
    %1072 = vmatpush.msra.mxu0 %v584
    %1073 = vmatpush.msra.mxu0 %v580
    %1074 = vmatpush.msra.mxu0 %v576
    %1075 = vmatpush.msra.mxu0 %v572
    %1076 = vmatpush.msra.mxu0 %v568
    %1077 = vmatpush.msra.mxu0 %v564
    %1078 = vmatpush.msra.mxu0 %v560
    %1079 = vmatpush.msra.mxu0 %v556
    %1080 = vmatpush.msra.mxu0 %v552
    %1081 = vmatpush.msra.mxu0 %v548
    %1082 = vmatpush.msra.mxu0 %v544
    %1083 = vmatpush.msra.mxu0 %v540
    %1084 = vmatmul.f32.gmra.mxu0 %v749
    %v1085 = vpop.f32.mrf.mxu0
    %v1086 = vadd.f32 0.0, %v1085
    %1087 = vdwg.mxu0
    %1088 = vmatpush.msra.mxu0 %v601
    %1089 = vmatpush.msra.mxu0 %v597
    %1090 = vmatpush.msra.mxu0 %v593
    %1091 = vmatpush.msra.mxu0 %v589
    %1092 = vmatpush.msra.mxu0 %v585
    %1093 = vmatpush.msra.mxu0 %v581
    %1094 = vmatpush.msra.mxu0 %v577
    %1095 = vmatpush.msra.mxu0 %v573
    %1096 = vmatpush.msra.mxu0 %v569
    %1097 = vmatpush.msra.mxu0 %v565
    %1098 = vmatpush.msra.mxu0 %v561
    %1099 = vmatpush.msra.mxu0 %v557
    %1100 = vmatpush.msra.mxu0 %v553
    %1101 = vmatpush.msra.mxu0 %v549
    %1102 = vmatpush.msra.mxu0 %v545
    %1103 = vmatpush.msra.mxu0 %v541
    %1104 = vmatmul.f32.gmra.mxu0 %v749
    %v1105 = vpop.f32.mrf.mxu0
    %v1106 = vadd.f32 0.0, %v1105
    %1107 = vdwg.mxu0
    %1108 = vmatpush.msra.mxu0 %v602
    %1109 = vmatpush.msra.mxu0 %v598
    %1110 = vmatpush.msra.mxu0 %v594
    %1111 = vmatpush.msra.mxu0 %v590
    %1112 = vmatpush.msra.mxu0 %v586
    %1113 = vmatpush.msra.mxu0 %v582
    %1114 = vmatpush.msra.mxu0 %v578
    %1115 = vmatpush.msra.mxu0 %v574
    %1116 = vmatpush.msra.mxu0 %v570
    %1117 = vmatpush.msra.mxu0 %v566
    %1118 = vmatpush.msra.mxu0 %v562
    %1119 = vmatpush.msra.mxu0 %v558
    %1120 = vmatpush.msra.mxu0 %v554
    %1121 = vmatpush.msra.mxu0 %v550
    %1122 = vmatpush.msra.mxu0 %v546
    %1123 = vmatpush.msra.mxu0 %v542
    %1124 = vmatmul.f32.gmra.mxu0 %v749
    %v1125 = vpop.f32.mrf.mxu0
    %v1126 = vadd.f32 0.0, %v1125
    %1127 = vdwg.mxu0
    %v1128 = vadd.f32 %v1044, %v1066
    %v1129 = vadd.f32 %v1045, %v1086
    %v1130 = vadd.f32 %v1046, %v1106
    %v1131 = vadd.f32 %v1047, %v1126
    %v1132 = vxor.u32 %v1128, 2147483648
    %v1133 = vxor.u32 %v1129, 2147483648
    %v1134 = vxor.u32 %v1130, 2147483648
    %v1135 = vmul.f32 %v1132, 1.442695
    %v1136 = vpow.pop %v1135
    %v1137 = vmul.f32 %v1133, 1.442695
    %v1138 = vpow.pop %v1137
    %v1139 = vmul.f32 %v1134, 1.442695
    %v1140 = vpow.pop %v1139
    %v1141 = vadd.f32 %v1136, 1.0
    %v1142 = vadd.f32 %v1138, 1.0
    %v1143 = vadd.f32 %v1140, 1.0
    %v1144 = vrcp.pop %v1141
    %v1145 = vmul.f32 %v1141, %v1144
    %v1146 = vsub.f32 1.0, %v1145
    %v1147 = vmul.f32 %v1144, %v1146
    %v1148 = vadd.f32 %v1144, %v1147
    %vm1149 = vweird.f32 %v1141
    %vm1150 = vweird.f32 %v1144
    %vm1151 = vmor %vm1149, %vm1150
    %v1152 = vsel %vm1151, %v1144, %v1148
    %v1153 = vand.u32 2147483647, %v1141
    %vm1154 = vcmp.eq.f32.partialorder %v1153, 8.507059e+37
    %v1155 = vand.u32 %v1141, 2147483648
    %v1156 = vor.u32 1.1754944e-38, %v1155
    %v1157 = vsel %vm1154, %v1156, %v1152
    %v1158 = vmul.f32 1.0, %v1157
    %v1159 = vrcp.pop %v1142
    %v1160 = vmul.f32 %v1142, %v1159
    %v1161 = vsub.f32 1.0, %v1160
    %v1162 = vmul.f32 %v1159, %v1161
    %v1163 = vadd.f32 %v1159, %v1162
    %vm1164 = vweird.f32 %v1142
    %vm1165 = vweird.f32 %v1159
    %vm1166 = vmor %vm1164, %vm1165
    %v1167 = vsel %vm1166, %v1159, %v1163
    %v1168 = vand.u32 2147483647, %v1142
    %vm1169 = vcmp.eq.f32.partialorder %v1168, 8.507059e+37
    %v1170 = vand.u32 %v1142, 2147483648
    %v1171 = vor.u32 1.1754944e-38, %v1170
    %v1172 = vsel %vm1169, %v1171, %v1167
    %v1173 = vmul.f32 1.0, %v1172
    %v1174 = vrcp.pop %v1143
    %v1175 = vmul.f32 %v1143, %v1174
    %v1176 = vsub.f32 1.0, %v1175
    %v1177 = vmul.f32 %v1174, %v1176
    %v1178 = vadd.f32 %v1174, %v1177
    %vm1179 = vweird.f32 %v1143
    %vm1180 = vweird.f32 %v1174
    %vm1181 = vmor %vm1179, %vm1180
    %v1182 = vsel %vm1181, %v1174, %v1178
    %v1183 = vand.u32 2147483647, %v1143
    %vm1184 = vcmp.eq.f32.partialorder %v1183, 8.507059e+37
    %v1185 = vand.u32 %v1143, 2147483648
    %v1186 = vor.u32 1.1754944e-38, %v1185
    %v1187 = vsel %vm1184, %v1186, %v1182
    %v1188 = vmul.f32 1.0, %v1187
    %v1189 = vtanh.pop %v1131
    %v1190 = vmul.f32 %v1173, %v747
    %v1191 = vmul.f32 %v1158, %v1189
    %v1192 = vadd.f32 %v1190, %v1191
    %v1193 = vtanh.pop %v1192
    %v1194 = vmul.f32 %v1188, %v1193
    %1195 = vmatpush.msra.mxu0 %v810
    %1196 = vmatpush.msra.mxu0 %v806
    %1197 = vmatpush.msra.mxu0 %v802
    %1198 = vmatpush.msra.mxu0 %v798
    %1199 = vmatpush.msra.mxu0 %v794
    %1200 = vmatpush.msra.mxu0 %v790
    %1201 = vmatpush.msra.mxu0 %v786
    %1202 = vmatpush.msra.mxu0 %v782
    %1203 = vmatpush.msra.mxu0 %v778
    %1204 = vmatpush.msra.mxu0 %v774
    %1205 = vmatpush.msra.mxu0 %v770
    %1206 = vmatpush.msra.mxu0 %v766
    %1207 = vmatpush.msra.mxu0 %v762
    %1208 = vmatpush.msra.mxu0 %v758
    %1209 = vmatpush.msra.mxu0 %v754
    %1210 = vmatpush.msra.mxu0 %v750
    %1211 = vmatmul.f32.gmra.mxu0 %v1194
    %v1212 = vpop.f32.mrf.mxu0
    %v1213 = vadd.f32 0.0, %v1212
    %1214 = vdwg.mxu0
    %1215 = vmatpush.msra.mxu0 %v811
    %1216 = vmatpush.msra.mxu0 %v807
    %1217 = vmatpush.msra.mxu0 %v803
    %1218 = vmatpush.msra.mxu0 %v799
    %1219 = vmatpush.msra.mxu0 %v795
    %1220 = vmatpush.msra.mxu0 %v791
    %1221 = vmatpush.msra.mxu0 %v787
    %1222 = vmatpush.msra.mxu0 %v783
    %1223 = vmatpush.msra.mxu0 %v779
    %1224 = vmatpush.msra.mxu0 %v775
    %1225 = vmatpush.msra.mxu0 %v771
    %1226 = vmatpush.msra.mxu0 %v767
    %1227 = vmatpush.msra.mxu0 %v763
    %1228 = vmatpush.msra.mxu0 %v759
    %1229 = vmatpush.msra.mxu0 %v755
    %1230 = vmatpush.msra.mxu0 %v751
    %1231 = vmatmul.f32.gmra.mxu0 %v1194
    %v1232 = vpop.f32.mrf.mxu0
    %v1233 = vadd.f32 0.0, %v1232
    %1234 = vdwg.mxu0
    %1235 = vmatpush.msra.mxu0 %v812
    %1236 = vmatpush.msra.mxu0 %v808
    %1237 = vmatpush.msra.mxu0 %v804
    %1238 = vmatpush.msra.mxu0 %v800
    %1239 = vmatpush.msra.mxu0 %v796
    %1240 = vmatpush.msra.mxu0 %v792
    %1241 = vmatpush.msra.mxu0 %v788
    %1242 = vmatpush.msra.mxu0 %v784
    %1243 = vmatpush.msra.mxu0 %v780
    %1244 = vmatpush.msra.mxu0 %v776
    %1245 = vmatpush.msra.mxu0 %v772
    %1246 = vmatpush.msra.mxu0 %v768
    %1247 = vmatpush.msra.mxu0 %v764
    %1248 = vmatpush.msra.mxu0 %v760
    %1249 = vmatpush.msra.mxu0 %v756
    %1250 = vmatpush.msra.mxu0 %v752
    %1251 = vmatmul.f32.gmra.mxu0 %v1194
    %v1252 = vpop.f32.mrf.mxu0
    %v1253 = vadd.f32 0.0, %v1252
    %1254 = vdwg.mxu0
    %1255 = vmatpush.msra.mxu0 %v813
    %1256 = vmatpush.msra.mxu0 %v809
    %1257 = vmatpush.msra.mxu0 %v805
    %1258 = vmatpush.msra.mxu0 %v801
    %1259 = vmatpush.msra.mxu0 %v797
    %1260 = vmatpush.msra.mxu0 %v793
    %1261 = vmatpush.msra.mxu0 %v789
    %1262 = vmatpush.msra.mxu0 %v785
    %1263 = vmatpush.msra.mxu0 %v781
    %1264 = vmatpush.msra.mxu0 %v777
    %1265 = vmatpush.msra.mxu0 %v773
    %1266 = vmatpush.msra.mxu0 %v769
    %1267 = vmatpush.msra.mxu0 %v765
    %1268 = vmatpush.msra.mxu0 %v761
    %1269 = vmatpush.msra.mxu0 %v757
    %1270 = vmatpush.msra.mxu0 %v753
    %1271 = vmatmul.f32.gmra.mxu0 %v1194
    %v1272 = vpop.f32.mrf.mxu0
    %v1273 = vadd.f32 0.0, %v1272
    %1274 = vdwg.mxu0
    %v1275 = vadd.f32 %v979, %v1213
    %v1276 = vadd.f32 %v999, %v1233
    %v1277 = vadd.f32 %v1019, %v1253
    %v1278 = vadd.f32 %v1039, %v1273
    %v1279 = vxor.u32 %v1275, 2147483648
    %v1280 = vxor.u32 %v1276, 2147483648
    %v1281 = vxor.u32 %v1277, 2147483648
    %v1282 = vmul.f32 %v1279, 1.442695
    %v1283 = vpow.pop %v1282
    %v1284 = vmul.f32 %v1280, 1.442695
    %v1285 = vpow.pop %v1284
    %v1286 = vmul.f32 %v1281, 1.442695
    %v1287 = vpow.pop %v1286
    %v1288 = vadd.f32 %v1283, 1.0
    %v1289 = vadd.f32 %v1285, 1.0
    %v1290 = vadd.f32 %v1287, 1.0
    %v1291 = vrcp.pop %v1288
    %v1292 = vmul.f32 %v1288, %v1291
    %v1293 = vsub.f32 1.0, %v1292
    %v1294 = vmul.f32 %v1291, %v1293
    %v1295 = vadd.f32 %v1291, %v1294
    %vm1296 = vweird.f32 %v1288
    %vm1297 = vweird.f32 %v1291
    %vm1298 = vmor %vm1296, %vm1297
    %v1299 = vsel %vm1298, %v1291, %v1295
    %v1300 = vand.u32 2147483647, %v1288
    %vm1301 = vcmp.eq.f32.partialorder %v1300, 8.507059e+37
    %v1302 = vand.u32 %v1288, 2147483648
    %v1303 = vor.u32 1.1754944e-38, %v1302
    %v1304 = vsel %vm1301, %v1303, %v1299
    %v1305 = vmul.f32 1.0, %v1304
    %v1306 = vrcp.pop %v1289
    %v1307 = vmul.f32 %v1289, %v1306
    %v1308 = vsub.f32 1.0, %v1307
    %v1309 = vmul.f32 %v1306, %v1308
    %v1310 = vadd.f32 %v1306, %v1309
    %vm1311 = vweird.f32 %v1289
    %vm1312 = vweird.f32 %v1306
    %vm1313 = vmor %vm1311, %vm1312
    %v1314 = vsel %vm1313, %v1306, %v1310
    %v1315 = vand.u32 2147483647, %v1289
    %vm1316 = vcmp.eq.f32.partialorder %v1315, 8.507059e+37
    %v1317 = vand.u32 %v1289, 2147483648
    %v1318 = vor.u32 1.1754944e-38, %v1317
    %v1319 = vsel %vm1316, %v1318, %v1314
    %v1320 = vmul.f32 1.0, %v1319
    %v1321 = vrcp.pop %v1290
    %v1322 = vmul.f32 %v1290, %v1321
    %v1323 = vsub.f32 1.0, %v1322
    %v1324 = vmul.f32 %v1321, %v1323
    %v1325 = vadd.f32 %v1321, %v1324
    %vm1326 = vweird.f32 %v1290
    %vm1327 = vweird.f32 %v1321
    %vm1328 = vmor %vm1326, %vm1327
    %v1329 = vsel %vm1328, %v1321, %v1325
    %v1330 = vand.u32 2147483647, %v1290
    %vm1331 = vcmp.eq.f32.partialorder %v1330, 8.507059e+37
    %v1332 = vand.u32 %v1290, 2147483648
    %v1333 = vor.u32 1.1754944e-38, %v1332
    %v1334 = vsel %vm1331, %v1333, %v1329
    %v1335 = vmul.f32 1.0, %v1334
    %v1336 = vtanh.pop %v1278
    %v1337 = vmul.f32 %v1320, %v958
    %v1338 = vmul.f32 %v1305, %v1336
    %v1339 = vadd.f32 %v1337, %v1338
    %v1340 = vtanh.pop %v1339
    %v1341 = vmul.f32 %v1335, %v1340
    %1342 = vmatpush.msra.mxu0 %v438
    %1343 = vmatpush.msra.mxu0 %v434
    %1344 = vmatpush.msra.mxu0 %v430
    %1345 = vmatpush.msra.mxu0 %v426
    %1346 = vmatpush.msra.mxu0 %v422
    %1347 = vmatpush.msra.mxu0 %v418
    %1348 = vmatpush.msra.mxu0 %v414
    %1349 = vmatpush.msra.mxu0 %v410
    %1350 = vmatpush.msra.mxu0 %v406
    %1351 = vmatpush.msra.mxu0 %v402
    %1352 = vmatpush.msra.mxu0 %v398
    %1353 = vmatpush.msra.mxu0 %v394
    %1354 = vmatpush.msra.mxu0 %v390
    %1355 = vmatpush.msra.mxu0 %v386
    %1356 = vmatpush.msra.mxu0 %v382
    %1357 = vmatpush.msra.mxu0 %v378
    %1358 = vmatmul.f32.gmra.mxu0 %v1341
    %v1359 = vpop.f32.mrf.mxu0
    %v1360 = vadd.f32 %v444, %v1359
    %1361 = vdwg.mxu0
    %1362 = vmatpush.msra.mxu0 %v439
    %1363 = vmatpush.msra.mxu0 %v435
    %1364 = vmatpush.msra.mxu0 %v431
    %1365 = vmatpush.msra.mxu0 %v427
    %1366 = vmatpush.msra.mxu0 %v423
    %1367 = vmatpush.msra.mxu0 %v419
    %1368 = vmatpush.msra.mxu0 %v415
    %1369 = vmatpush.msra.mxu0 %v411
    %1370 = vmatpush.msra.mxu0 %v407
    %1371 = vmatpush.msra.mxu0 %v403
    %1372 = vmatpush.msra.mxu0 %v399
    %1373 = vmatpush.msra.mxu0 %v395
    %1374 = vmatpush.msra.mxu0 %v391
    %1375 = vmatpush.msra.mxu0 %v387
    %1376 = vmatpush.msra.mxu0 %v383
    %1377 = vmatpush.msra.mxu0 %v379
    %1378 = vmatmul.f32.gmra.mxu0 %v1341
    %v1379 = vpop.f32.mrf.mxu0
    %v1380 = vadd.f32 %v445, %v1379
    %1381 = vdwg.mxu0
    %1382 = vmatpush.msra.mxu0 %v440
    %1383 = vmatpush.msra.mxu0 %v436
    %1384 = vmatpush.msra.mxu0 %v432
    %1385 = vmatpush.msra.mxu0 %v428
    %1386 = vmatpush.msra.mxu0 %v424
    %1387 = vmatpush.msra.mxu0 %v420
    %1388 = vmatpush.msra.mxu0 %v416
    %1389 = vmatpush.msra.mxu0 %v412
    %1390 = vmatpush.msra.mxu0 %v408
    %1391 = vmatpush.msra.mxu0 %v404
    %1392 = vmatpush.msra.mxu0 %v400
    %1393 = vmatpush.msra.mxu0 %v396
    %1394 = vmatpush.msra.mxu0 %v392
    %1395 = vmatpush.msra.mxu0 %v388
    %1396 = vmatpush.msra.mxu0 %v384
    %1397 = vmatpush.msra.mxu0 %v380
    %1398 = vmatmul.f32.gmra.mxu0 %v1341
    %v1399 = vpop.f32.mrf.mxu0
    %v1400 = vadd.f32 %v446, %v1399
    %1401 = vdwg.mxu0
    %1402 = vmatpush.msra.mxu0 %v441
    %1403 = vmatpush.msra.mxu0 %v437
    %1404 = vmatpush.msra.mxu0 %v433
    %1405 = vmatpush.msra.mxu0 %v429
    %1406 = vmatpush.msra.mxu0 %v425
    %1407 = vmatpush.msra.mxu0 %v421
    %1408 = vmatpush.msra.mxu0 %v417
    %1409 = vmatpush.msra.mxu0 %v413
    %1410 = vmatpush.msra.mxu0 %v409
    %1411 = vmatpush.msra.mxu0 %v405
    %1412 = vmatpush.msra.mxu0 %v401
    %1413 = vmatpush.msra.mxu0 %v397
    %1414 = vmatpush.msra.mxu0 %v393
    %1415 = vmatpush.msra.mxu0 %v389
    %1416 = vmatpush.msra.mxu0 %v385
    %1417 = vmatpush.msra.mxu0 %v381
    %1418 = vmatmul.f32.gmra.mxu0 %v1341
    %v1419 = vpop.f32.mrf.mxu0
    %v1420 = vadd.f32 %v447, %v1419
    %1421 = vdwg.mxu0
    %s1422 = smul.u32 2, 4
    %s1423 = smul.addr %s1422, 8
    %s1424 = scalar_lea.vmem [#allocation2], %s1423
    %v1425 = vld [vmem:[%s1424] sm:$0xff]
    %v1426 = vld [vmem:[%s1424 + $0x8] sm:$0xff]
    %v1427 = vld [vmem:[%s1424 + $0x10] sm:$0xff]
    %v1428 = vld [vmem:[%s1424 + $0x18] sm:$0xff]
    %1429 = vmatpush.msra.mxu0 %v599
    %1430 = vmatpush.msra.mxu0 %v595
    %1431 = vmatpush.msra.mxu0 %v591
    %1432 = vmatpush.msra.mxu0 %v587
    %1433 = vmatpush.msra.mxu0 %v583
    %1434 = vmatpush.msra.mxu0 %v579
    %1435 = vmatpush.msra.mxu0 %v575
    %1436 = vmatpush.msra.mxu0 %v571
    %1437 = vmatpush.msra.mxu0 %v567
    %1438 = vmatpush.msra.mxu0 %v563
    %1439 = vmatpush.msra.mxu0 %v559
    %1440 = vmatpush.msra.mxu0 %v555
    %1441 = vmatpush.msra.mxu0 %v551
    %1442 = vmatpush.msra.mxu0 %v547
    %1443 = vmatpush.msra.mxu0 %v543
    %1444 = vmatpush.msra.mxu0 %v539
    %1445 = vmatmul.f32.gmra.mxu0 %v1194
    %v1446 = vpop.f32.mrf.mxu0
    %v1447 = vadd.f32 0.0, %v1446
    %1448 = vdwg.mxu0
    %1449 = vmatpush.msra.mxu0 %v600
    %1450 = vmatpush.msra.mxu0 %v596
    %1451 = vmatpush.msra.mxu0 %v592
    %1452 = vmatpush.msra.mxu0 %v588
    %1453 = vmatpush.msra.mxu0 %v584
    %1454 = vmatpush.msra.mxu0 %v580
    %1455 = vmatpush.msra.mxu0 %v576
    %1456 = vmatpush.msra.mxu0 %v572
    %1457 = vmatpush.msra.mxu0 %v568
    %1458 = vmatpush.msra.mxu0 %v564
    %1459 = vmatpush.msra.mxu0 %v560
    %1460 = vmatpush.msra.mxu0 %v556
    %1461 = vmatpush.msra.mxu0 %v552
    %1462 = vmatpush.msra.mxu0 %v548
    %1463 = vmatpush.msra.mxu0 %v544
    %1464 = vmatpush.msra.mxu0 %v540
    %1465 = vmatmul.f32.gmra.mxu0 %v1194
    %v1466 = vpop.f32.mrf.mxu0
    %v1467 = vadd.f32 0.0, %v1466
    %1468 = vdwg.mxu0
    %1469 = vmatpush.msra.mxu0 %v601
    %1470 = vmatpush.msra.mxu0 %v597
    %1471 = vmatpush.msra.mxu0 %v593
    %1472 = vmatpush.msra.mxu0 %v589
    %1473 = vmatpush.msra.mxu0 %v585
    %1474 = vmatpush.msra.mxu0 %v581
    %1475 = vmatpush.msra.mxu0 %v577
    %1476 = vmatpush.msra.mxu0 %v573
    %1477 = vmatpush.msra.mxu0 %v569
    %1478 = vmatpush.msra.mxu0 %v565
    %1479 = vmatpush.msra.mxu0 %v561
    %1480 = vmatpush.msra.mxu0 %v557
    %1481 = vmatpush.msra.mxu0 %v553
    %1482 = vmatpush.msra.mxu0 %v549
    %1483 = vmatpush.msra.mxu0 %v545
    %1484 = vmatpush.msra.mxu0 %v541
    %1485 = vmatmul.f32.gmra.mxu0 %v1194
    %v1486 = vpop.f32.mrf.mxu0
    %v1487 = vadd.f32 0.0, %v1486
    %1488 = vdwg.mxu0
    %1489 = vmatpush.msra.mxu0 %v602
    %1490 = vmatpush.msra.mxu0 %v598
    %1491 = vmatpush.msra.mxu0 %v594
    %1492 = vmatpush.msra.mxu0 %v590
    %1493 = vmatpush.msra.mxu0 %v586
    %1494 = vmatpush.msra.mxu0 %v582
    %1495 = vmatpush.msra.mxu0 %v578
    %1496 = vmatpush.msra.mxu0 %v574
    %1497 = vmatpush.msra.mxu0 %v570
    %1498 = vmatpush.msra.mxu0 %v566
    %1499 = vmatpush.msra.mxu0 %v562
    %1500 = vmatpush.msra.mxu0 %v558
    %1501 = vmatpush.msra.mxu0 %v554
    %1502 = vmatpush.msra.mxu0 %v550
    %1503 = vmatpush.msra.mxu0 %v546
    %1504 = vmatpush.msra.mxu0 %v542
    %1505 = vmatmul.f32.gmra.mxu0 %v1194
    %v1506 = vpop.f32.mrf.mxu0
    %v1507 = vadd.f32 0.0, %v1506
    %1508 = vdwg.mxu0
    %v1509 = vadd.f32 %v1425, %v1447
    %v1510 = vadd.f32 %v1426, %v1467
    %v1511 = vadd.f32 %v1427, %v1487
    %v1512 = vadd.f32 %v1428, %v1507
    %v1513 = vxor.u32 %v1509, 2147483648
    %v1514 = vxor.u32 %v1510, 2147483648
    %v1515 = vxor.u32 %v1511, 2147483648
    %v1516 = vmul.f32 %v1513, 1.442695
    %v1517 = vpow.pop %v1516
    %v1518 = vmul.f32 %v1514, 1.442695
    %v1519 = vpow.pop %v1518
    %v1520 = vmul.f32 %v1515, 1.442695
    %v1521 = vpow.pop %v1520
    %v1522 = vadd.f32 %v1517, 1.0
    %v1523 = vadd.f32 %v1519, 1.0
    %v1524 = vadd.f32 %v1521, 1.0
    %v1525 = vrcp.pop %v1522
    %v1526 = vmul.f32 %v1522, %v1525
    %v1527 = vsub.f32 1.0, %v1526
    %v1528 = vmul.f32 %v1525, %v1527
    %v1529 = vadd.f32 %v1525, %v1528
    %vm1530 = vweird.f32 %v1522
    %vm1531 = vweird.f32 %v1525
    %vm1532 = vmor %vm1530, %vm1531
    %v1533 = vsel %vm1532, %v1525, %v1529
    %v1534 = vand.u32 2147483647, %v1522
    %vm1535 = vcmp.eq.f32.partialorder %v1534, 8.507059e+37
    %v1536 = vand.u32 %v1522, 2147483648
    %v1537 = vor.u32 1.1754944e-38, %v1536
    %v1538 = vsel %vm1535, %v1537, %v1533
    %v1539 = vmul.f32 1.0, %v1538
    %v1540 = vrcp.pop %v1523
    %v1541 = vmul.f32 %v1523, %v1540
    %v1542 = vsub.f32 1.0, %v1541
    %v1543 = vmul.f32 %v1540, %v1542
    %v1544 = vadd.f32 %v1540, %v1543
    %vm1545 = vweird.f32 %v1523
    %vm1546 = vweird.f32 %v1540
    %vm1547 = vmor %vm1545, %vm1546
    %v1548 = vsel %vm1547, %v1540, %v1544
    %v1549 = vand.u32 2147483647, %v1523
    %vm1550 = vcmp.eq.f32.partialorder %v1549, 8.507059e+37
    %v1551 = vand.u32 %v1523, 2147483648
    %v1552 = vor.u32 1.1754944e-38, %v1551
    %v1553 = vsel %vm1550, %v1552, %v1548
    %v1554 = vmul.f32 1.0, %v1553
    %v1555 = vrcp.pop %v1524
    %v1556 = vmul.f32 %v1524, %v1555
    %v1557 = vsub.f32 1.0, %v1556
    %v1558 = vmul.f32 %v1555, %v1557
    %v1559 = vadd.f32 %v1555, %v1558
    %vm1560 = vweird.f32 %v1524
    %vm1561 = vweird.f32 %v1555
    %vm1562 = vmor %vm1560, %vm1561
    %v1563 = vsel %vm1562, %v1555, %v1559
    %v1564 = vand.u32 2147483647, %v1524
    %vm1565 = vcmp.eq.f32.partialorder %v1564, 8.507059e+37
    %v1566 = vand.u32 %v1524, 2147483648
    %v1567 = vor.u32 1.1754944e-38, %v1566
    %v1568 = vsel %vm1565, %v1567, %v1563
    %v1569 = vmul.f32 1.0, %v1568
    %v1570 = vtanh.pop %v1512
    %v1571 = vmul.f32 %v1554, %v1192
    %v1572 = vmul.f32 %v1539, %v1570
    %v1573 = vadd.f32 %v1571, %v1572
    %v1574 = vtanh.pop %v1573
    %v1575 = vmul.f32 %v1569, %v1574
    %1576 = vmatpush.msra.mxu0 %v810
    %1577 = vmatpush.msra.mxu0 %v806
    %1578 = vmatpush.msra.mxu0 %v802
    %1579 = vmatpush.msra.mxu0 %v798
    %1580 = vmatpush.msra.mxu0 %v794
    %1581 = vmatpush.msra.mxu0 %v790
    %1582 = vmatpush.msra.mxu0 %v786
    %1583 = vmatpush.msra.mxu0 %v782
    %1584 = vmatpush.msra.mxu0 %v778
    %1585 = vmatpush.msra.mxu0 %v774
    %1586 = vmatpush.msra.mxu0 %v770
    %1587 = vmatpush.msra.mxu0 %v766
    %1588 = vmatpush.msra.mxu0 %v762
    %1589 = vmatpush.msra.mxu0 %v758
    %1590 = vmatpush.msra.mxu0 %v754
    %1591 = vmatpush.msra.mxu0 %v750
    %1592 = vmatmul.f32.gmra.mxu0 %v1575
    %v1593 = vpop.f32.mrf.mxu0
    %v1594 = vadd.f32 0.0, %v1593
    %1595 = vdwg.mxu0
    %1596 = vmatpush.msra.mxu0 %v811
    %1597 = vmatpush.msra.mxu0 %v807
    %1598 = vmatpush.msra.mxu0 %v803
    %1599 = vmatpush.msra.mxu0 %v799
    %1600 = vmatpush.msra.mxu0 %v795
    %1601 = vmatpush.msra.mxu0 %v791
    %1602 = vmatpush.msra.mxu0 %v787
    %1603 = vmatpush.msra.mxu0 %v783
    %1604 = vmatpush.msra.mxu0 %v779
    %1605 = vmatpush.msra.mxu0 %v775
    %1606 = vmatpush.msra.mxu0 %v771
    %1607 = vmatpush.msra.mxu0 %v767
    %1608 = vmatpush.msra.mxu0 %v763
    %1609 = vmatpush.msra.mxu0 %v759
    %1610 = vmatpush.msra.mxu0 %v755
    %1611 = vmatpush.msra.mxu0 %v751
    %1612 = vmatmul.f32.gmra.mxu0 %v1575
    %v1613 = vpop.f32.mrf.mxu0
    %v1614 = vadd.f32 0.0, %v1613
    %1615 = vdwg.mxu0
    %1616 = vmatpush.msra.mxu0 %v812
    %1617 = vmatpush.msra.mxu0 %v808
    %1618 = vmatpush.msra.mxu0 %v804
    %1619 = vmatpush.msra.mxu0 %v800
    %1620 = vmatpush.msra.mxu0 %v796
    %1621 = vmatpush.msra.mxu0 %v792
    %1622 = vmatpush.msra.mxu0 %v788
    %1623 = vmatpush.msra.mxu0 %v784
    %1624 = vmatpush.msra.mxu0 %v780
    %1625 = vmatpush.msra.mxu0 %v776
    %1626 = vmatpush.msra.mxu0 %v772
    %1627 = vmatpush.msra.mxu0 %v768
    %1628 = vmatpush.msra.mxu0 %v764
    %1629 = vmatpush.msra.mxu0 %v760
    %1630 = vmatpush.msra.mxu0 %v756
    %1631 = vmatpush.msra.mxu0 %v752
    %1632 = vmatmul.f32.gmra.mxu0 %v1575
    %v1633 = vpop.f32.mrf.mxu0
    %v1634 = vadd.f32 0.0, %v1633
    %1635 = vdwg.mxu0
    %1636 = vmatpush.msra.mxu0 %v813
    %1637 = vmatpush.msra.mxu0 %v809
    %1638 = vmatpush.msra.mxu0 %v805
    %1639 = vmatpush.msra.mxu0 %v801
    %1640 = vmatpush.msra.mxu0 %v797
    %1641 = vmatpush.msra.mxu0 %v793
    %1642 = vmatpush.msra.mxu0 %v789
    %1643 = vmatpush.msra.mxu0 %v785
    %1644 = vmatpush.msra.mxu0 %v781
    %1645 = vmatpush.msra.mxu0 %v777
    %1646 = vmatpush.msra.mxu0 %v773
    %1647 = vmatpush.msra.mxu0 %v769
    %1648 = vmatpush.msra.mxu0 %v765
    %1649 = vmatpush.msra.mxu0 %v761
    %1650 = vmatpush.msra.mxu0 %v757
    %1651 = vmatpush.msra.mxu0 %v753
    %1652 = vmatmul.f32.gmra.mxu0 %v1575
    %v1653 = vpop.f32.mrf.mxu0
    %v1654 = vadd.f32 0.0, %v1653
    %1655 = vdwg.mxu0
    %v1656 = vadd.f32 %v1360, %v1594
    %v1657 = vadd.f32 %v1380, %v1614
    %v1658 = vadd.f32 %v1400, %v1634
    %v1659 = vadd.f32 %v1420, %v1654
    %v1660 = vxor.u32 %v1656, 2147483648
    %v1661 = vxor.u32 %v1657, 2147483648
    %v1662 = vxor.u32 %v1658, 2147483648
    %v1663 = vmul.f32 %v1660, 1.442695
    %v1664 = vpow.pop %v1663
    %v1665 = vmul.f32 %v1661, 1.442695
    %v1666 = vpow.pop %v1665
    %v1667 = vmul.f32 %v1662, 1.442695
    %v1668 = vpow.pop %v1667
    %v1669 = vadd.f32 %v1664, 1.0
    %v1670 = vadd.f32 %v1666, 1.0
    %v1671 = vadd.f32 %v1668, 1.0
    %v1672 = vrcp.pop %v1669
    %v1673 = vmul.f32 %v1669, %v1672
    %v1674 = vsub.f32 1.0, %v1673
    %v1675 = vmul.f32 %v1672, %v1674
    %v1676 = vadd.f32 %v1672, %v1675
    %vm1677 = vweird.f32 %v1669
    %vm1678 = vweird.f32 %v1672
    %vm1679 = vmor %vm1677, %vm1678
    %v1680 = vsel %vm1679, %v1672, %v1676
    %v1681 = vand.u32 2147483647, %v1669
    %vm1682 = vcmp.eq.f32.partialorder %v1681, 8.507059e+37
    %v1683 = vand.u32 %v1669, 2147483648
    %v1684 = vor.u32 1.1754944e-38, %v1683
    %v1685 = vsel %vm1682, %v1684, %v1680
    %v1686 = vmul.f32 1.0, %v1685
    %v1687 = vrcp.pop %v1670
    %v1688 = vmul.f32 %v1670, %v1687
    %v1689 = vsub.f32 1.0, %v1688
    %v1690 = vmul.f32 %v1687, %v1689
    %v1691 = vadd.f32 %v1687, %v1690
    %vm1692 = vweird.f32 %v1670
    %vm1693 = vweird.f32 %v1687
    %vm1694 = vmor %vm1692, %vm1693
    %v1695 = vsel %vm1694, %v1687, %v1691
    %v1696 = vand.u32 2147483647, %v1670
    %vm1697 = vcmp.eq.f32.partialorder %v1696, 8.507059e+37
    %v1698 = vand.u32 %v1670, 2147483648
    %v1699 = vor.u32 1.1754944e-38, %v1698
    %v1700 = vsel %vm1697, %v1699, %v1695
    %v1701 = vmul.f32 1.0, %v1700
    %v1702 = vrcp.pop %v1671
    %v1703 = vmul.f32 %v1671, %v1702
    %v1704 = vsub.f32 1.0, %v1703
    %v1705 = vmul.f32 %v1702, %v1704
    %v1706 = vadd.f32 %v1702, %v1705
    %vm1707 = vweird.f32 %v1671
    %vm1708 = vweird.f32 %v1702
    %vm1709 = vmor %vm1707, %vm1708
    %v1710 = vsel %vm1709, %v1702, %v1706
    %v1711 = vand.u32 2147483647, %v1671
    %vm1712 = vcmp.eq.f32.partialorder %v1711, 8.507059e+37
    %v1713 = vand.u32 %v1671, 2147483648
    %v1714 = vor.u32 1.1754944e-38, %v1713
    %v1715 = vsel %vm1712, %v1714, %v1710
    %v1716 = vmul.f32 1.0, %v1715
    %v1717 = vtanh.pop %v1659
    %v1718 = vmul.f32 %v1701, %v1339
    %v1719 = vmul.f32 %v1686, %v1717
    %v1720 = vadd.f32 %v1718, %v1719
    %v1721 = vtanh.pop %v1720
    %v1722 = vmul.f32 %v1716, %v1721
    %1723 = vmatpush.msra.mxu0 %v438
    %1724 = vmatpush.msra.mxu0 %v434
    %1725 = vmatpush.msra.mxu0 %v430
    %1726 = vmatpush.msra.mxu0 %v426
    %1727 = vmatpush.msra.mxu0 %v422
    %1728 = vmatpush.msra.mxu0 %v418
    %1729 = vmatpush.msra.mxu0 %v414
    %1730 = vmatpush.msra.mxu0 %v410
    %1731 = vmatpush.msra.mxu0 %v406
    %1732 = vmatpush.msra.mxu0 %v402
    %1733 = vmatpush.msra.mxu0 %v398
    %1734 = vmatpush.msra.mxu0 %v394
    %1735 = vmatpush.msra.mxu0 %v390
    %1736 = vmatpush.msra.mxu0 %v386
    %1737 = vmatpush.msra.mxu0 %v382
    %1738 = vmatpush.msra.mxu0 %v378
    %1739 = vmatmul.f32.gmra.mxu0 %v1722
    %v1740 = vpop.f32.mrf.mxu0
    %v1741 = vadd.f32 %v444, %v1740
    %1742 = vdwg.mxu0
    %1743 = vmatpush.msra.mxu0 %v439
    %1744 = vmatpush.msra.mxu0 %v435
    %1745 = vmatpush.msra.mxu0 %v431
    %1746 = vmatpush.msra.mxu0 %v427
    %1747 = vmatpush.msra.mxu0 %v423
    %1748 = vmatpush.msra.mxu0 %v419
    %1749 = vmatpush.msra.mxu0 %v415
    %1750 = vmatpush.msra.mxu0 %v411
    %1751 = vmatpush.msra.mxu0 %v407
    %1752 = vmatpush.msra.mxu0 %v403
    %1753 = vmatpush.msra.mxu0 %v399
    %1754 = vmatpush.msra.mxu0 %v395
    %1755 = vmatpush.msra.mxu0 %v391
    %1756 = vmatpush.msra.mxu0 %v387
    %1757 = vmatpush.msra.mxu0 %v383
    %1758 = vmatpush.msra.mxu0 %v379
    %1759 = vmatmul.f32.gmra.mxu0 %v1722
    %v1760 = vpop.f32.mrf.mxu0
    %v1761 = vadd.f32 %v445, %v1760
    %1762 = vdwg.mxu0
    %1763 = vmatpush.msra.mxu0 %v440
    %1764 = vmatpush.msra.mxu0 %v436
    %1765 = vmatpush.msra.mxu0 %v432
    %1766 = vmatpush.msra.mxu0 %v428
    %1767 = vmatpush.msra.mxu0 %v424
    %1768 = vmatpush.msra.mxu0 %v420
    %1769 = vmatpush.msra.mxu0 %v416
    %1770 = vmatpush.msra.mxu0 %v412
    %1771 = vmatpush.msra.mxu0 %v408
    %1772 = vmatpush.msra.mxu0 %v404
    %1773 = vmatpush.msra.mxu0 %v400
    %1774 = vmatpush.msra.mxu0 %v396
    %1775 = vmatpush.msra.mxu0 %v392
    %1776 = vmatpush.msra.mxu0 %v388
    %1777 = vmatpush.msra.mxu0 %v384
    %1778 = vmatpush.msra.mxu0 %v380
    %1779 = vmatmul.f32.gmra.mxu0 %v1722
    %v1780 = vpop.f32.mrf.mxu0
    %v1781 = vadd.f32 %v446, %v1780
    %1782 = vdwg.mxu0
    %1783 = vmatpush.msra.mxu0 %v441
    %1784 = vmatpush.msra.mxu0 %v437
    %1785 = vmatpush.msra.mxu0 %v433
    %1786 = vmatpush.msra.mxu0 %v429
    %1787 = vmatpush.msra.mxu0 %v425
    %1788 = vmatpush.msra.mxu0 %v421
    %1789 = vmatpush.msra.mxu0 %v417
    %1790 = vmatpush.msra.mxu0 %v413
    %1791 = vmatpush.msra.mxu0 %v409
    %1792 = vmatpush.msra.mxu0 %v405
    %1793 = vmatpush.msra.mxu0 %v401
    %1794 = vmatpush.msra.mxu0 %v397
    %1795 = vmatpush.msra.mxu0 %v393
    %1796 = vmatpush.msra.mxu0 %v389
    %1797 = vmatpush.msra.mxu0 %v385
    %1798 = vmatpush.msra.mxu0 %v381
    %1799 = vmatmul.f32.gmra.mxu0 %v1722
    %v1800 = vpop.f32.mrf.mxu0
    %v1801 = vadd.f32 %v447, %v1800
    %1802 = vdwg.mxu0
    %s1803 = smul.u32 3, 4
    %s1804 = smul.addr %s1803, 8
    %s1805 = scalar_lea.vmem [#allocation2], %s1804
    %v1806 = vld [vmem:[%s1805] sm:$0xff]
    %v1807 = vld [vmem:[%s1805 + $0x8] sm:$0xff]
    %v1808 = vld [vmem:[%s1805 + $0x10] sm:$0xff]
    %v1809 = vld [vmem:[%s1805 + $0x18] sm:$0xff]
    %1810 = vmatpush.msra.mxu0 %v599
    %1811 = vmatpush.msra.mxu0 %v595
    %1812 = vmatpush.msra.mxu0 %v591
    %1813 = vmatpush.msra.mxu0 %v587
    %1814 = vmatpush.msra.mxu0 %v583
    %1815 = vmatpush.msra.mxu0 %v579
    %1816 = vmatpush.msra.mxu0 %v575
    %1817 = vmatpush.msra.mxu0 %v571
    %1818 = vmatpush.msra.mxu0 %v567
    %1819 = vmatpush.msra.mxu0 %v563
    %1820 = vmatpush.msra.mxu0 %v559
    %1821 = vmatpush.msra.mxu0 %v555
    %1822 = vmatpush.msra.mxu0 %v551
    %1823 = vmatpush.msra.mxu0 %v547
    %1824 = vmatpush.msra.mxu0 %v543
    %1825 = vmatpush.msra.mxu0 %v539
    %1826 = vmatmul.f32.gmra.mxu0 %v1575
    %v1827 = vpop.f32.mrf.mxu0
    %v1828 = vadd.f32 0.0, %v1827
    %1829 = vdwg.mxu0
    %1830 = vmatpush.msra.mxu0 %v600
    %1831 = vmatpush.msra.mxu0 %v596
    %1832 = vmatpush.msra.mxu0 %v592
    %1833 = vmatpush.msra.mxu0 %v588
    %1834 = vmatpush.msra.mxu0 %v584
    %1835 = vmatpush.msra.mxu0 %v580
    %1836 = vmatpush.msra.mxu0 %v576
    %1837 = vmatpush.msra.mxu0 %v572
    %1838 = vmatpush.msra.mxu0 %v568
    %1839 = vmatpush.msra.mxu0 %v564
    %1840 = vmatpush.msra.mxu0 %v560
    %1841 = vmatpush.msra.mxu0 %v556
    %1842 = vmatpush.msra.mxu0 %v552
    %1843 = vmatpush.msra.mxu0 %v548
    %1844 = vmatpush.msra.mxu0 %v544
    %1845 = vmatpush.msra.mxu0 %v540
    %1846 = vmatmul.f32.gmra.mxu0 %v1575
    %v1847 = vpop.f32.mrf.mxu0
    %v1848 = vadd.f32 0.0, %v1847
    %1849 = vdwg.mxu0
    %1850 = vmatpush.msra.mxu0 %v601
    %1851 = vmatpush.msra.mxu0 %v597
    %1852 = vmatpush.msra.mxu0 %v593
    %1853 = vmatpush.msra.mxu0 %v589
    %1854 = vmatpush.msra.mxu0 %v585
    %1855 = vmatpush.msra.mxu0 %v581
    %1856 = vmatpush.msra.mxu0 %v577
    %1857 = vmatpush.msra.mxu0 %v573
    %1858 = vmatpush.msra.mxu0 %v569
    %1859 = vmatpush.msra.mxu0 %v565
    %1860 = vmatpush.msra.mxu0 %v561
    %1861 = vmatpush.msra.mxu0 %v557
    %1862 = vmatpush.msra.mxu0 %v553
    %1863 = vmatpush.msra.mxu0 %v549
    %1864 = vmatpush.msra.mxu0 %v545
    %1865 = vmatpush.msra.mxu0 %v541
    %1866 = vmatmul.f32.gmra.mxu0 %v1575
    %v1867 = vpop.f32.mrf.mxu0
    %v1868 = vadd.f32 0.0, %v1867
    %1869 = vdwg.mxu0
    %1870 = vmatpush.msra.mxu0 %v602
    %1871 = vmatpush.msra.mxu0 %v598
    %1872 = vmatpush.msra.mxu0 %v594
    %1873 = vmatpush.msra.mxu0 %v590
    %1874 = vmatpush.msra.mxu0 %v586
    %1875 = vmatpush.msra.mxu0 %v582
    %1876 = vmatpush.msra.mxu0 %v578
    %1877 = vmatpush.msra.mxu0 %v574
    %1878 = vmatpush.msra.mxu0 %v570
    %1879 = vmatpush.msra.mxu0 %v566
    %1880 = vmatpush.msra.mxu0 %v562
    %1881 = vmatpush.msra.mxu0 %v558
    %1882 = vmatpush.msra.mxu0 %v554
    %1883 = vmatpush.msra.mxu0 %v550
    %1884 = vmatpush.msra.mxu0 %v546
    %1885 = vmatpush.msra.mxu0 %v542
    %1886 = vmatmul.f32.gmra.mxu0 %v1575
    %v1887 = vpop.f32.mrf.mxu0
    %v1888 = vadd.f32 0.0, %v1887
    %1889 = vdwg.mxu0
    %v1890 = vadd.f32 %v1806, %v1828
    %v1891 = vadd.f32 %v1807, %v1848
    %v1892 = vadd.f32 %v1808, %v1868
    %v1893 = vadd.f32 %v1809, %v1888
    %v1894 = vxor.u32 %v1890, 2147483648
    %v1895 = vxor.u32 %v1891, 2147483648
    %v1896 = vxor.u32 %v1892, 2147483648
    %v1897 = vmul.f32 %v1894, 1.442695
    %v1898 = vpow.pop %v1897
    %v1899 = vmul.f32 %v1895, 1.442695
    %v1900 = vpow.pop %v1899
    %v1901 = vmul.f32 %v1896, 1.442695
    %v1902 = vpow.pop %v1901
    %v1903 = vadd.f32 %v1898, 1.0
    %v1904 = vadd.f32 %v1900, 1.0
    %v1905 = vadd.f32 %v1902, 1.0
    %v1906 = vrcp.pop %v1903
    %v1907 = vmul.f32 %v1903, %v1906
    %v1908 = vsub.f32 1.0, %v1907
    %v1909 = vmul.f32 %v1906, %v1908
    %v1910 = vadd.f32 %v1906, %v1909
    %vm1911 = vweird.f32 %v1903
    %vm1912 = vweird.f32 %v1906
    %vm1913 = vmor %vm1911, %vm1912
    %v1914 = vsel %vm1913, %v1906, %v1910
    %v1915 = vand.u32 2147483647, %v1903
    %vm1916 = vcmp.eq.f32.partialorder %v1915, 8.507059e+37
    %v1917 = vand.u32 %v1903, 2147483648
    %v1918 = vor.u32 1.1754944e-38, %v1917
    %v1919 = vsel %vm1916, %v1918, %v1914
    %v1920 = vmul.f32 1.0, %v1919
    %v1921 = vrcp.pop %v1904
    %v1922 = vmul.f32 %v1904, %v1921
    %v1923 = vsub.f32 1.0, %v1922
    %v1924 = vmul.f32 %v1921, %v1923
    %v1925 = vadd.f32 %v1921, %v1924
    %vm1926 = vweird.f32 %v1904
    %vm1927 = vweird.f32 %v1921
    %vm1928 = vmor %vm1926, %vm1927
    %v1929 = vsel %vm1928, %v1921, %v1925
    %v1930 = vand.u32 2147483647, %v1904
    %vm1931 = vcmp.eq.f32.partialorder %v1930, 8.507059e+37
    %v1932 = vand.u32 %v1904, 2147483648
    %v1933 = vor.u32 1.1754944e-38, %v1932
    %v1934 = vsel %vm1931, %v1933, %v1929
    %v1935 = vmul.f32 1.0, %v1934
    %v1936 = vrcp.pop %v1905
    %v1937 = vmul.f32 %v1905, %v1936
    %v1938 = vsub.f32 1.0, %v1937
    %v1939 = vmul.f32 %v1936, %v1938
    %v1940 = vadd.f32 %v1936, %v1939
    %vm1941 = vweird.f32 %v1905
    %vm1942 = vweird.f32 %v1936
    %vm1943 = vmor %vm1941, %vm1942
    %v1944 = vsel %vm1943, %v1936, %v1940
    %v1945 = vand.u32 2147483647, %v1905
    %vm1946 = vcmp.eq.f32.partialorder %v1945, 8.507059e+37
    %v1947 = vand.u32 %v1905, 2147483648
    %v1948 = vor.u32 1.1754944e-38, %v1947
    %v1949 = vsel %vm1946, %v1948, %v1944
    %v1950 = vmul.f32 1.0, %v1949
    %v1951 = vtanh.pop %v1893
    %v1952 = vmul.f32 %v1935, %v1573
    %v1953 = vmul.f32 %v1920, %v1951
    %v1954 = vadd.f32 %v1952, %v1953
    %v1955 = vtanh.pop %v1954
    %v1956 = vmul.f32 %v1950, %v1955
    %1957 = vmatpush.msra.mxu0 %v810
    %1958 = vmatpush.msra.mxu0 %v806
    %1959 = vmatpush.msra.mxu0 %v802
    %1960 = vmatpush.msra.mxu0 %v798
    %1961 = vmatpush.msra.mxu0 %v794
    %1962 = vmatpush.msra.mxu0 %v790
    %1963 = vmatpush.msra.mxu0 %v786
    %1964 = vmatpush.msra.mxu0 %v782
    %1965 = vmatpush.msra.mxu0 %v778
    %1966 = vmatpush.msra.mxu0 %v774
    %1967 = vmatpush.msra.mxu0 %v770
    %1968 = vmatpush.msra.mxu0 %v766
    %1969 = vmatpush.msra.mxu0 %v762
    %1970 = vmatpush.msra.mxu0 %v758
    %1971 = vmatpush.msra.mxu0 %v754
    %1972 = vmatpush.msra.mxu0 %v750
    %1973 = vmatmul.f32.gmra.mxu0 %v1956
    %v1974 = vpop.f32.mrf.mxu0
    %v1975 = vadd.f32 0.0, %v1974
    %1976 = vdwg.mxu0
    %1977 = vmatpush.msra.mxu0 %v811
    %1978 = vmatpush.msra.mxu0 %v807
    %1979 = vmatpush.msra.mxu0 %v803
    %1980 = vmatpush.msra.mxu0 %v799
    %1981 = vmatpush.msra.mxu0 %v795
    %1982 = vmatpush.msra.mxu0 %v791
    %1983 = vmatpush.msra.mxu0 %v787
    %1984 = vmatpush.msra.mxu0 %v783
    %1985 = vmatpush.msra.mxu0 %v779
    %1986 = vmatpush.msra.mxu0 %v775
    %1987 = vmatpush.msra.mxu0 %v771
    %1988 = vmatpush.msra.mxu0 %v767
    %1989 = vmatpush.msra.mxu0 %v763
    %1990 = vmatpush.msra.mxu0 %v759
    %1991 = vmatpush.msra.mxu0 %v755
    %1992 = vmatpush.msra.mxu0 %v751
    %1993 = vmatmul.f32.gmra.mxu0 %v1956
    %v1994 = vpop.f32.mrf.mxu0
    %v1995 = vadd.f32 0.0, %v1994
    %1996 = vdwg.mxu0
    %1997 = vmatpush.msra.mxu0 %v812
    %1998 = vmatpush.msra.mxu0 %v808
    %1999 = vmatpush.msra.mxu0 %v804
    %2000 = vmatpush.msra.mxu0 %v800
    %2001 = vmatpush.msra.mxu0 %v796
    %2002 = vmatpush.msra.mxu0 %v792
    %2003 = vmatpush.msra.mxu0 %v788
    %2004 = vmatpush.msra.mxu0 %v784
    %2005 = vmatpush.msra.mxu0 %v780
    %2006 = vmatpush.msra.mxu0 %v776
    %2007 = vmatpush.msra.mxu0 %v772
    %2008 = vmatpush.msra.mxu0 %v768
    %2009 = vmatpush.msra.mxu0 %v764
    %2010 = vmatpush.msra.mxu0 %v760
    %2011 = vmatpush.msra.mxu0 %v756
    %2012 = vmatpush.msra.mxu0 %v752
    %2013 = vmatmul.f32.gmra.mxu0 %v1956
    %v2014 = vpop.f32.mrf.mxu0
    %v2015 = vadd.f32 0.0, %v2014
    %2016 = vdwg.mxu0
    %2017 = vmatpush.msra.mxu0 %v813
    %2018 = vmatpush.msra.mxu0 %v809
    %2019 = vmatpush.msra.mxu0 %v805
    %2020 = vmatpush.msra.mxu0 %v801
    %2021 = vmatpush.msra.mxu0 %v797
    %2022 = vmatpush.msra.mxu0 %v793
    %2023 = vmatpush.msra.mxu0 %v789
    %2024 = vmatpush.msra.mxu0 %v785
    %2025 = vmatpush.msra.mxu0 %v781
    %2026 = vmatpush.msra.mxu0 %v777
    %2027 = vmatpush.msra.mxu0 %v773
    %2028 = vmatpush.msra.mxu0 %v769
    %2029 = vmatpush.msra.mxu0 %v765
    %2030 = vmatpush.msra.mxu0 %v761
    %2031 = vmatpush.msra.mxu0 %v757
    %2032 = vmatpush.msra.mxu0 %v753
    %2033 = vmatmul.f32.gmra.mxu0 %v1956
    %v2034 = vpop.f32.mrf.mxu0
    %v2035 = vadd.f32 0.0, %v2034
    %2036 = vdwg.mxu0
    %v2037 = vadd.f32 %v1741, %v1975
    %v2038 = vadd.f32 %v1761, %v1995
    %v2039 = vadd.f32 %v1781, %v2015
    %v2040 = vadd.f32 %v1801, %v2035
    %v2041 = vxor.u32 %v2037, 2147483648
    %v2042 = vxor.u32 %v2038, 2147483648
    %v2043 = vxor.u32 %v2039, 2147483648
    %v2044 = vmul.f32 %v2041, 1.442695
    %v2045 = vpow.pop %v2044
    %v2046 = vmul.f32 %v2042, 1.442695
    %v2047 = vpow.pop %v2046
    %v2048 = vmul.f32 %v2043, 1.442695
    %v2049 = vpow.pop %v2048
    %v2050 = vadd.f32 %v2045, 1.0
    %v2051 = vadd.f32 %v2047, 1.0
    %v2052 = vadd.f32 %v2049, 1.0
    %v2053 = vrcp.pop %v2050
    %v2054 = vmul.f32 %v2050, %v2053
    %v2055 = vsub.f32 1.0, %v2054
    %v2056 = vmul.f32 %v2053, %v2055
    %v2057 = vadd.f32 %v2053, %v2056
    %vm2058 = vweird.f32 %v2050
    %vm2059 = vweird.f32 %v2053
    %vm2060 = vmor %vm2058, %vm2059
    %v2061 = vsel %vm2060, %v2053, %v2057
    %v2062 = vand.u32 2147483647, %v2050
    %vm2063 = vcmp.eq.f32.partialorder %v2062, 8.507059e+37
    %v2064 = vand.u32 %v2050, 2147483648
    %v2065 = vor.u32 1.1754944e-38, %v2064
    %v2066 = vsel %vm2063, %v2065, %v2061
    %v2067 = vmul.f32 1.0, %v2066
    %v2068 = vrcp.pop %v2051
    %v2069 = vmul.f32 %v2051, %v2068
    %v2070 = vsub.f32 1.0, %v2069
    %v2071 = vmul.f32 %v2068, %v2070
    %v2072 = vadd.f32 %v2068, %v2071
    %vm2073 = vweird.f32 %v2051
    %vm2074 = vweird.f32 %v2068
    %vm2075 = vmor %vm2073, %vm2074
    %v2076 = vsel %vm2075, %v2068, %v2072
    %v2077 = vand.u32 2147483647, %v2051
    %vm2078 = vcmp.eq.f32.partialorder %v2077, 8.507059e+37
    %v2079 = vand.u32 %v2051, 2147483648
    %v2080 = vor.u32 1.1754944e-38, %v2079
    %v2081 = vsel %vm2078, %v2080, %v2076
    %v2082 = vmul.f32 1.0, %v2081
    %v2083 = vrcp.pop %v2052
    %v2084 = vmul.f32 %v2052, %v2083
    %v2085 = vsub.f32 1.0, %v2084
    %v2086 = vmul.f32 %v2083, %v2085
    %v2087 = vadd.f32 %v2083, %v2086
    %vm2088 = vweird.f32 %v2052
    %vm2089 = vweird.f32 %v2083
    %vm2090 = vmor %vm2088, %vm2089
    %v2091 = vsel %vm2090, %v2083, %v2087
    %v2092 = vand.u32 2147483647, %v2052
    %vm2093 = vcmp.eq.f32.partialorder %v2092, 8.507059e+37
    %v2094 = vand.u32 %v2052, 2147483648
    %v2095 = vor.u32 1.1754944e-38, %v2094
    %v2096 = vsel %vm2093, %v2095, %v2091
    %v2097 = vmul.f32 1.0, %v2096
    %v2098 = vtanh.pop %v2040
    %v2099 = vmul.f32 %v2082, %v1720
    %v2100 = vmul.f32 %v2067, %v2098
    %v2101 = vadd.f32 %v2099, %v2100
    %v2102 = vtanh.pop %v2101
    %v2103 = vmul.f32 %v2097, %v2102
    %2104 = vmatpush.msra.mxu0 %v438
    %2105 = vmatpush.msra.mxu0 %v434
    %2106 = vmatpush.msra.mxu0 %v430
    %2107 = vmatpush.msra.mxu0 %v426
    %2108 = vmatpush.msra.mxu0 %v422
    %2109 = vmatpush.msra.mxu0 %v418
    %2110 = vmatpush.msra.mxu0 %v414
    %2111 = vmatpush.msra.mxu0 %v410
    %2112 = vmatpush.msra.mxu0 %v406
    %2113 = vmatpush.msra.mxu0 %v402
    %2114 = vmatpush.msra.mxu0 %v398
    %2115 = vmatpush.msra.mxu0 %v394
    %2116 = vmatpush.msra.mxu0 %v390
    %2117 = vmatpush.msra.mxu0 %v386
    %2118 = vmatpush.msra.mxu0 %v382
    %2119 = vmatpush.msra.mxu0 %v378
    %2120 = vmatmul.f32.gmra.mxu0 %v2103
    %v2121 = vpop.f32.mrf.mxu0
    %v2122 = vadd.f32 %v444, %v2121
    %2123 = vdwg.mxu0
    %2124 = vmatpush.msra.mxu0 %v439
    %2125 = vmatpush.msra.mxu0 %v435
    %2126 = vmatpush.msra.mxu0 %v431
    %2127 = vmatpush.msra.mxu0 %v427
    %2128 = vmatpush.msra.mxu0 %v423
    %2129 = vmatpush.msra.mxu0 %v419
    %2130 = vmatpush.msra.mxu0 %v415
    %2131 = vmatpush.msra.mxu0 %v411
    %2132 = vmatpush.msra.mxu0 %v407
    %2133 = vmatpush.msra.mxu0 %v403
    %2134 = vmatpush.msra.mxu0 %v399
    %2135 = vmatpush.msra.mxu0 %v395
    %2136 = vmatpush.msra.mxu0 %v391
    %2137 = vmatpush.msra.mxu0 %v387
    %2138 = vmatpush.msra.mxu0 %v383
    %2139 = vmatpush.msra.mxu0 %v379
    %2140 = vmatmul.f32.gmra.mxu0 %v2103
    %v2141 = vpop.f32.mrf.mxu0
    %v2142 = vadd.f32 %v445, %v2141
    %2143 = vdwg.mxu0
    %2144 = vmatpush.msra.mxu0 %v440
    %2145 = vmatpush.msra.mxu0 %v436
    %2146 = vmatpush.msra.mxu0 %v432
    %2147 = vmatpush.msra.mxu0 %v428
    %2148 = vmatpush.msra.mxu0 %v424
    %2149 = vmatpush.msra.mxu0 %v420
    %2150 = vmatpush.msra.mxu0 %v416
    %2151 = vmatpush.msra.mxu0 %v412
    %2152 = vmatpush.msra.mxu0 %v408
    %2153 = vmatpush.msra.mxu0 %v404
    %2154 = vmatpush.msra.mxu0 %v400
    %2155 = vmatpush.msra.mxu0 %v396
    %2156 = vmatpush.msra.mxu0 %v392
    %2157 = vmatpush.msra.mxu0 %v388
    %2158 = vmatpush.msra.mxu0 %v384
    %2159 = vmatpush.msra.mxu0 %v380
    %2160 = vmatmul.f32.gmra.mxu0 %v2103
    %v2161 = vpop.f32.mrf.mxu0
    %v2162 = vadd.f32 %v446, %v2161
    %2163 = vdwg.mxu0
    %2164 = vmatpush.msra.mxu0 %v441
    %2165 = vmatpush.msra.mxu0 %v437
    %2166 = vmatpush.msra.mxu0 %v433
    %2167 = vmatpush.msra.mxu0 %v429
    %2168 = vmatpush.msra.mxu0 %v425
    %2169 = vmatpush.msra.mxu0 %v421
    %2170 = vmatpush.msra.mxu0 %v417
    %2171 = vmatpush.msra.mxu0 %v413
    %2172 = vmatpush.msra.mxu0 %v409
    %2173 = vmatpush.msra.mxu0 %v405
    %2174 = vmatpush.msra.mxu0 %v401
    %2175 = vmatpush.msra.mxu0 %v397
    %2176 = vmatpush.msra.mxu0 %v393
    %2177 = vmatpush.msra.mxu0 %v389
    %2178 = vmatpush.msra.mxu0 %v385
    %2179 = vmatpush.msra.mxu0 %v381
    %2180 = vmatmul.f32.gmra.mxu0 %v2103
    %v2181 = vpop.f32.mrf.mxu0
    %v2182 = vadd.f32 %v447, %v2181
    %2183 = vdwg.mxu0
    %s2184 = smul.u32 4, 4
    %s2185 = smul.addr %s2184, 8
    %s2186 = scalar_lea.vmem [#allocation2], %s2185
    %v2187 = vld [vmem:[%s2186] sm:$0xff]
    %v2188 = vld [vmem:[%s2186 + $0x8] sm:$0xff]
    %v2189 = vld [vmem:[%s2186 + $0x10] sm:$0xff]
    %v2190 = vld [vmem:[%s2186 + $0x18] sm:$0xff]
    %2191 = vmatpush.msra.mxu0 %v599
    %2192 = vmatpush.msra.mxu0 %v595
    %2193 = vmatpush.msra.mxu0 %v591
    %2194 = vmatpush.msra.mxu0 %v587
    %2195 = vmatpush.msra.mxu0 %v583
    %2196 = vmatpush.msra.mxu0 %v579
    %2197 = vmatpush.msra.mxu0 %v575
    %2198 = vmatpush.msra.mxu0 %v571
    %2199 = vmatpush.msra.mxu0 %v567
    %2200 = vmatpush.msra.mxu0 %v563
    %2201 = vmatpush.msra.mxu0 %v559
    %2202 = vmatpush.msra.mxu0 %v555
    %2203 = vmatpush.msra.mxu0 %v551
    %2204 = vmatpush.msra.mxu0 %v547
    %2205 = vmatpush.msra.mxu0 %v543
    %2206 = vmatpush.msra.mxu0 %v539
    %2207 = vmatmul.f32.gmra.mxu0 %v1956
    %v2208 = vpop.f32.mrf.mxu0
    %v2209 = vadd.f32 0.0, %v2208
    %2210 = vdwg.mxu0
    %2211 = vmatpush.msra.mxu0 %v600
    %2212 = vmatpush.msra.mxu0 %v596
    %2213 = vmatpush.msra.mxu0 %v592
    %2214 = vmatpush.msra.mxu0 %v588
    %2215 = vmatpush.msra.mxu0 %v584
    %2216 = vmatpush.msra.mxu0 %v580
    %2217 = vmatpush.msra.mxu0 %v576
    %2218 = vmatpush.msra.mxu0 %v572
    %2219 = vmatpush.msra.mxu0 %v568
    %2220 = vmatpush.msra.mxu0 %v564
    %2221 = vmatpush.msra.mxu0 %v560
    %2222 = vmatpush.msra.mxu0 %v556
    %2223 = vmatpush.msra.mxu0 %v552
    %2224 = vmatpush.msra.mxu0 %v548
    %2225 = vmatpush.msra.mxu0 %v544
    %2226 = vmatpush.msra.mxu0 %v540
    %2227 = vmatmul.f32.gmra.mxu0 %v1956
    %v2228 = vpop.f32.mrf.mxu0
    %v2229 = vadd.f32 0.0, %v2228
    %2230 = vdwg.mxu0
    %2231 = vmatpush.msra.mxu0 %v601
    %2232 = vmatpush.msra.mxu0 %v597
    %2233 = vmatpush.msra.mxu0 %v593
    %2234 = vmatpush.msra.mxu0 %v589
    %2235 = vmatpush.msra.mxu0 %v585
    %2236 = vmatpush.msra.mxu0 %v581
    %2237 = vmatpush.msra.mxu0 %v577
    %2238 = vmatpush.msra.mxu0 %v573
    %2239 = vmatpush.msra.mxu0 %v569
    %2240 = vmatpush.msra.mxu0 %v565
    %2241 = vmatpush.msra.mxu0 %v561
    %2242 = vmatpush.msra.mxu0 %v557
    %2243 = vmatpush.msra.mxu0 %v553
    %2244 = vmatpush.msra.mxu0 %v549
    %2245 = vmatpush.msra.mxu0 %v545
    %2246 = vmatpush.msra.mxu0 %v541
    %2247 = vmatmul.f32.gmra.mxu0 %v1956
    %v2248 = vpop.f32.mrf.mxu0
    %v2249 = vadd.f32 0.0, %v2248
    %2250 = vdwg.mxu0
    %2251 = vmatpush.msra.mxu0 %v602
    %2252 = vmatpush.msra.mxu0 %v598
    %2253 = vmatpush.msra.mxu0 %v594
    %2254 = vmatpush.msra.mxu0 %v590
    %2255 = vmatpush.msra.mxu0 %v586
    %2256 = vmatpush.msra.mxu0 %v582
    %2257 = vmatpush.msra.mxu0 %v578
    %2258 = vmatpush.msra.mxu0 %v574
    %2259 = vmatpush.msra.mxu0 %v570
    %2260 = vmatpush.msra.mxu0 %v566
    %2261 = vmatpush.msra.mxu0 %v562
    %2262 = vmatpush.msra.mxu0 %v558
    %2263 = vmatpush.msra.mxu0 %v554
    %2264 = vmatpush.msra.mxu0 %v550
    %2265 = vmatpush.msra.mxu0 %v546
    %2266 = vmatpush.msra.mxu0 %v542
    %2267 = vmatmul.f32.gmra.mxu0 %v1956
    %v2268 = vpop.f32.mrf.mxu0
    %v2269 = vadd.f32 0.0, %v2268
    %2270 = vdwg.mxu0
    %v2271 = vadd.f32 %v2187, %v2209
    %v2272 = vadd.f32 %v2188, %v2229
    %v2273 = vadd.f32 %v2189, %v2249
    %v2274 = vadd.f32 %v2190, %v2269
    %v2275 = vxor.u32 %v2271, 2147483648
    %v2276 = vxor.u32 %v2272, 2147483648
    %v2277 = vxor.u32 %v2273, 2147483648
    %v2278 = vmul.f32 %v2275, 1.442695
    %v2279 = vpow.pop %v2278
    %v2280 = vmul.f32 %v2276, 1.442695
    %v2281 = vpow.pop %v2280
    %v2282 = vmul.f32 %v2277, 1.442695
    %v2283 = vpow.pop %v2282
    %v2284 = vadd.f32 %v2279, 1.0
    %v2285 = vadd.f32 %v2281, 1.0
    %v2286 = vadd.f32 %v2283, 1.0
    %v2287 = vrcp.pop %v2284
    %v2288 = vmul.f32 %v2284, %v2287
    %v2289 = vsub.f32 1.0, %v2288
    %v2290 = vmul.f32 %v2287, %v2289
    %v2291 = vadd.f32 %v2287, %v2290
    %vm2292 = vweird.f32 %v2284
    %vm2293 = vweird.f32 %v2287
    %vm2294 = vmor %vm2292, %vm2293
    %v2295 = vsel %vm2294, %v2287, %v2291
    %v2296 = vand.u32 2147483647, %v2284
    %vm2297 = vcmp.eq.f32.partialorder %v2296, 8.507059e+37
    %v2298 = vand.u32 %v2284, 2147483648
    %v2299 = vor.u32 1.1754944e-38, %v2298
    %v2300 = vsel %vm2297, %v2299, %v2295
    %v2301 = vmul.f32 1.0, %v2300
    %v2302 = vrcp.pop %v2285
    %v2303 = vmul.f32 %v2285, %v2302
    %v2304 = vsub.f32 1.0, %v2303
    %v2305 = vmul.f32 %v2302, %v2304
    %v2306 = vadd.f32 %v2302, %v2305
    %vm2307 = vweird.f32 %v2285
    %vm2308 = vweird.f32 %v2302
    %vm2309 = vmor %vm2307, %vm2308
    %v2310 = vsel %vm2309, %v2302, %v2306
    %v2311 = vand.u32 2147483647, %v2285
    %vm2312 = vcmp.eq.f32.partialorder %v2311, 8.507059e+37
    %v2313 = vand.u32 %v2285, 2147483648
    %v2314 = vor.u32 1.1754944e-38, %v2313
    %v2315 = vsel %vm2312, %v2314, %v2310
    %v2316 = vmul.f32 1.0, %v2315
    %v2317 = vrcp.pop %v2286
    %v2318 = vmul.f32 %v2286, %v2317
    %v2319 = vsub.f32 1.0, %v2318
    %v2320 = vmul.f32 %v2317, %v2319
    %v2321 = vadd.f32 %v2317, %v2320
    %vm2322 = vweird.f32 %v2286
    %vm2323 = vweird.f32 %v2317
    %vm2324 = vmor %vm2322, %vm2323
    %v2325 = vsel %vm2324, %v2317, %v2321
    %v2326 = vand.u32 2147483647, %v2286
    %vm2327 = vcmp.eq.f32.partialorder %v2326, 8.507059e+37
    %v2328 = vand.u32 %v2286, 2147483648
    %v2329 = vor.u32 1.1754944e-38, %v2328
    %v2330 = vsel %vm2327, %v2329, %v2325
    %v2331 = vmul.f32 1.0, %v2330
    %v2332 = vtanh.pop %v2274
    %v2333 = vmul.f32 %v2316, %v1954
    %v2334 = vmul.f32 %v2301, %v2332
    %v2335 = vadd.f32 %v2333, %v2334
    %v2336 = vtanh.pop %v2335
    %v2337 = vmul.f32 %v2331, %v2336
    %2338 = vmatpush.msra.mxu0 %v810
    %2339 = vmatpush.msra.mxu0 %v806
    %2340 = vmatpush.msra.mxu0 %v802
    %2341 = vmatpush.msra.mxu0 %v798
    %2342 = vmatpush.msra.mxu0 %v794
    %2343 = vmatpush.msra.mxu0 %v790
    %2344 = vmatpush.msra.mxu0 %v786
    %2345 = vmatpush.msra.mxu0 %v782
    %2346 = vmatpush.msra.mxu0 %v778
    %2347 = vmatpush.msra.mxu0 %v774
    %2348 = vmatpush.msra.mxu0 %v770
    %2349 = vmatpush.msra.mxu0 %v766
    %2350 = vmatpush.msra.mxu0 %v762
    %2351 = vmatpush.msra.mxu0 %v758
    %2352 = vmatpush.msra.mxu0 %v754
    %2353 = vmatpush.msra.mxu0 %v750
    %2354 = vmatmul.f32.gmra.mxu0 %v2337
    %v2355 = vpop.f32.mrf.mxu0
    %v2356 = vadd.f32 0.0, %v2355
    %2357 = vdwg.mxu0
    %2358 = vmatpush.msra.mxu0 %v811
    %2359 = vmatpush.msra.mxu0 %v807
    %2360 = vmatpush.msra.mxu0 %v803
    %2361 = vmatpush.msra.mxu0 %v799
    %2362 = vmatpush.msra.mxu0 %v795
    %2363 = vmatpush.msra.mxu0 %v791
    %2364 = vmatpush.msra.mxu0 %v787
    %2365 = vmatpush.msra.mxu0 %v783
    %2366 = vmatpush.msra.mxu0 %v779
    %2367 = vmatpush.msra.mxu0 %v775
    %2368 = vmatpush.msra.mxu0 %v771
    %2369 = vmatpush.msra.mxu0 %v767
    %2370 = vmatpush.msra.mxu0 %v763
    %2371 = vmatpush.msra.mxu0 %v759
    %2372 = vmatpush.msra.mxu0 %v755
    %2373 = vmatpush.msra.mxu0 %v751
    %2374 = vmatmul.f32.gmra.mxu0 %v2337
    %v2375 = vpop.f32.mrf.mxu0
    %v2376 = vadd.f32 0.0, %v2375
    %2377 = vdwg.mxu0
    %2378 = vmatpush.msra.mxu0 %v812
    %2379 = vmatpush.msra.mxu0 %v808
    %2380 = vmatpush.msra.mxu0 %v804
    %2381 = vmatpush.msra.mxu0 %v800
    %2382 = vmatpush.msra.mxu0 %v796
    %2383 = vmatpush.msra.mxu0 %v792
    %2384 = vmatpush.msra.mxu0 %v788
    %2385 = vmatpush.msra.mxu0 %v784
    %2386 = vmatpush.msra.mxu0 %v780
    %2387 = vmatpush.msra.mxu0 %v776
    %2388 = vmatpush.msra.mxu0 %v772
    %2389 = vmatpush.msra.mxu0 %v768
    %2390 = vmatpush.msra.mxu0 %v764
    %2391 = vmatpush.msra.mxu0 %v760
    %2392 = vmatpush.msra.mxu0 %v756
    %2393 = vmatpush.msra.mxu0 %v752
    %2394 = vmatmul.f32.gmra.mxu0 %v2337
    %v2395 = vpop.f32.mrf.mxu0
    %v2396 = vadd.f32 0.0, %v2395
    %2397 = vdwg.mxu0
    %2398 = vmatpush.msra.mxu0 %v813
    %2399 = vmatpush.msra.mxu0 %v809
    %2400 = vmatpush.msra.mxu0 %v805
    %2401 = vmatpush.msra.mxu0 %v801
    %2402 = vmatpush.msra.mxu0 %v797
    %2403 = vmatpush.msra.mxu0 %v793
    %2404 = vmatpush.msra.mxu0 %v789
    %2405 = vmatpush.msra.mxu0 %v785
    %2406 = vmatpush.msra.mxu0 %v781
    %2407 = vmatpush.msra.mxu0 %v777
    %2408 = vmatpush.msra.mxu0 %v773
    %2409 = vmatpush.msra.mxu0 %v769
    %2410 = vmatpush.msra.mxu0 %v765
    %2411 = vmatpush.msra.mxu0 %v761
    %2412 = vmatpush.msra.mxu0 %v757
    %2413 = vmatpush.msra.mxu0 %v753
    %2414 = vmatmul.f32.gmra.mxu0 %v2337
    %v2415 = vpop.f32.mrf.mxu0
    %v2416 = vadd.f32 0.0, %v2415
    %2417 = vdwg.mxu0
    %v2418 = vadd.f32 %v2122, %v2356
    %v2419 = vadd.f32 %v2142, %v2376
    %v2420 = vadd.f32 %v2162, %v2396
    %v2421 = vadd.f32 %v2182, %v2416
    %v2422 = vxor.u32 %v2418, 2147483648
    %v2423 = vxor.u32 %v2419, 2147483648
    %v2424 = vxor.u32 %v2420, 2147483648
    %v2425 = vmul.f32 %v2422, 1.442695
    %v2426 = vpow.pop %v2425
    %v2427 = vmul.f32 %v2423, 1.442695
    %v2428 = vpow.pop %v2427
    %v2429 = vmul.f32 %v2424, 1.442695
    %v2430 = vpow.pop %v2429
    %v2431 = vadd.f32 %v2426, 1.0
    %v2432 = vadd.f32 %v2428, 1.0
    %v2433 = vadd.f32 %v2430, 1.0
    %v2434 = vrcp.pop %v2431
    %v2435 = vmul.f32 %v2431, %v2434
    %v2436 = vsub.f32 1.0, %v2435
    %v2437 = vmul.f32 %v2434, %v2436
    %v2438 = vadd.f32 %v2434, %v2437
    %vm2439 = vweird.f32 %v2431
    %vm2440 = vweird.f32 %v2434
    %vm2441 = vmor %vm2439, %vm2440
    %v2442 = vsel %vm2441, %v2434, %v2438
    %v2443 = vand.u32 2147483647, %v2431
    %vm2444 = vcmp.eq.f32.partialorder %v2443, 8.507059e+37
    %v2445 = vand.u32 %v2431, 2147483648
    %v2446 = vor.u32 1.1754944e-38, %v2445
    %v2447 = vsel %vm2444, %v2446, %v2442
    %v2448 = vmul.f32 1.0, %v2447
    %v2449 = vrcp.pop %v2432
    %v2450 = vmul.f32 %v2432, %v2449
    %v2451 = vsub.f32 1.0, %v2450
    %v2452 = vmul.f32 %v2449, %v2451
    %v2453 = vadd.f32 %v2449, %v2452
    %vm2454 = vweird.f32 %v2432
    %vm2455 = vweird.f32 %v2449
    %vm2456 = vmor %vm2454, %vm2455
    %v2457 = vsel %vm2456, %v2449, %v2453
    %v2458 = vand.u32 2147483647, %v2432
    %vm2459 = vcmp.eq.f32.partialorder %v2458, 8.507059e+37
    %v2460 = vand.u32 %v2432, 2147483648
    %v2461 = vor.u32 1.1754944e-38, %v2460
    %v2462 = vsel %vm2459, %v2461, %v2457
    %v2463 = vmul.f32 1.0, %v2462
    %v2464 = vrcp.pop %v2433
    %v2465 = vmul.f32 %v2433, %v2464
    %v2466 = vsub.f32 1.0, %v2465
    %v2467 = vmul.f32 %v2464, %v2466
    %v2468 = vadd.f32 %v2464, %v2467
    %vm2469 = vweird.f32 %v2433
    %vm2470 = vweird.f32 %v2464
    %vm2471 = vmor %vm2469, %vm2470
    %v2472 = vsel %vm2471, %v2464, %v2468
    %v2473 = vand.u32 2147483647, %v2433
    %vm2474 = vcmp.eq.f32.partialorder %v2473, 8.507059e+37
    %v2475 = vand.u32 %v2433, 2147483648
    %v2476 = vor.u32 1.1754944e-38, %v2475
    %v2477 = vsel %vm2474, %v2476, %v2472
    %v2478 = vmul.f32 1.0, %v2477
    %v2479 = vtanh.pop %v2421
    %v2480 = vmul.f32 %v2463, %v2101
    %v2481 = vmul.f32 %v2448, %v2479
    %v2482 = vadd.f32 %v2480, %v2481
    %v2483 = vtanh.pop %v2482
    %v2484 = vmul.f32 %v2478, %v2483
    %2485 = vmatpush.msra.mxu0 %v438
    %2486 = vmatpush.msra.mxu0 %v434
    %2487 = vmatpush.msra.mxu0 %v430
    %2488 = vmatpush.msra.mxu0 %v426
    %2489 = vmatpush.msra.mxu0 %v422
    %2490 = vmatpush.msra.mxu0 %v418
    %2491 = vmatpush.msra.mxu0 %v414
    %2492 = vmatpush.msra.mxu0 %v410
    %2493 = vmatpush.msra.mxu0 %v406
    %2494 = vmatpush.msra.mxu0 %v402
    %2495 = vmatpush.msra.mxu0 %v398
    %2496 = vmatpush.msra.mxu0 %v394
    %2497 = vmatpush.msra.mxu0 %v390
    %2498 = vmatpush.msra.mxu0 %v386
    %2499 = vmatpush.msra.mxu0 %v382
    %2500 = vmatpush.msra.mxu0 %v378
    %2501 = vmatmul.f32.gmra.mxu0 %v2484
    %v2502 = vpop.f32.mrf.mxu0
    %v2503 = vadd.f32 %v444, %v2502
    %2504 = vdwg.mxu0
    %2505 = vmatpush.msra.mxu0 %v439
    %2506 = vmatpush.msra.mxu0 %v435
    %2507 = vmatpush.msra.mxu0 %v431
    %2508 = vmatpush.msra.mxu0 %v427
    %2509 = vmatpush.msra.mxu0 %v423
    %2510 = vmatpush.msra.mxu0 %v419
    %2511 = vmatpush.msra.mxu0 %v415
    %2512 = vmatpush.msra.mxu0 %v411
    %2513 = vmatpush.msra.mxu0 %v407
    %2514 = vmatpush.msra.mxu0 %v403
    %2515 = vmatpush.msra.mxu0 %v399
    %2516 = vmatpush.msra.mxu0 %v395
    %2517 = vmatpush.msra.mxu0 %v391
    %2518 = vmatpush.msra.mxu0 %v387
    %2519 = vmatpush.msra.mxu0 %v383
    %2520 = vmatpush.msra.mxu0 %v379
    %2521 = vmatmul.f32.gmra.mxu0 %v2484
    %v2522 = vpop.f32.mrf.mxu0
    %v2523 = vadd.f32 %v445, %v2522
    %2524 = vdwg.mxu0
    %2525 = vmatpush.msra.mxu0 %v440
    %2526 = vmatpush.msra.mxu0 %v436
    %2527 = vmatpush.msra.mxu0 %v432
    %2528 = vmatpush.msra.mxu0 %v428
    %2529 = vmatpush.msra.mxu0 %v424
    %2530 = vmatpush.msra.mxu0 %v420
    %2531 = vmatpush.msra.mxu0 %v416
    %2532 = vmatpush.msra.mxu0 %v412
    %2533 = vmatpush.msra.mxu0 %v408
    %2534 = vmatpush.msra.mxu0 %v404
    %2535 = vmatpush.msra.mxu0 %v400
    %2536 = vmatpush.msra.mxu0 %v396
    %2537 = vmatpush.msra.mxu0 %v392
    %2538 = vmatpush.msra.mxu0 %v388
    %2539 = vmatpush.msra.mxu0 %v384
    %2540 = vmatpush.msra.mxu0 %v380
    %2541 = vmatmul.f32.gmra.mxu0 %v2484
    %v2542 = vpop.f32.mrf.mxu0
    %v2543 = vadd.f32 %v446, %v2542
    %2544 = vdwg.mxu0
    %2545 = vmatpush.msra.mxu0 %v441
    %2546 = vmatpush.msra.mxu0 %v437
    %2547 = vmatpush.msra.mxu0 %v433
    %2548 = vmatpush.msra.mxu0 %v429
    %2549 = vmatpush.msra.mxu0 %v425
    %2550 = vmatpush.msra.mxu0 %v421
    %2551 = vmatpush.msra.mxu0 %v417
    %2552 = vmatpush.msra.mxu0 %v413
    %2553 = vmatpush.msra.mxu0 %v409
    %2554 = vmatpush.msra.mxu0 %v405
    %2555 = vmatpush.msra.mxu0 %v401
    %2556 = vmatpush.msra.mxu0 %v397
    %2557 = vmatpush.msra.mxu0 %v393
    %2558 = vmatpush.msra.mxu0 %v389
    %2559 = vmatpush.msra.mxu0 %v385
    %2560 = vmatpush.msra.mxu0 %v381
    %2561 = vmatmul.f32.gmra.mxu0 %v2484
    %v2562 = vpop.f32.mrf.mxu0
    %v2563 = vadd.f32 %v447, %v2562
    %2564 = vdwg.mxu0
    %s2565 = smul.u32 5, 4
    %s2566 = smul.addr %s2565, 8
    %s2567 = scalar_lea.vmem [#allocation2], %s2566
    %v2568 = vld [vmem:[%s2567] sm:$0xff]
    %v2569 = vld [vmem:[%s2567 + $0x8] sm:$0xff]
    %v2570 = vld [vmem:[%s2567 + $0x10] sm:$0xff]
    %v2571 = vld [vmem:[%s2567 + $0x18] sm:$0xff]
    %2572 = vmatpush.msra.mxu0 %v599
    %2573 = vmatpush.msra.mxu0 %v595
    %2574 = vmatpush.msra.mxu0 %v591
    %2575 = vmatpush.msra.mxu0 %v587
    %2576 = vmatpush.msra.mxu0 %v583
    %2577 = vmatpush.msra.mxu0 %v579
    %2578 = vmatpush.msra.mxu0 %v575
    %2579 = vmatpush.msra.mxu0 %v571
    %2580 = vmatpush.msra.mxu0 %v567
    %2581 = vmatpush.msra.mxu0 %v563
    %2582 = vmatpush.msra.mxu0 %v559
    %2583 = vmatpush.msra.mxu0 %v555
    %2584 = vmatpush.msra.mxu0 %v551
    %2585 = vmatpush.msra.mxu0 %v547
    %2586 = vmatpush.msra.mxu0 %v543
    %2587 = vmatpush.msra.mxu0 %v539
    %2588 = vmatmul.f32.gmra.mxu0 %v2337
    %v2589 = vpop.f32.mrf.mxu0
    %v2590 = vadd.f32 0.0, %v2589
    %2591 = vdwg.mxu0
    %2592 = vmatpush.msra.mxu0 %v600
    %2593 = vmatpush.msra.mxu0 %v596
    %2594 = vmatpush.msra.mxu0 %v592
    %2595 = vmatpush.msra.mxu0 %v588
    %2596 = vmatpush.msra.mxu0 %v584
    %2597 = vmatpush.msra.mxu0 %v580
    %2598 = vmatpush.msra.mxu0 %v576
    %2599 = vmatpush.msra.mxu0 %v572
    %2600 = vmatpush.msra.mxu0 %v568
    %2601 = vmatpush.msra.mxu0 %v564
    %2602 = vmatpush.msra.mxu0 %v560
    %2603 = vmatpush.msra.mxu0 %v556
    %2604 = vmatpush.msra.mxu0 %v552
    %2605 = vmatpush.msra.mxu0 %v548
    %2606 = vmatpush.msra.mxu0 %v544
    %2607 = vmatpush.msra.mxu0 %v540
    %2608 = vmatmul.f32.gmra.mxu0 %v2337
    %v2609 = vpop.f32.mrf.mxu0
    %v2610 = vadd.f32 0.0, %v2609
    %2611 = vdwg.mxu0
    %2612 = vmatpush.msra.mxu0 %v601
    %2613 = vmatpush.msra.mxu0 %v597
    %2614 = vmatpush.msra.mxu0 %v593
    %2615 = vmatpush.msra.mxu0 %v589
    %2616 = vmatpush.msra.mxu0 %v585
    %2617 = vmatpush.msra.mxu0 %v581
    %2618 = vmatpush.msra.mxu0 %v577
    %2619 = vmatpush.msra.mxu0 %v573
    %2620 = vmatpush.msra.mxu0 %v569
    %2621 = vmatpush.msra.mxu0 %v565
    %2622 = vmatpush.msra.mxu0 %v561
    %2623 = vmatpush.msra.mxu0 %v557
    %2624 = vmatpush.msra.mxu0 %v553
    %2625 = vmatpush.msra.mxu0 %v549
    %2626 = vmatpush.msra.mxu0 %v545
    %2627 = vmatpush.msra.mxu0 %v541
    %2628 = vmatmul.f32.gmra.mxu0 %v2337
    %v2629 = vpop.f32.mrf.mxu0
    %v2630 = vadd.f32 0.0, %v2629
    %2631 = vdwg.mxu0
    %2632 = vmatpush.msra.mxu0 %v602
    %2633 = vmatpush.msra.mxu0 %v598
    %2634 = vmatpush.msra.mxu0 %v594
    %2635 = vmatpush.msra.mxu0 %v590
    %2636 = vmatpush.msra.mxu0 %v586
    %2637 = vmatpush.msra.mxu0 %v582
    %2638 = vmatpush.msra.mxu0 %v578
    %2639 = vmatpush.msra.mxu0 %v574
    %2640 = vmatpush.msra.mxu0 %v570
    %2641 = vmatpush.msra.mxu0 %v566
    %2642 = vmatpush.msra.mxu0 %v562
    %2643 = vmatpush.msra.mxu0 %v558
    %2644 = vmatpush.msra.mxu0 %v554
    %2645 = vmatpush.msra.mxu0 %v550
    %2646 = vmatpush.msra.mxu0 %v546
    %2647 = vmatpush.msra.mxu0 %v542
    %2648 = vmatmul.f32.gmra.mxu0 %v2337
    %v2649 = vpop.f32.mrf.mxu0
    %v2650 = vadd.f32 0.0, %v2649
    %2651 = vdwg.mxu0
    %v2652 = vadd.f32 %v2568, %v2590
    %v2653 = vadd.f32 %v2569, %v2610
    %v2654 = vadd.f32 %v2570, %v2630
    %v2655 = vadd.f32 %v2571, %v2650
    %v2656 = vxor.u32 %v2652, 2147483648
    %v2657 = vxor.u32 %v2653, 2147483648
    %v2658 = vxor.u32 %v2654, 2147483648
    %v2659 = vmul.f32 %v2656, 1.442695
    %v2660 = vpow.pop %v2659
    %v2661 = vmul.f32 %v2657, 1.442695
    %v2662 = vpow.pop %v2661
    %v2663 = vmul.f32 %v2658, 1.442695
    %v2664 = vpow.pop %v2663
    %v2665 = vadd.f32 %v2660, 1.0
    %v2666 = vadd.f32 %v2662, 1.0
    %v2667 = vadd.f32 %v2664, 1.0
    %v2668 = vrcp.pop %v2665
    %v2669 = vmul.f32 %v2665, %v2668
    %v2670 = vsub.f32 1.0, %v2669
    %v2671 = vmul.f32 %v2668, %v2670
    %v2672 = vadd.f32 %v2668, %v2671
    %vm2673 = vweird.f32 %v2665
    %vm2674 = vweird.f32 %v2668
    %vm2675 = vmor %vm2673, %vm2674
    %v2676 = vsel %vm2675, %v2668, %v2672
    %v2677 = vand.u32 2147483647, %v2665
    %vm2678 = vcmp.eq.f32.partialorder %v2677, 8.507059e+37
    %v2679 = vand.u32 %v2665, 2147483648
    %v2680 = vor.u32 1.1754944e-38, %v2679
    %v2681 = vsel %vm2678, %v2680, %v2676
    %v2682 = vmul.f32 1.0, %v2681
    %v2683 = vrcp.pop %v2666
    %v2684 = vmul.f32 %v2666, %v2683
    %v2685 = vsub.f32 1.0, %v2684
    %v2686 = vmul.f32 %v2683, %v2685
    %v2687 = vadd.f32 %v2683, %v2686
    %vm2688 = vweird.f32 %v2666
    %vm2689 = vweird.f32 %v2683
    %vm2690 = vmor %vm2688, %vm2689
    %v2691 = vsel %vm2690, %v2683, %v2687
    %v2692 = vand.u32 2147483647, %v2666
    %vm2693 = vcmp.eq.f32.partialorder %v2692, 8.507059e+37
    %v2694 = vand.u32 %v2666, 2147483648
    %v2695 = vor.u32 1.1754944e-38, %v2694
    %v2696 = vsel %vm2693, %v2695, %v2691
    %v2697 = vmul.f32 1.0, %v2696
    %v2698 = vrcp.pop %v2667
    %v2699 = vmul.f32 %v2667, %v2698
    %v2700 = vsub.f32 1.0, %v2699
    %v2701 = vmul.f32 %v2698, %v2700
    %v2702 = vadd.f32 %v2698, %v2701
    %vm2703 = vweird.f32 %v2667
    %vm2704 = vweird.f32 %v2698
    %vm2705 = vmor %vm2703, %vm2704
    %v2706 = vsel %vm2705, %v2698, %v2702
    %v2707 = vand.u32 2147483647, %v2667
    %vm2708 = vcmp.eq.f32.partialorder %v2707, 8.507059e+37
    %v2709 = vand.u32 %v2667, 2147483648
    %v2710 = vor.u32 1.1754944e-38, %v2709
    %v2711 = vsel %vm2708, %v2710, %v2706
    %v2712 = vmul.f32 1.0, %v2711
    %v2713 = vtanh.pop %v2655
    %v2714 = vmul.f32 %v2697, %v2335
    %v2715 = vmul.f32 %v2682, %v2713
    %v2716 = vadd.f32 %v2714, %v2715
    %v2717 = vtanh.pop %v2716
    %v2718 = vmul.f32 %v2712, %v2717
    %2719 = vmatpush.msra.mxu0 %v810
    %2720 = vmatpush.msra.mxu0 %v806
    %2721 = vmatpush.msra.mxu0 %v802
    %2722 = vmatpush.msra.mxu0 %v798
    %2723 = vmatpush.msra.mxu0 %v794
    %2724 = vmatpush.msra.mxu0 %v790
    %2725 = vmatpush.msra.mxu0 %v786
    %2726 = vmatpush.msra.mxu0 %v782
    %2727 = vmatpush.msra.mxu0 %v778
    %2728 = vmatpush.msra.mxu0 %v774
    %2729 = vmatpush.msra.mxu0 %v770
    %2730 = vmatpush.msra.mxu0 %v766
    %2731 = vmatpush.msra.mxu0 %v762
    %2732 = vmatpush.msra.mxu0 %v758
    %2733 = vmatpush.msra.mxu0 %v754
    %2734 = vmatpush.msra.mxu0 %v750
    %2735 = vmatmul.f32.gmra.mxu0 %v2718
    %v2736 = vpop.f32.mrf.mxu0
    %v2737 = vadd.f32 0.0, %v2736
    %2738 = vdwg.mxu0
    %2739 = vmatpush.msra.mxu0 %v811
    %2740 = vmatpush.msra.mxu0 %v807
    %2741 = vmatpush.msra.mxu0 %v803
    %2742 = vmatpush.msra.mxu0 %v799
    %2743 = vmatpush.msra.mxu0 %v795
    %2744 = vmatpush.msra.mxu0 %v791
    %2745 = vmatpush.msra.mxu0 %v787
    %2746 = vmatpush.msra.mxu0 %v783
    %2747 = vmatpush.msra.mxu0 %v779
    %2748 = vmatpush.msra.mxu0 %v775
    %2749 = vmatpush.msra.mxu0 %v771
    %2750 = vmatpush.msra.mxu0 %v767
    %2751 = vmatpush.msra.mxu0 %v763
    %2752 = vmatpush.msra.mxu0 %v759
    %2753 = vmatpush.msra.mxu0 %v755
    %2754 = vmatpush.msra.mxu0 %v751
    %2755 = vmatmul.f32.gmra.mxu0 %v2718
    %v2756 = vpop.f32.mrf.mxu0
    %v2757 = vadd.f32 0.0, %v2756
    %2758 = vdwg.mxu0
    %2759 = vmatpush.msra.mxu0 %v812
    %2760 = vmatpush.msra.mxu0 %v808
    %2761 = vmatpush.msra.mxu0 %v804
    %2762 = vmatpush.msra.mxu0 %v800
    %2763 = vmatpush.msra.mxu0 %v796
    %2764 = vmatpush.msra.mxu0 %v792
    %2765 = vmatpush.msra.mxu0 %v788
    %2766 = vmatpush.msra.mxu0 %v784
    %2767 = vmatpush.msra.mxu0 %v780
    %2768 = vmatpush.msra.mxu0 %v776
    %2769 = vmatpush.msra.mxu0 %v772
    %2770 = vmatpush.msra.mxu0 %v768
    %2771 = vmatpush.msra.mxu0 %v764
    %2772 = vmatpush.msra.mxu0 %v760
    %2773 = vmatpush.msra.mxu0 %v756
    %2774 = vmatpush.msra.mxu0 %v752
    %2775 = vmatmul.f32.gmra.mxu0 %v2718
    %v2776 = vpop.f32.mrf.mxu0
    %v2777 = vadd.f32 0.0, %v2776
    %2778 = vdwg.mxu0
    %2779 = vmatpush.msra.mxu0 %v813
    %2780 = vmatpush.msra.mxu0 %v809
    %2781 = vmatpush.msra.mxu0 %v805
    %2782 = vmatpush.msra.mxu0 %v801
    %2783 = vmatpush.msra.mxu0 %v797
    %2784 = vmatpush.msra.mxu0 %v793
    %2785 = vmatpush.msra.mxu0 %v789
    %2786 = vmatpush.msra.mxu0 %v785
    %2787 = vmatpush.msra.mxu0 %v781
    %2788 = vmatpush.msra.mxu0 %v777
    %2789 = vmatpush.msra.mxu0 %v773
    %2790 = vmatpush.msra.mxu0 %v769
    %2791 = vmatpush.msra.mxu0 %v765
    %2792 = vmatpush.msra.mxu0 %v761
    %2793 = vmatpush.msra.mxu0 %v757
    %2794 = vmatpush.msra.mxu0 %v753
    %2795 = vmatmul.f32.gmra.mxu0 %v2718
    %v2796 = vpop.f32.mrf.mxu0
    %v2797 = vadd.f32 0.0, %v2796
    %2798 = vdwg.mxu0
    %v2799 = vadd.f32 %v2503, %v2737
    %v2800 = vadd.f32 %v2523, %v2757
    %v2801 = vadd.f32 %v2543, %v2777
    %v2802 = vadd.f32 %v2563, %v2797
    %v2803 = vxor.u32 %v2799, 2147483648
    %v2804 = vxor.u32 %v2800, 2147483648
    %v2805 = vxor.u32 %v2801, 2147483648
    %v2806 = vmul.f32 %v2803, 1.442695
    %v2807 = vpow.pop %v2806
    %v2808 = vmul.f32 %v2804, 1.442695
    %v2809 = vpow.pop %v2808
    %v2810 = vmul.f32 %v2805, 1.442695
    %v2811 = vpow.pop %v2810
    %v2812 = vadd.f32 %v2807, 1.0
    %v2813 = vadd.f32 %v2809, 1.0
    %v2814 = vadd.f32 %v2811, 1.0
    %v2815 = vrcp.pop %v2812
    %v2816 = vmul.f32 %v2812, %v2815
    %v2817 = vsub.f32 1.0, %v2816
    %v2818 = vmul.f32 %v2815, %v2817
    %v2819 = vadd.f32 %v2815, %v2818
    %vm2820 = vweird.f32 %v2812
    %vm2821 = vweird.f32 %v2815
    %vm2822 = vmor %vm2820, %vm2821
    %v2823 = vsel %vm2822, %v2815, %v2819
    %v2824 = vand.u32 2147483647, %v2812
    %vm2825 = vcmp.eq.f32.partialorder %v2824, 8.507059e+37
    %v2826 = vand.u32 %v2812, 2147483648
    %v2827 = vor.u32 1.1754944e-38, %v2826
    %v2828 = vsel %vm2825, %v2827, %v2823
    %v2829 = vmul.f32 1.0, %v2828
    %v2830 = vrcp.pop %v2813
    %v2831 = vmul.f32 %v2813, %v2830
    %v2832 = vsub.f32 1.0, %v2831
    %v2833 = vmul.f32 %v2830, %v2832
    %v2834 = vadd.f32 %v2830, %v2833
    %vm2835 = vweird.f32 %v2813
    %vm2836 = vweird.f32 %v2830
    %vm2837 = vmor %vm2835, %vm2836
    %v2838 = vsel %vm2837, %v2830, %v2834
    %v2839 = vand.u32 2147483647, %v2813
    %vm2840 = vcmp.eq.f32.partialorder %v2839, 8.507059e+37
    %v2841 = vand.u32 %v2813, 2147483648
    %v2842 = vor.u32 1.1754944e-38, %v2841
    %v2843 = vsel %vm2840, %v2842, %v2838
    %v2844 = vmul.f32 1.0, %v2843
    %v2845 = vrcp.pop %v2814
    %v2846 = vmul.f32 %v2814, %v2845
    %v2847 = vsub.f32 1.0, %v2846
    %v2848 = vmul.f32 %v2845, %v2847
    %v2849 = vadd.f32 %v2845, %v2848
    %vm2850 = vweird.f32 %v2814
    %vm2851 = vweird.f32 %v2845
    %vm2852 = vmor %vm2850, %vm2851
    %v2853 = vsel %vm2852, %v2845, %v2849
    %v2854 = vand.u32 2147483647, %v2814
    %vm2855 = vcmp.eq.f32.partialorder %v2854, 8.507059e+37
    %v2856 = vand.u32 %v2814, 2147483648
    %v2857 = vor.u32 1.1754944e-38, %v2856
    %v2858 = vsel %vm2855, %v2857, %v2853
    %v2859 = vmul.f32 1.0, %v2858
    %v2860 = vtanh.pop %v2802
    %v2861 = vmul.f32 %v2844, %v2482
    %v2862 = vmul.f32 %v2829, %v2860
    %v2863 = vadd.f32 %v2861, %v2862
    %v2864 = vtanh.pop %v2863
    %v2865 = vmul.f32 %v2859, %v2864
    %2866 = vmatpush.msra.mxu0 %v438
    %2867 = vmatpush.msra.mxu0 %v434
    %2868 = vmatpush.msra.mxu0 %v430
    %2869 = vmatpush.msra.mxu0 %v426
    %2870 = vmatpush.msra.mxu0 %v422
    %2871 = vmatpush.msra.mxu0 %v418
    %2872 = vmatpush.msra.mxu0 %v414
    %2873 = vmatpush.msra.mxu0 %v410
    %2874 = vmatpush.msra.mxu0 %v406
    %2875 = vmatpush.msra.mxu0 %v402
    %2876 = vmatpush.msra.mxu0 %v398
    %2877 = vmatpush.msra.mxu0 %v394
    %2878 = vmatpush.msra.mxu0 %v390
    %2879 = vmatpush.msra.mxu0 %v386
    %2880 = vmatpush.msra.mxu0 %v382
    %2881 = vmatpush.msra.mxu0 %v378
    %2882 = vmatmul.f32.gmra.mxu0 %v2865
    %v2883 = vpop.f32.mrf.mxu0
    %v2884 = vadd.f32 %v444, %v2883
    %2885 = vdwg.mxu0
    %2886 = vmatpush.msra.mxu0 %v439
    %2887 = vmatpush.msra.mxu0 %v435
    %2888 = vmatpush.msra.mxu0 %v431
    %2889 = vmatpush.msra.mxu0 %v427
    %2890 = vmatpush.msra.mxu0 %v423
    %2891 = vmatpush.msra.mxu0 %v419
    %2892 = vmatpush.msra.mxu0 %v415
    %2893 = vmatpush.msra.mxu0 %v411
    %2894 = vmatpush.msra.mxu0 %v407
    %2895 = vmatpush.msra.mxu0 %v403
    %2896 = vmatpush.msra.mxu0 %v399
    %2897 = vmatpush.msra.mxu0 %v395
    %2898 = vmatpush.msra.mxu0 %v391
    %2899 = vmatpush.msra.mxu0 %v387
    %2900 = vmatpush.msra.mxu0 %v383
    %2901 = vmatpush.msra.mxu0 %v379
    %2902 = vmatmul.f32.gmra.mxu0 %v2865
    %v2903 = vpop.f32.mrf.mxu0
    %v2904 = vadd.f32 %v445, %v2903
    %2905 = vdwg.mxu0
    %2906 = vmatpush.msra.mxu0 %v440
    %2907 = vmatpush.msra.mxu0 %v436
    %2908 = vmatpush.msra.mxu0 %v432
    %2909 = vmatpush.msra.mxu0 %v428
    %2910 = vmatpush.msra.mxu0 %v424
    %2911 = vmatpush.msra.mxu0 %v420
    %2912 = vmatpush.msra.mxu0 %v416
    %2913 = vmatpush.msra.mxu0 %v412
    %2914 = vmatpush.msra.mxu0 %v408
    %2915 = vmatpush.msra.mxu0 %v404
    %2916 = vmatpush.msra.mxu0 %v400
    %2917 = vmatpush.msra.mxu0 %v396
    %2918 = vmatpush.msra.mxu0 %v392
    %2919 = vmatpush.msra.mxu0 %v388
    %2920 = vmatpush.msra.mxu0 %v384
    %2921 = vmatpush.msra.mxu0 %v380
    %2922 = vmatmul.f32.gmra.mxu0 %v2865
    %v2923 = vpop.f32.mrf.mxu0
    %v2924 = vadd.f32 %v446, %v2923
    %2925 = vdwg.mxu0
    %2926 = vmatpush.msra.mxu0 %v441
    %2927 = vmatpush.msra.mxu0 %v437
    %2928 = vmatpush.msra.mxu0 %v433
    %2929 = vmatpush.msra.mxu0 %v429
    %2930 = vmatpush.msra.mxu0 %v425
    %2931 = vmatpush.msra.mxu0 %v421
    %2932 = vmatpush.msra.mxu0 %v417
    %2933 = vmatpush.msra.mxu0 %v413
    %2934 = vmatpush.msra.mxu0 %v409
    %2935 = vmatpush.msra.mxu0 %v405
    %2936 = vmatpush.msra.mxu0 %v401
    %2937 = vmatpush.msra.mxu0 %v397
    %2938 = vmatpush.msra.mxu0 %v393
    %2939 = vmatpush.msra.mxu0 %v389
    %2940 = vmatpush.msra.mxu0 %v385
    %2941 = vmatpush.msra.mxu0 %v381
    %2942 = vmatmul.f32.gmra.mxu0 %v2865
    %v2943 = vpop.f32.mrf.mxu0
    %v2944 = vadd.f32 %v447, %v2943
    %2945 = vdwg.mxu0
    %s2946 = smul.u32 6, 4
    %s2947 = smul.addr %s2946, 8
    %s2948 = scalar_lea.vmem [#allocation2], %s2947
    %v2949 = vld [vmem:[%s2948] sm:$0xff]
    %v2950 = vld [vmem:[%s2948 + $0x8] sm:$0xff]
    %v2951 = vld [vmem:[%s2948 + $0x10] sm:$0xff]
    %v2952 = vld [vmem:[%s2948 + $0x18] sm:$0xff]
    %2953 = vmatpush.msra.mxu0 %v599
    %2954 = vmatpush.msra.mxu0 %v595
    %2955 = vmatpush.msra.mxu0 %v591
    %2956 = vmatpush.msra.mxu0 %v587
    %2957 = vmatpush.msra.mxu0 %v583
    %2958 = vmatpush.msra.mxu0 %v579
    %2959 = vmatpush.msra.mxu0 %v575
    %2960 = vmatpush.msra.mxu0 %v571
    %2961 = vmatpush.msra.mxu0 %v567
    %2962 = vmatpush.msra.mxu0 %v563
    %2963 = vmatpush.msra.mxu0 %v559
    %2964 = vmatpush.msra.mxu0 %v555
    %2965 = vmatpush.msra.mxu0 %v551
    %2966 = vmatpush.msra.mxu0 %v547
    %2967 = vmatpush.msra.mxu0 %v543
    %2968 = vmatpush.msra.mxu0 %v539
    %2969 = vmatmul.f32.gmra.mxu0 %v2718
    %v2970 = vpop.f32.mrf.mxu0
    %v2971 = vadd.f32 0.0, %v2970
    %2972 = vdwg.mxu0
    %2973 = vmatpush.msra.mxu0 %v600
    %2974 = vmatpush.msra.mxu0 %v596
    %2975 = vmatpush.msra.mxu0 %v592
    %2976 = vmatpush.msra.mxu0 %v588
    %2977 = vmatpush.msra.mxu0 %v584
    %2978 = vmatpush.msra.mxu0 %v580
    %2979 = vmatpush.msra.mxu0 %v576
    %2980 = vmatpush.msra.mxu0 %v572
    %2981 = vmatpush.msra.mxu0 %v568
    %2982 = vmatpush.msra.mxu0 %v564
    %2983 = vmatpush.msra.mxu0 %v560
    %2984 = vmatpush.msra.mxu0 %v556
    %2985 = vmatpush.msra.mxu0 %v552
    %2986 = vmatpush.msra.mxu0 %v548
    %2987 = vmatpush.msra.mxu0 %v544
    %2988 = vmatpush.msra.mxu0 %v540
    %2989 = vmatmul.f32.gmra.mxu0 %v2718
    %v2990 = vpop.f32.mrf.mxu0
    %v2991 = vadd.f32 0.0, %v2990
    %2992 = vdwg.mxu0
    %2993 = vmatpush.msra.mxu0 %v601
    %2994 = vmatpush.msra.mxu0 %v597
    %2995 = vmatpush.msra.mxu0 %v593
    %2996 = vmatpush.msra.mxu0 %v589
    %2997 = vmatpush.msra.mxu0 %v585
    %2998 = vmatpush.msra.mxu0 %v581
    %2999 = vmatpush.msra.mxu0 %v577
    %3000 = vmatpush.msra.mxu0 %v573
    %3001 = vmatpush.msra.mxu0 %v569
    %3002 = vmatpush.msra.mxu0 %v565
    %3003 = vmatpush.msra.mxu0 %v561
    %3004 = vmatpush.msra.mxu0 %v557
    %3005 = vmatpush.msra.mxu0 %v553
    %3006 = vmatpush.msra.mxu0 %v549
    %3007 = vmatpush.msra.mxu0 %v545
    %3008 = vmatpush.msra.mxu0 %v541
    %3009 = vmatmul.f32.gmra.mxu0 %v2718
    %v3010 = vpop.f32.mrf.mxu0
    %v3011 = vadd.f32 0.0, %v3010
    %3012 = vdwg.mxu0
    %3013 = vmatpush.msra.mxu0 %v602
    %3014 = vmatpush.msra.mxu0 %v598
    %3015 = vmatpush.msra.mxu0 %v594
    %3016 = vmatpush.msra.mxu0 %v590
    %3017 = vmatpush.msra.mxu0 %v586
    %3018 = vmatpush.msra.mxu0 %v582
    %3019 = vmatpush.msra.mxu0 %v578
    %3020 = vmatpush.msra.mxu0 %v574
    %3021 = vmatpush.msra.mxu0 %v570
    %3022 = vmatpush.msra.mxu0 %v566
    %3023 = vmatpush.msra.mxu0 %v562
    %3024 = vmatpush.msra.mxu0 %v558
    %3025 = vmatpush.msra.mxu0 %v554
    %3026 = vmatpush.msra.mxu0 %v550
    %3027 = vmatpush.msra.mxu0 %v546
    %3028 = vmatpush.msra.mxu0 %v542
    %3029 = vmatmul.f32.gmra.mxu0 %v2718
    %v3030 = vpop.f32.mrf.mxu0
    %v3031 = vadd.f32 0.0, %v3030
    %3032 = vdwg.mxu0
    %v3033 = vadd.f32 %v2949, %v2971
    %v3034 = vadd.f32 %v2950, %v2991
    %v3035 = vadd.f32 %v2951, %v3011
    %v3036 = vadd.f32 %v2952, %v3031
    %v3037 = vxor.u32 %v3033, 2147483648
    %v3038 = vxor.u32 %v3034, 2147483648
    %v3039 = vxor.u32 %v3035, 2147483648
    %v3040 = vmul.f32 %v3037, 1.442695
    %v3041 = vpow.pop %v3040
    %v3042 = vmul.f32 %v3038, 1.442695
    %v3043 = vpow.pop %v3042
    %v3044 = vmul.f32 %v3039, 1.442695
    %v3045 = vpow.pop %v3044
    %v3046 = vadd.f32 %v3041, 1.0
    %v3047 = vadd.f32 %v3043, 1.0
    %v3048 = vadd.f32 %v3045, 1.0
    %v3049 = vrcp.pop %v3046
    %v3050 = vmul.f32 %v3046, %v3049
    %v3051 = vsub.f32 1.0, %v3050
    %v3052 = vmul.f32 %v3049, %v3051
    %v3053 = vadd.f32 %v3049, %v3052
    %vm3054 = vweird.f32 %v3046
    %vm3055 = vweird.f32 %v3049
    %vm3056 = vmor %vm3054, %vm3055
    %v3057 = vsel %vm3056, %v3049, %v3053
    %v3058 = vand.u32 2147483647, %v3046
    %vm3059 = vcmp.eq.f32.partialorder %v3058, 8.507059e+37
    %v3060 = vand.u32 %v3046, 2147483648
    %v3061 = vor.u32 1.1754944e-38, %v3060
    %v3062 = vsel %vm3059, %v3061, %v3057
    %v3063 = vmul.f32 1.0, %v3062
    %v3064 = vrcp.pop %v3047
    %v3065 = vmul.f32 %v3047, %v3064
    %v3066 = vsub.f32 1.0, %v3065
    %v3067 = vmul.f32 %v3064, %v3066
    %v3068 = vadd.f32 %v3064, %v3067
    %vm3069 = vweird.f32 %v3047
    %vm3070 = vweird.f32 %v3064
    %vm3071 = vmor %vm3069, %vm3070
    %v3072 = vsel %vm3071, %v3064, %v3068
    %v3073 = vand.u32 2147483647, %v3047
    %vm3074 = vcmp.eq.f32.partialorder %v3073, 8.507059e+37
    %v3075 = vand.u32 %v3047, 2147483648
    %v3076 = vor.u32 1.1754944e-38, %v3075
    %v3077 = vsel %vm3074, %v3076, %v3072
    %v3078 = vmul.f32 1.0, %v3077
    %v3079 = vrcp.pop %v3048
    %v3080 = vmul.f32 %v3048, %v3079
    %v3081 = vsub.f32 1.0, %v3080
    %v3082 = vmul.f32 %v3079, %v3081
    %v3083 = vadd.f32 %v3079, %v3082
    %vm3084 = vweird.f32 %v3048
    %vm3085 = vweird.f32 %v3079
    %vm3086 = vmor %vm3084, %vm3085
    %v3087 = vsel %vm3086, %v3079, %v3083
    %v3088 = vand.u32 2147483647, %v3048
    %vm3089 = vcmp.eq.f32.partialorder %v3088, 8.507059e+37
    %v3090 = vand.u32 %v3048, 2147483648
    %v3091 = vor.u32 1.1754944e-38, %v3090
    %v3092 = vsel %vm3089, %v3091, %v3087
    %v3093 = vmul.f32 1.0, %v3092
    %v3094 = vtanh.pop %v3036
    %v3095 = vmul.f32 %v3078, %v2716
    %v3096 = vmul.f32 %v3063, %v3094
    %v3097 = vadd.f32 %v3095, %v3096
    %v3098 = vtanh.pop %v3097
    %v3099 = vmul.f32 %v3093, %v3098
    %3100 = vmatpush.msra.mxu0 %v810
    %3101 = vmatpush.msra.mxu0 %v806
    %3102 = vmatpush.msra.mxu0 %v802
    %3103 = vmatpush.msra.mxu0 %v798
    %3104 = vmatpush.msra.mxu0 %v794
    %3105 = vmatpush.msra.mxu0 %v790
    %3106 = vmatpush.msra.mxu0 %v786
    %3107 = vmatpush.msra.mxu0 %v782
    %3108 = vmatpush.msra.mxu0 %v778
    %3109 = vmatpush.msra.mxu0 %v774
    %3110 = vmatpush.msra.mxu0 %v770
    %3111 = vmatpush.msra.mxu0 %v766
    %3112 = vmatpush.msra.mxu0 %v762
    %3113 = vmatpush.msra.mxu0 %v758
    %3114 = vmatpush.msra.mxu0 %v754
    %3115 = vmatpush.msra.mxu0 %v750
    %3116 = vmatmul.f32.gmra.mxu0 %v3099
    %v3117 = vpop.f32.mrf.mxu0
    %v3118 = vadd.f32 0.0, %v3117
    %3119 = vdwg.mxu0
    %3120 = vmatpush.msra.mxu0 %v811
    %3121 = vmatpush.msra.mxu0 %v807
    %3122 = vmatpush.msra.mxu0 %v803
    %3123 = vmatpush.msra.mxu0 %v799
    %3124 = vmatpush.msra.mxu0 %v795
    %3125 = vmatpush.msra.mxu0 %v791
    %3126 = vmatpush.msra.mxu0 %v787
    %3127 = vmatpush.msra.mxu0 %v783
    %3128 = vmatpush.msra.mxu0 %v779
    %3129 = vmatpush.msra.mxu0 %v775
    %3130 = vmatpush.msra.mxu0 %v771
    %3131 = vmatpush.msra.mxu0 %v767
    %3132 = vmatpush.msra.mxu0 %v763
    %3133 = vmatpush.msra.mxu0 %v759
    %3134 = vmatpush.msra.mxu0 %v755
    %3135 = vmatpush.msra.mxu0 %v751
    %3136 = vmatmul.f32.gmra.mxu0 %v3099
    %v3137 = vpop.f32.mrf.mxu0
    %v3138 = vadd.f32 0.0, %v3137
    %3139 = vdwg.mxu0
    %3140 = vmatpush.msra.mxu0 %v812
    %3141 = vmatpush.msra.mxu0 %v808
    %3142 = vmatpush.msra.mxu0 %v804
    %3143 = vmatpush.msra.mxu0 %v800
    %3144 = vmatpush.msra.mxu0 %v796
    %3145 = vmatpush.msra.mxu0 %v792
    %3146 = vmatpush.msra.mxu0 %v788
    %3147 = vmatpush.msra.mxu0 %v784
    %3148 = vmatpush.msra.mxu0 %v780
    %3149 = vmatpush.msra.mxu0 %v776
    %3150 = vmatpush.msra.mxu0 %v772
    %3151 = vmatpush.msra.mxu0 %v768
    %3152 = vmatpush.msra.mxu0 %v764
    %3153 = vmatpush.msra.mxu0 %v760
    %3154 = vmatpush.msra.mxu0 %v756
    %3155 = vmatpush.msra.mxu0 %v752
    %3156 = vmatmul.f32.gmra.mxu0 %v3099
    %v3157 = vpop.f32.mrf.mxu0
    %v3158 = vadd.f32 0.0, %v3157
    %3159 = vdwg.mxu0
    %3160 = vmatpush.msra.mxu0 %v813
    %3161 = vmatpush.msra.mxu0 %v809
    %3162 = vmatpush.msra.mxu0 %v805
    %3163 = vmatpush.msra.mxu0 %v801
    %3164 = vmatpush.msra.mxu0 %v797
    %3165 = vmatpush.msra.mxu0 %v793
    %3166 = vmatpush.msra.mxu0 %v789
    %3167 = vmatpush.msra.mxu0 %v785
    %3168 = vmatpush.msra.mxu0 %v781
    %3169 = vmatpush.msra.mxu0 %v777
    %3170 = vmatpush.msra.mxu0 %v773
    %3171 = vmatpush.msra.mxu0 %v769
    %3172 = vmatpush.msra.mxu0 %v765
    %3173 = vmatpush.msra.mxu0 %v761
    %3174 = vmatpush.msra.mxu0 %v757
    %3175 = vmatpush.msra.mxu0 %v753
    %3176 = vmatmul.f32.gmra.mxu0 %v3099
    %v3177 = vpop.f32.mrf.mxu0
    %v3178 = vadd.f32 0.0, %v3177
    %3179 = vdwg.mxu0
    %v3180 = vadd.f32 %v2884, %v3118
    %v3181 = vadd.f32 %v2904, %v3138
    %v3182 = vadd.f32 %v2924, %v3158
    %v3183 = vadd.f32 %v2944, %v3178
    %v3184 = vxor.u32 %v3180, 2147483648
    %v3185 = vxor.u32 %v3181, 2147483648
    %v3186 = vxor.u32 %v3182, 2147483648
    %v3187 = vmul.f32 %v3184, 1.442695
    %v3188 = vpow.pop %v3187
    %v3189 = vmul.f32 %v3185, 1.442695
    %v3190 = vpow.pop %v3189
    %v3191 = vmul.f32 %v3186, 1.442695
    %v3192 = vpow.pop %v3191
    %v3193 = vadd.f32 %v3188, 1.0
    %v3194 = vadd.f32 %v3190, 1.0
    %v3195 = vadd.f32 %v3192, 1.0
    %v3196 = vrcp.pop %v3193
    %v3197 = vmul.f32 %v3193, %v3196
    %v3198 = vsub.f32 1.0, %v3197
    %v3199 = vmul.f32 %v3196, %v3198
    %v3200 = vadd.f32 %v3196, %v3199
    %vm3201 = vweird.f32 %v3193
    %vm3202 = vweird.f32 %v3196
    %vm3203 = vmor %vm3201, %vm3202
    %v3204 = vsel %vm3203, %v3196, %v3200
    %v3205 = vand.u32 2147483647, %v3193
    %vm3206 = vcmp.eq.f32.partialorder %v3205, 8.507059e+37
    %v3207 = vand.u32 %v3193, 2147483648
    %v3208 = vor.u32 1.1754944e-38, %v3207
    %v3209 = vsel %vm3206, %v3208, %v3204
    %v3210 = vmul.f32 1.0, %v3209
    %v3211 = vrcp.pop %v3194
    %v3212 = vmul.f32 %v3194, %v3211
    %v3213 = vsub.f32 1.0, %v3212
    %v3214 = vmul.f32 %v3211, %v3213
    %v3215 = vadd.f32 %v3211, %v3214
    %vm3216 = vweird.f32 %v3194
    %vm3217 = vweird.f32 %v3211
    %vm3218 = vmor %vm3216, %vm3217
    %v3219 = vsel %vm3218, %v3211, %v3215
    %v3220 = vand.u32 2147483647, %v3194
    %vm3221 = vcmp.eq.f32.partialorder %v3220, 8.507059e+37
    %v3222 = vand.u32 %v3194, 2147483648
    %v3223 = vor.u32 1.1754944e-38, %v3222
    %v3224 = vsel %vm3221, %v3223, %v3219
    %v3225 = vmul.f32 1.0, %v3224
    %v3226 = vrcp.pop %v3195
    %v3227 = vmul.f32 %v3195, %v3226
    %v3228 = vsub.f32 1.0, %v3227
    %v3229 = vmul.f32 %v3226, %v3228
    %v3230 = vadd.f32 %v3226, %v3229
    %vm3231 = vweird.f32 %v3195
    %vm3232 = vweird.f32 %v3226
    %vm3233 = vmor %vm3231, %vm3232
    %v3234 = vsel %vm3233, %v3226, %v3230
    %v3235 = vand.u32 2147483647, %v3195
    %vm3236 = vcmp.eq.f32.partialorder %v3235, 8.507059e+37
    %v3237 = vand.u32 %v3195, 2147483648
    %v3238 = vor.u32 1.1754944e-38, %v3237
    %v3239 = vsel %vm3236, %v3238, %v3234
    %v3240 = vmul.f32 1.0, %v3239
    %v3241 = vtanh.pop %v3183
    %v3242 = vmul.f32 %v3225, %v2863
    %v3243 = vmul.f32 %v3210, %v3241
    %v3244 = vadd.f32 %v3242, %v3243
    %v3245 = vtanh.pop %v3244
    %v3246 = vmul.f32 %v3240, %v3245
    %3247 = vmatpush.msra.mxu0 %v438
    %3248 = vmatpush.msra.mxu0 %v434
    %3249 = vmatpush.msra.mxu0 %v430
    %3250 = vmatpush.msra.mxu0 %v426
    %3251 = vmatpush.msra.mxu0 %v422
    %3252 = vmatpush.msra.mxu0 %v418
    %3253 = vmatpush.msra.mxu0 %v414
    %3254 = vmatpush.msra.mxu0 %v410
    %3255 = vmatpush.msra.mxu0 %v406
    %3256 = vmatpush.msra.mxu0 %v402
    %3257 = vmatpush.msra.mxu0 %v398
    %3258 = vmatpush.msra.mxu0 %v394
    %3259 = vmatpush.msra.mxu0 %v390
    %3260 = vmatpush.msra.mxu0 %v386
    %3261 = vmatpush.msra.mxu0 %v382
    %3262 = vmatpush.msra.mxu0 %v378
    %3263 = vmatmul.f32.gmra.mxu0 %v3246
    %v3264 = vpop.f32.mrf.mxu0
    %v3265 = vadd.f32 %v444, %v3264
    %3266 = vdwg.mxu0
    %3267 = vmatpush.msra.mxu0 %v439
    %3268 = vmatpush.msra.mxu0 %v435
    %3269 = vmatpush.msra.mxu0 %v431
    %3270 = vmatpush.msra.mxu0 %v427
    %3271 = vmatpush.msra.mxu0 %v423
    %3272 = vmatpush.msra.mxu0 %v419
    %3273 = vmatpush.msra.mxu0 %v415
    %3274 = vmatpush.msra.mxu0 %v411
    %3275 = vmatpush.msra.mxu0 %v407
    %3276 = vmatpush.msra.mxu0 %v403
    %3277 = vmatpush.msra.mxu0 %v399
    %3278 = vmatpush.msra.mxu0 %v395
    %3279 = vmatpush.msra.mxu0 %v391
    %3280 = vmatpush.msra.mxu0 %v387
    %3281 = vmatpush.msra.mxu0 %v383
    %3282 = vmatpush.msra.mxu0 %v379
    %3283 = vmatmul.f32.gmra.mxu0 %v3246
    %v3284 = vpop.f32.mrf.mxu0
    %v3285 = vadd.f32 %v445, %v3284
    %3286 = vdwg.mxu0
    %3287 = vmatpush.msra.mxu0 %v440
    %3288 = vmatpush.msra.mxu0 %v436
    %3289 = vmatpush.msra.mxu0 %v432
    %3290 = vmatpush.msra.mxu0 %v428
    %3291 = vmatpush.msra.mxu0 %v424
    %3292 = vmatpush.msra.mxu0 %v420
    %3293 = vmatpush.msra.mxu0 %v416
    %3294 = vmatpush.msra.mxu0 %v412
    %3295 = vmatpush.msra.mxu0 %v408
    %3296 = vmatpush.msra.mxu0 %v404
    %3297 = vmatpush.msra.mxu0 %v400
    %3298 = vmatpush.msra.mxu0 %v396
    %3299 = vmatpush.msra.mxu0 %v392
    %3300 = vmatpush.msra.mxu0 %v388
    %3301 = vmatpush.msra.mxu0 %v384
    %3302 = vmatpush.msra.mxu0 %v380
    %3303 = vmatmul.f32.gmra.mxu0 %v3246
    %v3304 = vpop.f32.mrf.mxu0
    %v3305 = vadd.f32 %v446, %v3304
    %3306 = vdwg.mxu0
    %3307 = vmatpush.msra.mxu0 %v441
    %3308 = vmatpush.msra.mxu0 %v437
    %3309 = vmatpush.msra.mxu0 %v433
    %3310 = vmatpush.msra.mxu0 %v429
    %3311 = vmatpush.msra.mxu0 %v425
    %3312 = vmatpush.msra.mxu0 %v421
    %3313 = vmatpush.msra.mxu0 %v417
    %3314 = vmatpush.msra.mxu0 %v413
    %3315 = vmatpush.msra.mxu0 %v409
    %3316 = vmatpush.msra.mxu0 %v405
    %3317 = vmatpush.msra.mxu0 %v401
    %3318 = vmatpush.msra.mxu0 %v397
    %3319 = vmatpush.msra.mxu0 %v393
    %3320 = vmatpush.msra.mxu0 %v389
    %3321 = vmatpush.msra.mxu0 %v385
    %3322 = vmatpush.msra.mxu0 %v381
    %3323 = vmatmul.f32.gmra.mxu0 %v3246
    %v3324 = vpop.f32.mrf.mxu0
    %v3325 = vadd.f32 %v447, %v3324
    %3326 = vdwg.mxu0
    %s3327 = smul.u32 7, 4
    %s3328 = smul.addr %s3327, 8
    %s3329 = scalar_lea.vmem [#allocation2], %s3328
    %v3330 = vld [vmem:[%s3329] sm:$0xff]
    %v3331 = vld [vmem:[%s3329 + $0x8] sm:$0xff]
    %v3332 = vld [vmem:[%s3329 + $0x10] sm:$0xff]
    %v3333 = vld [vmem:[%s3329 + $0x18] sm:$0xff]
    %3334 = vmatpush.msra.mxu0 %v599
    %3335 = vmatpush.msra.mxu0 %v595
    %3336 = vmatpush.msra.mxu0 %v591
    %3337 = vmatpush.msra.mxu0 %v587
    %3338 = vmatpush.msra.mxu0 %v583
    %3339 = vmatpush.msra.mxu0 %v579
    %3340 = vmatpush.msra.mxu0 %v575
    %3341 = vmatpush.msra.mxu0 %v571
    %3342 = vmatpush.msra.mxu0 %v567
    %3343 = vmatpush.msra.mxu0 %v563
    %3344 = vmatpush.msra.mxu0 %v559
    %3345 = vmatpush.msra.mxu0 %v555
    %3346 = vmatpush.msra.mxu0 %v551
    %3347 = vmatpush.msra.mxu0 %v547
    %3348 = vmatpush.msra.mxu0 %v543
    %3349 = vmatpush.msra.mxu0 %v539
    %3350 = vmatmul.f32.gmra.mxu0 %v3099
    %v3351 = vpop.f32.mrf.mxu0
    %v3352 = vadd.f32 0.0, %v3351
    %3353 = vdwg.mxu0
    %3354 = vmatpush.msra.mxu0 %v600
    %3355 = vmatpush.msra.mxu0 %v596
    %3356 = vmatpush.msra.mxu0 %v592
    %3357 = vmatpush.msra.mxu0 %v588
    %3358 = vmatpush.msra.mxu0 %v584
    %3359 = vmatpush.msra.mxu0 %v580
    %3360 = vmatpush.msra.mxu0 %v576
    %3361 = vmatpush.msra.mxu0 %v572
    %3362 = vmatpush.msra.mxu0 %v568
    %3363 = vmatpush.msra.mxu0 %v564
    %3364 = vmatpush.msra.mxu0 %v560
    %3365 = vmatpush.msra.mxu0 %v556
    %3366 = vmatpush.msra.mxu0 %v552
    %3367 = vmatpush.msra.mxu0 %v548
    %3368 = vmatpush.msra.mxu0 %v544
    %3369 = vmatpush.msra.mxu0 %v540
    %3370 = vmatmul.f32.gmra.mxu0 %v3099
    %v3371 = vpop.f32.mrf.mxu0
    %v3372 = vadd.f32 0.0, %v3371
    %3373 = vdwg.mxu0
    %3374 = vmatpush.msra.mxu0 %v601
    %3375 = vmatpush.msra.mxu0 %v597
    %3376 = vmatpush.msra.mxu0 %v593
    %3377 = vmatpush.msra.mxu0 %v589
    %3378 = vmatpush.msra.mxu0 %v585
    %3379 = vmatpush.msra.mxu0 %v581
    %3380 = vmatpush.msra.mxu0 %v577
    %3381 = vmatpush.msra.mxu0 %v573
    %3382 = vmatpush.msra.mxu0 %v569
    %3383 = vmatpush.msra.mxu0 %v565
    %3384 = vmatpush.msra.mxu0 %v561
    %3385 = vmatpush.msra.mxu0 %v557
    %3386 = vmatpush.msra.mxu0 %v553
    %3387 = vmatpush.msra.mxu0 %v549
    %3388 = vmatpush.msra.mxu0 %v545
    %3389 = vmatpush.msra.mxu0 %v541
    %3390 = vmatmul.f32.gmra.mxu0 %v3099
    %v3391 = vpop.f32.mrf.mxu0
    %v3392 = vadd.f32 0.0, %v3391
    %3393 = vdwg.mxu0
    %3394 = vmatpush.msra.mxu0 %v602
    %3395 = vmatpush.msra.mxu0 %v598
    %3396 = vmatpush.msra.mxu0 %v594
    %3397 = vmatpush.msra.mxu0 %v590
    %3398 = vmatpush.msra.mxu0 %v586
    %3399 = vmatpush.msra.mxu0 %v582
    %3400 = vmatpush.msra.mxu0 %v578
    %3401 = vmatpush.msra.mxu0 %v574
    %3402 = vmatpush.msra.mxu0 %v570
    %3403 = vmatpush.msra.mxu0 %v566
    %3404 = vmatpush.msra.mxu0 %v562
    %3405 = vmatpush.msra.mxu0 %v558
    %3406 = vmatpush.msra.mxu0 %v554
    %3407 = vmatpush.msra.mxu0 %v550
    %3408 = vmatpush.msra.mxu0 %v546
    %3409 = vmatpush.msra.mxu0 %v542
    %3410 = vmatmul.f32.gmra.mxu0 %v3099
    %v3411 = vpop.f32.mrf.mxu0
    %v3412 = vadd.f32 0.0, %v3411
    %3413 = vdwg.mxu0
    %v3414 = vadd.f32 %v3330, %v3352
    %v3415 = vadd.f32 %v3331, %v3372
    %v3416 = vadd.f32 %v3332, %v3392
    %v3417 = vadd.f32 %v3333, %v3412
    %v3418 = vxor.u32 %v3414, 2147483648
    %v3419 = vxor.u32 %v3415, 2147483648
    %v3420 = vxor.u32 %v3416, 2147483648
    %v3421 = vmul.f32 %v3418, 1.442695
    %v3422 = vpow.pop %v3421
    %v3423 = vmul.f32 %v3419, 1.442695
    %v3424 = vpow.pop %v3423
    %v3425 = vmul.f32 %v3420, 1.442695
    %v3426 = vpow.pop %v3425
    %v3427 = vadd.f32 %v3422, 1.0
    %v3428 = vadd.f32 %v3424, 1.0
    %v3429 = vadd.f32 %v3426, 1.0
    %v3430 = vrcp.pop %v3427
    %v3431 = vmul.f32 %v3427, %v3430
    %v3432 = vsub.f32 1.0, %v3431
    %v3433 = vmul.f32 %v3430, %v3432
    %v3434 = vadd.f32 %v3430, %v3433
    %vm3435 = vweird.f32 %v3427
    %vm3436 = vweird.f32 %v3430
    %vm3437 = vmor %vm3435, %vm3436
    %v3438 = vsel %vm3437, %v3430, %v3434
    %v3439 = vand.u32 2147483647, %v3427
    %vm3440 = vcmp.eq.f32.partialorder %v3439, 8.507059e+37
    %v3441 = vand.u32 %v3427, 2147483648
    %v3442 = vor.u32 1.1754944e-38, %v3441
    %v3443 = vsel %vm3440, %v3442, %v3438
    %v3444 = vmul.f32 1.0, %v3443
    %v3445 = vrcp.pop %v3428
    %v3446 = vmul.f32 %v3428, %v3445
    %v3447 = vsub.f32 1.0, %v3446
    %v3448 = vmul.f32 %v3445, %v3447
    %v3449 = vadd.f32 %v3445, %v3448
    %vm3450 = vweird.f32 %v3428
    %vm3451 = vweird.f32 %v3445
    %vm3452 = vmor %vm3450, %vm3451
    %v3453 = vsel %vm3452, %v3445, %v3449
    %v3454 = vand.u32 2147483647, %v3428
    %vm3455 = vcmp.eq.f32.partialorder %v3454, 8.507059e+37
    %v3456 = vand.u32 %v3428, 2147483648
    %v3457 = vor.u32 1.1754944e-38, %v3456
    %v3458 = vsel %vm3455, %v3457, %v3453
    %v3459 = vmul.f32 1.0, %v3458
    %v3460 = vrcp.pop %v3429
    %v3461 = vmul.f32 %v3429, %v3460
    %v3462 = vsub.f32 1.0, %v3461
    %v3463 = vmul.f32 %v3460, %v3462
    %v3464 = vadd.f32 %v3460, %v3463
    %vm3465 = vweird.f32 %v3429
    %vm3466 = vweird.f32 %v3460
    %vm3467 = vmor %vm3465, %vm3466
    %v3468 = vsel %vm3467, %v3460, %v3464
    %v3469 = vand.u32 2147483647, %v3429
    %vm3470 = vcmp.eq.f32.partialorder %v3469, 8.507059e+37
    %v3471 = vand.u32 %v3429, 2147483648
    %v3472 = vor.u32 1.1754944e-38, %v3471
    %v3473 = vsel %vm3470, %v3472, %v3468
    %v3474 = vmul.f32 1.0, %v3473
    %v3475 = vtanh.pop %v3417
    %v3476 = vmul.f32 %v3459, %v3097
    %v3477 = vmul.f32 %v3444, %v3475
    %v3478 = vadd.f32 %v3476, %v3477
    %v3479 = vtanh.pop %v3478
    %v3480 = vmul.f32 %v3474, %v3479
    %3481 = vmatpush.msra.mxu0 %v810
    %3482 = vmatpush.msra.mxu0 %v806
    %3483 = vmatpush.msra.mxu0 %v802
    %3484 = vmatpush.msra.mxu0 %v798
    %3485 = vmatpush.msra.mxu0 %v794
    %3486 = vmatpush.msra.mxu0 %v790
    %3487 = vmatpush.msra.mxu0 %v786
    %3488 = vmatpush.msra.mxu0 %v782
    %3489 = vmatpush.msra.mxu0 %v778
    %3490 = vmatpush.msra.mxu0 %v774
    %3491 = vmatpush.msra.mxu0 %v770
    %3492 = vmatpush.msra.mxu0 %v766
    %3493 = vmatpush.msra.mxu0 %v762
    %3494 = vmatpush.msra.mxu0 %v758
    %3495 = vmatpush.msra.mxu0 %v754
    %3496 = vmatpush.msra.mxu0 %v750
    %3497 = vmatmul.f32.gmra.mxu0 %v3480
    %v3498 = vpop.f32.mrf.mxu0
    %v3499 = vadd.f32 0.0, %v3498
    %3500 = vdwg.mxu0
    %3501 = vmatpush.msra.mxu0 %v811
    %3502 = vmatpush.msra.mxu0 %v807
    %3503 = vmatpush.msra.mxu0 %v803
    %3504 = vmatpush.msra.mxu0 %v799
    %3505 = vmatpush.msra.mxu0 %v795
    %3506 = vmatpush.msra.mxu0 %v791
    %3507 = vmatpush.msra.mxu0 %v787
    %3508 = vmatpush.msra.mxu0 %v783
    %3509 = vmatpush.msra.mxu0 %v779
    %3510 = vmatpush.msra.mxu0 %v775
    %3511 = vmatpush.msra.mxu0 %v771
    %3512 = vmatpush.msra.mxu0 %v767
    %3513 = vmatpush.msra.mxu0 %v763
    %3514 = vmatpush.msra.mxu0 %v759
    %3515 = vmatpush.msra.mxu0 %v755
    %3516 = vmatpush.msra.mxu0 %v751
    %3517 = vmatmul.f32.gmra.mxu0 %v3480
    %v3518 = vpop.f32.mrf.mxu0
    %v3519 = vadd.f32 0.0, %v3518
    %3520 = vdwg.mxu0
    %3521 = vmatpush.msra.mxu0 %v812
    %3522 = vmatpush.msra.mxu0 %v808
    %3523 = vmatpush.msra.mxu0 %v804
    %3524 = vmatpush.msra.mxu0 %v800
    %3525 = vmatpush.msra.mxu0 %v796
    %3526 = vmatpush.msra.mxu0 %v792
    %3527 = vmatpush.msra.mxu0 %v788
    %3528 = vmatpush.msra.mxu0 %v784
    %3529 = vmatpush.msra.mxu0 %v780
    %3530 = vmatpush.msra.mxu0 %v776
    %3531 = vmatpush.msra.mxu0 %v772
    %3532 = vmatpush.msra.mxu0 %v768
    %3533 = vmatpush.msra.mxu0 %v764
    %3534 = vmatpush.msra.mxu0 %v760
    %3535 = vmatpush.msra.mxu0 %v756
    %3536 = vmatpush.msra.mxu0 %v752
    %3537 = vmatmul.f32.gmra.mxu0 %v3480
    %v3538 = vpop.f32.mrf.mxu0
    %v3539 = vadd.f32 0.0, %v3538
    %3540 = vdwg.mxu0
    %3541 = vmatpush.msra.mxu0 %v813
    %3542 = vmatpush.msra.mxu0 %v809
    %3543 = vmatpush.msra.mxu0 %v805
    %3544 = vmatpush.msra.mxu0 %v801
    %3545 = vmatpush.msra.mxu0 %v797
    %3546 = vmatpush.msra.mxu0 %v793
    %3547 = vmatpush.msra.mxu0 %v789
    %3548 = vmatpush.msra.mxu0 %v785
    %3549 = vmatpush.msra.mxu0 %v781
    %3550 = vmatpush.msra.mxu0 %v777
    %3551 = vmatpush.msra.mxu0 %v773
    %3552 = vmatpush.msra.mxu0 %v769
    %3553 = vmatpush.msra.mxu0 %v765
    %3554 = vmatpush.msra.mxu0 %v761
    %3555 = vmatpush.msra.mxu0 %v757
    %3556 = vmatpush.msra.mxu0 %v753
    %3557 = vmatmul.f32.gmra.mxu0 %v3480
    %v3558 = vpop.f32.mrf.mxu0
    %v3559 = vadd.f32 0.0, %v3558
    %3560 = vdwg.mxu0
    %v3561 = vadd.f32 %v3265, %v3499
    %v3562 = vadd.f32 %v3285, %v3519
    %v3563 = vadd.f32 %v3305, %v3539
    %v3564 = vadd.f32 %v3325, %v3559
    %v3565 = vxor.u32 %v3561, 2147483648
    %v3566 = vxor.u32 %v3562, 2147483648
    %v3567 = vxor.u32 %v3563, 2147483648
    %v3568 = vmul.f32 %v3565, 1.442695
    %v3569 = vpow.pop %v3568
    %v3570 = vmul.f32 %v3566, 1.442695
    %v3571 = vpow.pop %v3570
    %v3572 = vmul.f32 %v3567, 1.442695
    %v3573 = vpow.pop %v3572
    %v3574 = vadd.f32 %v3569, 1.0
    %v3575 = vadd.f32 %v3571, 1.0
    %v3576 = vadd.f32 %v3573, 1.0
    %v3577 = vrcp.pop %v3574
    %v3578 = vmul.f32 %v3574, %v3577
    %v3579 = vsub.f32 1.0, %v3578
    %v3580 = vmul.f32 %v3577, %v3579
    %v3581 = vadd.f32 %v3577, %v3580
    %vm3582 = vweird.f32 %v3574
    %vm3583 = vweird.f32 %v3577
    %vm3584 = vmor %vm3582, %vm3583
    %v3585 = vsel %vm3584, %v3577, %v3581
    %v3586 = vand.u32 2147483647, %v3574
    %vm3587 = vcmp.eq.f32.partialorder %v3586, 8.507059e+37
    %v3588 = vand.u32 %v3574, 2147483648
    %v3589 = vor.u32 1.1754944e-38, %v3588
    %v3590 = vsel %vm3587, %v3589, %v3585
    %v3591 = vmul.f32 1.0, %v3590
    %v3592 = vrcp.pop %v3575
    %v3593 = vmul.f32 %v3575, %v3592
    %v3594 = vsub.f32 1.0, %v3593
    %v3595 = vmul.f32 %v3592, %v3594
    %v3596 = vadd.f32 %v3592, %v3595
    %vm3597 = vweird.f32 %v3575
    %vm3598 = vweird.f32 %v3592
    %vm3599 = vmor %vm3597, %vm3598
    %v3600 = vsel %vm3599, %v3592, %v3596
    %v3601 = vand.u32 2147483647, %v3575
    %vm3602 = vcmp.eq.f32.partialorder %v3601, 8.507059e+37
    %v3603 = vand.u32 %v3575, 2147483648
    %v3604 = vor.u32 1.1754944e-38, %v3603
    %v3605 = vsel %vm3602, %v3604, %v3600
    %v3606 = vmul.f32 1.0, %v3605
    %v3607 = vrcp.pop %v3576
    %v3608 = vmul.f32 %v3576, %v3607
    %v3609 = vsub.f32 1.0, %v3608
    %v3610 = vmul.f32 %v3607, %v3609
    %v3611 = vadd.f32 %v3607, %v3610
    %vm3612 = vweird.f32 %v3576
    %vm3613 = vweird.f32 %v3607
    %vm3614 = vmor %vm3612, %vm3613
    %v3615 = vsel %vm3614, %v3607, %v3611
    %v3616 = vand.u32 2147483647, %v3576
    %vm3617 = vcmp.eq.f32.partialorder %v3616, 8.507059e+37
    %v3618 = vand.u32 %v3576, 2147483648
    %v3619 = vor.u32 1.1754944e-38, %v3618
    %v3620 = vsel %vm3617, %v3619, %v3615
    %v3621 = vmul.f32 1.0, %v3620
    %v3622 = vtanh.pop %v3564
    %v3623 = vmul.f32 %v3606, %v3244
    %v3624 = vmul.f32 %v3591, %v3622
    %v3625 = vadd.f32 %v3623, %v3624
    %v3626 = vtanh.pop %v3625
    %v3627 = vmul.f32 %v3621, %v3626
    %3628 = vst [vmem:[#allocation3] sm:$0xff] %v3480
    %3629 = vst [vmem:[#allocation4] sm:$0xff] %v3478
    %3630 = vst [vmem:[#allocation5] sm:$0xff] %v3627
    %3631 = vst [vmem:[#allocation6] sm:$0xff] %v3625
    // Predicated region
    $region58: #{tpu_custom_call.1} parent=1 // pred_check
      %p3632 = pneg %p95
    $region59: #{tpu_custom_call.1} parent=1 // pred_check_branch
      %3634 = sbr.rel (%p3632) target = $region61
    $region60: #{tpu_custom_call.1} parent=1 // pred_region
      %v3635 = vld [vmem:[%s7] sm:$0xff]
      %v3636 = vld [vmem:[%s7 + $0x8] sm:$0xff]
      %v3637 = vld [vmem:[%s7 + $0x10] sm:$0xff]
      %v3638 = vld [vmem:[%s7 + $0x18] sm:$0xff]
      %v3639 = vld [vmem:[%s7 + $0x20] sm:$0xff]
      %v3640 = vld [vmem:[%s7 + $0x28] sm:$0xff]
      %v3641 = vld [vmem:[%s7 + $0x30] sm:$0xff]
      %v3642 = vld [vmem:[%s7 + $0x38] sm:$0xff]
      %v3643 = vld [vmem:[%s7 + $0x40] sm:$0xff]
      %v3644 = vld [vmem:[%s7 + $0x48] sm:$0xff]
      %v3645 = vld [vmem:[%s7 + $0x50] sm:$0xff]
      %v3646 = vld [vmem:[%s7 + $0x58] sm:$0xff]
      %v3647 = vld [vmem:[%s7 + $0x60] sm:$0xff]
      %v3648 = vld [vmem:[%s7 + $0x68] sm:$0xff]
      %v3649 = vld [vmem:[%s7 + $0x70] sm:$0xff]
      %v3650 = vld [vmem:[%s7 + $0x78] sm:$0xff]
      %v3651 = vld [vmem:[%s8] sm:$0x1]
      %v3653 = vperm.slane %v3651, 0
      %3655 = vmatpush.msra.mxu0 %v3650
      %3656 = vmatpush.msra.mxu0 %v3649
      %3657 = vmatpush.msra.mxu0 %v3648
      %3658 = vmatpush.msra.mxu0 %v3647
      %3659 = vmatpush.msra.mxu0 %v3646
      %3660 = vmatpush.msra.mxu0 %v3645
      %3661 = vmatpush.msra.mxu0 %v3644
      %3662 = vmatpush.msra.mxu0 %v3643
      %3663 = vmatpush.msra.mxu0 %v3642
      %3664 = vmatpush.msra.mxu0 %v3641
      %3665 = vmatpush.msra.mxu0 %v3640
      %3666 = vmatpush.msra.mxu0 %v3639
      %3667 = vmatpush.msra.mxu0 %v3638
      %3668 = vmatpush.msra.mxu0 %v3637
      %3669 = vmatpush.msra.mxu0 %v3636
      %3670 = vmatpush.msra.mxu0 %v3635
      %3671 = vmatmul.f32.gmra.mxu0 %v3627
      %v3672 = vpop.f32.mrf.mxu0
      %v3673 = vadd.f32 %v3653, %v3672
      %3674 = vdwg.mxu0
      %vm3675 = vcmask 15360
      %3676 = vst.msk [vmem:[%s9] sm:$0xff] %vm3675, %v3673
    $region61: #{tpu_custom_call.1} parent=1 // pred_fallthru
      _
    // Predicated region
    $region62: #{tpu_custom_call.1} parent=1 // pred_check
      _
    $region63: #{tpu_custom_call.1} parent=1 // pred_check_branch
      %3678 = sbr.rel (0) target = $region65
    $region64: #{tpu_custom_call.1} parent=1 // pred_region
      _
    $region65: #{tpu_custom_call.1} parent=1 // pred_fallthru
      _
    // Predicated region
    $region66: #{tpu_custom_call.1} parent=1 // pred_check
      _
    $region67: #{tpu_custom_call.1} parent=1 // pred_check_branch
      %3680 = sbr.rel (0) target = $region69
    $region68: #{tpu_custom_call.1} parent=1 // pred_region
      _
    $region69: #{tpu_custom_call.1} parent=1 // pred_fallthru
      _
    %3681 = vsyncpa [#allocation8], 1
    %3682 = vsyncpa [#allocation10], 1
    %3683 = vsyncpa [#allocation13], 1

</llo_original>
